<compile_context>
chip_gen: v7x
topology: tpu7x:2x2x1
jax: 0.10.0
libtpu: 0.0.40
codegen_flags: <defaults>
</compile_context>

<pallas_src>
import functools

import jax
import jax.numpy as jnp
import numpy as np
from jax.experimental import pallas as pl
from jax.experimental.pallas import tpu as pltpu

MXU_DTYPE = jnp.bfloat16          # matmul operand dtype (accumulate in f32)

# (pad_top, pad_left, pad_right) -- used by the pure-JAX reference only.
DOWN_SHIFTED_PADS = (1, 1, 1)         # filter (2, 3)
DOWN_RIGHT_SHIFTED_PADS = (1, 1, 0)   # filter (2, 2)


# ----------------------------- in-kernel helpers ---------------------------

def _elu_pair(v):
    """Return (elu(v), elu(-v)) with a single exp per element."""
    e = jnp.exp(-jnp.abs(v)) - 1.0
    pos = v > 0
    return jnp.where(pos, v, e), jnp.where(pos, e, -v)


def _shift_add_taps(y_ext, taps, W, TW, cout, not_first_col, not_last_col,
                    col_base):
    """Accumulate per-tap contributions of a fat conv matmul.

    y_ext: (TW + W, >= col_base + ntaps*cout) f32.  Row q is pixel q of
      [previous image row (carry) ; current tile], row-major over (h, w).
    Output pixel p (0 <= p < TW) lives at y_ext row p + W; a tap with offsets
    (roff, coff) contributes y_ext[p + W + roff*W + coff, tap columns],
    masked to zero where the source column is in the left/right zero padding.
    """
    rows = y_ext.shape[0]
    acc = None
    for i, (roff, coff) in enumerate(taps):
        start = W + roff * W + coff
        c0 = col_base + i * cout
        ysl = y_ext[:, c0:c0 + cout]
        if start < 0:
            # start == -1: the single OOB element (top-left) is masked anyway.
            win = jnp.concatenate(
                [jnp.zeros((1, cout), ysl.dtype), ysl[:TW - 1, :]], axis=0)
        elif start + TW > rows:
            # start == W+1: the single OOB element (bottom-right) is masked.
            win = jnp.concatenate(
                [ysl[start:, :], jnp.zeros((1, cout), ysl.dtype)], axis=0)
        else:
            win = ysl[start:start + TW, :]
        if coff < 0:
            win = jnp.where(not_first_col, win, 0.0)
        elif coff > 0:
            win = jnp.where(not_last_col, win, 0.0)
        acc = win if acc is None else acc + win
    return acc


def _gated_resnet_kernel(*refs, n_skip, taps, W, TW, F, mxu_dtype):
    it = iter(refs)
    og_ref = next(it)
    a_refs = [next(it) for _ in range(n_skip)]
    win_p_ref, win_n_ref, b_in_ref = next(it), next(it), next(it)
    wnin_refs = [(next(it), next(it)) for _ in range(n_skip)]
    b_nin_ref = next(it)
    wout_p_ref, wout_n_ref = next(it), next(it)
    b_out_a_ref, b_out_b_ref = next(it), next(it)
    out_ref = next(it)
    carry_og_ref, carry_x_ref = next(it), next(it)

    ntaps = len(taps)
    t = pl.program_id(1)

    # Reset the causal-halo carry at the top row-tile of every image.
    @pl.when(t == 0)
    def _():
        carry_og_ref[...] = jnp.zeros_like(carry_og_ref)
        carry_x_ref[...] = jnp.zeros_like(carry_x_ref)

    wcol = jax.lax.broadcasted_iota(jnp.int32, (TW, 1), 0) % W
    not_first_col = wcol != 0
    not_last_col = wcol != (W - 1)

    og = og_ref[...]                                        # (TW, F) f32
    og_ext = jnp.concatenate([carry_og_ref[...], og], 0)    # (TW + W, F)

    # ---- x = conv_input(concat_elu(og))  (fat matmul + shift-add) ---------
    ep, en = _elu_pair(og_ext)
    y_in = (jnp.dot(ep.astype(mxu_dtype), win_p_ref[...],
                    preferred_element_type=jnp.float32)
            + jnp.dot(en.astype(mxu_dtype), win_n_ref[...],
                      preferred_element_type=jnp.float32))
    x = _shift_add_taps(y_in, taps, W, TW, F, not_first_col, not_last_col, 0)
    x = x + b_in_ref[...]

    # ---- x += nin_skip(concat_elu(a))  (1x1 conv, split weights) ----------
    for j in range(n_skip):
        ap, an = _elu_pair(a_refs[j][...])
        wp_ref, wn_ref = wnin_refs[j]
        x = x + jnp.dot(ap.astype(mxu_dtype), wp_ref[...],
                        preferred_element_type=jnp.float32)
        x = x + jnp.dot(an.astype(mxu_dtype), wn_ref[...],
                        preferred_element_type=jnp.float32)
    x = x + b_nin_ref[...]

    # TODO(synk): nn.Dropout2d(0.5) omitted -- kernel implements eval mode.

    x_ext = jnp.concatenate([carry_x_ref[...], x], 0)       # (TW + W, F)
    # Update the carry for the next row-tile (reads above happen first).
    carry_og_ref[...] = og[TW - W:, :]
    carry_x_ref[...] = x[TW - W:, :]

    # ---- conv_out(concat_elu(x)) -> two gate accumulators -> residual -----
    xp, xn = _elu_pair(x_ext)
    y_out = (jnp.dot(xp.astype(mxu_dtype), wout_p_ref[...],
                     preferred_element_type=jnp.float32)
             + jnp.dot(xn.astype(mxu_dtype), wout_n_ref[...],
                       preferred_element_type=jnp.float32))
    gate_a = _shift_add_taps(y_out, taps, W, TW, F, not_first_col,
                             not_last_col, 0) + b_out_a_ref[...]
    gate_b = _shift_add_taps(y_out, taps, W, TW, F, not_first_col,
                             not_last_col, ntaps * F) + b_out_b_ref[...]
    sig = pl.reciprocal(1.0 + jnp.exp(-gate_b), approx=True)
    out_ref[...] = (og + gate_a * sig).astype(out_ref.dtype)


# ------------------------------ pallas wrapper ------------------------------

def _pick_tile_rows(H, W, C, budget_bytes=1 << 20):
    """Largest row-tile that divides H, keeps (8,·) alignment and fits budget."""
    best = H
    for th in range(1, H + 1):
        if H % th or (th * W) % 8 or th * W * C * 4 > budget_bytes:
            continue
        best = th
    return best


def gated_resnet_pallas(og, a_list, kp, *, W, tile_rows=None,
                        mxu_dtype=MXU_DTYPE):
    """One gated_resnet block as a single pallas_call.

    og: (B, H*W, F) f32.  a_list: list of (B, H*W, F) skip activations.
    kp: packed kernel params (see _pack_gated_resnet).
    """
    B, P, F = og.shape
    assert P % W == 0
    H = P // W
    if tile_rows is None:
        tile_rows = _pick_tile_rows(H, W, F)
    assert H % tile_rows == 0
    TW = tile_rows * W
    assert TW % 8 == 0 or TW == P
    n_skip = len(a_list)
    taps = kp['taps']

    grid = (B, H // tile_rows)
    act_spec = pl.BlockSpec((None, TW, F), lambda b, t: (b, t, 0))

    def const_spec(arr):
        return pl.BlockSpec(arr.shape, lambda b, t: (0, 0))

    weights = ([kp['win_p'], kp['win_n'], kp['b_in']]
               + [w for pair in kp['wnin'] for w in pair]
               + [kp['b_nin'], kp['wout_p'], kp['wout_n'],
                  kp['b_out_a'], kp['b_out_b']])
    operands = [og] + list(a_list) + weights
    in_specs = [act_spec] * (1 + n_skip) + [const_spec(w) for w in weights]

    kern = functools.partial(_gated_resnet_kernel, n_skip=n_skip, taps=taps,
                             W=W, TW=TW, F=F, mxu_dtype=mxu_dtype)
    return pl.pallas_call(
        kern,
        grid=grid,
        out_shape=jax.ShapeDtypeStruct((B, P, F), og.dtype),
        in_specs=in_specs,
        out_specs=act_spec,
        scratch_shapes=[pltpu.VMEM((W, F), jnp.float32),   # carry: og last row
                        pltpu.VMEM((W, F), jnp.float32)],  # carry: x  last row
        compiler_params=pltpu.CompilerParams(
            dimension_semantics=("parallel", "arbitrary"),
            vmem_limit_bytes=32 * 1024 * 1024),
    )(*operands)


def pixelcnn_layer_down(u, ul, u_list, ul_list, packed, *, tile_rows=None):
    """Pallas forward of PixelCNNLayer_down.  u/ul: (B, H, W, F) NHWC."""
    B, H, W, F = u.shape
    flat = lambda z: z.reshape(B, H * W, F)
    u_f, ul_f = flat(u), flat(ul)
    u_stack = [flat(z) for z in u_list]
    ul_stack = [flat(z) for z in ul_list]
    for i in range(len(packed['u'])):
        u_f = gated_resnet_pallas(u_f, [u_stack.pop()], packed['u'][i],
                                  W=W, tile_rows=tile_rows)
        # skip_connection=2: pass u and the ul skip as separate operands with a
        # split nin weight instead of torch.cat((u, ul_skip), 1): the 2F-channel
        # concat never round-trips through HBM.
        ul_f = gated_resnet_pallas(ul_f, [u_f, ul_stack.pop()],
                                   packed['ul'][i], W=W, tile_rows=tile_rows)
    return u_f.reshape(B, H, W, F), ul_f.reshape(B, H, W, F)


# --------------------------- parameter preparation --------------------------

def _fat(w):
    """(KH, KW, Cin, Cout) -> (Cin, KH*KW*Cout), tap-major / Cout-minor."""
    kh, kw, ci, co = w.shape
    return jnp.transpose(w, (2, 0, 1, 3)).reshape(ci, kh * kw * co)


def _pack_gated_resnet(p, F, n_skip):
    w_in, w_out, w_nin = p['w_in'], p['w_out'], p['w_nin']
    KH, KW = w_in.shape[0], w_in.shape[1]
    # pad_top = pad_left = 1 for both down-shifted (2,3) and
    # down-right-shifted (2,2) convs -> tap offsets (kh-1, kw-1).
    taps = tuple((kh - 1, kw - 1) for kh in range(KH) for kw in range(KW))
    return {
        'taps': taps,
        'win_p': _fat(w_in[:, :, :F, :]).astype(MXU_DTYPE),
        'win_n': _fat(w_in[:, :, F:, :]).astype(MXU_DTYPE),
        'b_in': p['b_in'].astype(jnp.float32),
        'wnin': [(w_nin[j * F:(j + 1) * F, :].astype(MXU_DTYPE),
                  w_nin[(n_skip + j) * F:(n_skip + j + 1) * F, :]
                  .astype(MXU_DTYPE)) for j in range(n_skip)],
        'b_nin': p['b_nin'].astype(jnp.float32),
        # conv_out: gate_a tap-columns first, then gate_b tap-columns, so the
        # gates come out of the shift-add as two separate accumulators
        # (no x[..., :F] / x[..., F:] slicing on the fused 2F output).
        'wout_p': jnp.concatenate([_fat(w_out[:, :, :F, :F]),
                                   _fat(w_out[:, :, :F, F:])],
                                  axis=1).astype(MXU_DTYPE),
        'wout_n': jnp.concatenate([_fat(w_out[:, :, F:, :F]),
                                   _fat(w_out[:, :, F:, F:])],
                                  axis=1).astype(MXU_DTYPE),
        'b_out_a': p['b_out'][:, :F].astype(jnp.float32),
        'b_out_b': p['b_out'][:, F:].astype(jnp.float32),
    }


def pack_params(params, F):
    return {'u': [_pack_gated_resnet(p, F, n_skip=1) for p in params['u']],
            'ul': [_pack_gated_resnet(p, F, n_skip=2) for p in params['ul']]}


def init_params(key, nr_resnet, F):
    def rnd(k, shape):
        return jax.random.normal(k, shape, jnp.float32) * 0.05

    params = {'u': [], 'ul': []}
    keys = jax.random.split(key, nr_resnet * 2)
    for i in range(nr_resnet):
        ku = jax.random.split(keys[2 * i], 6)
        params['u'].append({
            'w_in': rnd(ku[0], (2, 3, 2 * F, F)),   'b_in': rnd(ku[1], (1, F)),
            'w_nin': rnd(ku[2], (2 * F, F)),        'b_nin': rnd(ku[3], (1, F)),
            'w_out': rnd(ku[4], (2, 3, 2 * F, 2 * F)),
            'b_out': rnd(ku[5], (1, 2 * F)),
        })
        kl = jax.random.split(keys[2 * i + 1], 6)
        params['ul'].append({
            'w_in': rnd(kl[0], (2, 2, 2 * F, F)),   'b_in': rnd(kl[1], (1, F)),
            'w_nin': rnd(kl[2], (4 * F, F)),        'b_nin': rnd(kl[3], (1, F)),
            'w_out': rnd(kl[4], (2, 2, 2 * F, 2 * F)),
            'b_out': rnd(kl[5], (1, 2 * F)),
        })
    return params


# ------------------------- pure-JAX reference check -------------------------

def _concat_elu_ref(x):
    y = jnp.concatenate([x, -x], axis=-1)
    return jnp.where(y > 0, y, jnp.exp(y) - 1.0)


def _conv2d_ref(x, w, b, pads):
    pt, plft, prt = pads
    xp = jnp.pad(x, ((0, 0), (pt, 0), (plft, prt), (0, 0)))
    y = jax.lax.conv_general_dilated(
        xp, w, (1, 1), 'VALID',
        dimension_numbers=('NHWC', 'HWIO', 'NHWC'),
        precision=jax.lax.Precision.HIGHEST)
    return y + b.reshape(1, 1, 1, -1)


def _gated_resnet_ref(og, a, p, pads):
    x = _conv2d_ref(_concat_elu_ref(og), p['w_in'], p['b_in'], pads)
    ae = _concat_elu_ref(a)
    x = x + (jnp.einsum('bhwc,cf->bhwf', ae, p['w_nin'],
                        precision=jax.lax.Precision.HIGHEST)
             + p['b_nin'].reshape(1, 1, 1, -1))
    x = _concat_elu_ref(x)
    x = _conv2d_ref(x, p['w_out'], p['b_out'], pads)
    F = og.shape[-1]
    return og + x[..., :F] * jax.nn.sigmoid(x[..., F:])


def pixelcnn_layer_down_ref(u, ul, u_list, ul_list, params):
    u_list = list(u_list)
    ul_list = list(ul_list)
    for i in range(len(params['u'])):
        u = _gated_resnet_ref(u, u_list.pop(), params['u'][i],
                              DOWN_SHIFTED_PADS)
        a = jnp.concatenate([u, ul_list.pop()], axis=-1)
        ul = _gated_resnet_ref(ul, a, params['ul'][i],
                               DOWN_RIGHT_SHIFTED_PADS)
    return u, ul


# ----------------------------------- main -----------------------------------

if __name__ == "__main__":
    B, H, W, F = 2, 16, 16, 8        # NCHW equivalent: (2, 8, 16, 16)
    nr_resnet = 2

    key = jax.random.PRNGKey(0)
    kparam, ku, kul, *kl = jax.random.split(key, 3 + 2 * nr_resnet)
    u = jax.random.normal(ku, (B, H, W, F), jnp.float32)
    ul = jax.random.normal(kul, (B, H, W, F), jnp.float32)
    u_list = [jax.random.normal(kl[i], (B, H, W, F), jnp.float32)
              for i in range(nr_resnet)]
    ul_list = [jax.random.normal(kl[nr_resnet + i], (B, H, W, F), jnp.float32)
               for i in range(nr_resnet)]

    params = init_params(kparam, nr_resnet, F)
    packed = pack_params(params, F)

    # tile_rows=8 -> grid (B, 2): exercises the row-tiling + causal-halo carry.
    u_out, ul_out = pixelcnn_layer_down(u, ul, u_list, ul_list, packed,
                                        tile_rows=8)
    jax.block_until_ready((u_out, ul_out))

    u_ref, ul_ref = pixelcnn_layer_down_ref(u, ul, u_list, ul_list, params)
    # Tolerance covers bf16 MXU operands (f32 accumulation) vs f32 reference.
    np.testing.assert_allclose(np.asarray(u_out), np.asarray(u_ref),
                               rtol=1e-2, atol=1e-2)
    np.testing.assert_allclose(np.asarray(ul_out), np.asarray(ul_ref),
                               rtol=1e-2, atol=1e-2)
    print("KERNEL_OK")
</pallas_src>

<mosaic_0001>
module attributes {stable_mosaic.version = 11 : i64} {
  func.func @_gated_resnet_kernel(%arg0: i32, %arg1: i32, %arg2: memref<1x128x8xf32, #tpu.memory_space<vmem>>, %arg3: memref<1x128x8xf32, #tpu.memory_space<vmem>>, %arg4: memref<8x48xbf16, #tpu.memory_space<vmem>>, %arg5: memref<8x48xbf16, #tpu.memory_space<vmem>>, %arg6: memref<1x8xf32, #tpu.memory_space<vmem>>, %arg7: memref<8x8xbf16, #tpu.memory_space<vmem>>, %arg8: memref<8x8xbf16, #tpu.memory_space<vmem>>, %arg9: memref<1x8xf32, #tpu.memory_space<vmem>>, %arg10: memref<8x96xbf16, #tpu.memory_space<vmem>>, %arg11: memref<8x96xbf16, #tpu.memory_space<vmem>>, %arg12: memref<1x8xf32, #tpu.memory_space<vmem>>, %arg13: memref<1x8xf32, #tpu.memory_space<vmem>>, %arg14: memref<1x128x8xf32, #tpu.memory_space<vmem>>, %arg15: memref<16x8xf32, #tpu.memory_space<vmem>>, %arg16: memref<16x8xf32, #tpu.memory_space<vmem>>) attributes {dimension_semantics = [#tpu.dimension_semantics<parallel>, #tpu.dimension_semantics<arbitrary>], iteration_bounds = array<i64: 2, 2>, scalar_prefetch = 0 : i64, scratch_operands = 2 : i64, tpu.core_type = #tpu.core_type<tc>, window_params = [{transform_indices = @transform_0, window_bounds = array<i64: 1, 128, 8>}, {transform_indices = @transform_1, window_bounds = array<i64: 1, 128, 8>}, {pipeline_mode = #tpu.pipeline_mode<synchronous>, transform_indices = @transform_2, window_bounds = array<i64: 8, 48>}, {pipeline_mode = #tpu.pipeline_mode<synchronous>, transform_indices = @transform_3, window_bounds = array<i64: 8, 48>}, {pipeline_mode = #tpu.pipeline_mode<synchronous>, transform_indices = @transform_4, window_bounds = array<i64: 1, 8>}, {pipeline_mode = #tpu.pipeline_mode<synchronous>, transform_indices = @transform_5, window_bounds = array<i64: 8, 8>}, {pipeline_mode = #tpu.pipeline_mode<synchronous>, transform_indices = @transform_6, window_bounds = array<i64: 8, 8>}, {pipeline_mode = #tpu.pipeline_mode<synchronous>, transform_indices = @transform_7, window_bounds = array<i64: 1, 8>}, {pipeline_mode = #tpu.pipeline_mode<synchronous>, transform_indices = @transform_8, window_bounds = array<i64: 8, 96>}, {pipeline_mode = #tpu.pipeline_mode<synchronous>, transform_indices = @transform_9, window_bounds = array<i64: 8, 96>}, {pipeline_mode = #tpu.pipeline_mode<synchronous>, transform_indices = @transform_10, window_bounds = array<i64: 1, 8>}, {pipeline_mode = #tpu.pipeline_mode<synchronous>, transform_indices = @transform_11, window_bounds = array<i64: 1, 8>}, {transform_indices = @transform_12, window_bounds = array<i64: 1, 128, 8>}]} {
    %c0_i32 = arith.constant 0 : i32
    %0 = arith.cmpi eq, %arg1, %c0_i32 : i32
    %1 = arith.extui %0 : i1 to i32
    %c0_i32_0 = arith.constant 0 : i32
    %2 = arith.cmpi ne, %1, %c0_i32_0 : i32
    scf.if %2 {
      %cst_79 = arith.constant 0.000000e+00 : f32
      %228 = vector.broadcast %cst_79 : f32 to vector<16x8xf32>
      %c0_80 = arith.constant 0 : index
      %c0_81 = arith.constant 0 : index
      %229 = vector.load %arg15[%c0_80, %c0_81] : memref<16x8xf32, #tpu.memory_space<vmem>>, vector<16x8xf32>
      tpu.vector_store %arg15[%c0_80, %c0_81], %228 {strides = array<i32>} : memref<16x8xf32, #tpu.memory_space<vmem>>, vector<16x8xf32>,
      %cst_82 = arith.constant 0.000000e+00 : f32
      %230 = vector.broadcast %cst_82 : f32 to vector<16x8xf32>
      %c0_83 = arith.constant 0 : index
      %c0_84 = arith.constant 0 : index
      %231 = vector.load %arg16[%c0_83, %c0_84] : memref<16x8xf32, #tpu.memory_space<vmem>>, vector<16x8xf32>
      tpu.vector_store %arg16[%c0_83, %c0_84], %230 {strides = array<i32>} : memref<16x8xf32, #tpu.memory_space<vmem>>, vector<16x8xf32>,
    } else {
    }
    %3 = tpu.iota {dimensions = array<i32: 0>} : vector<128x1xi32>
    %c16_i32 = arith.constant 16 : i32
    %c0_i32_1 = arith.constant 0 : i32
    %4 = arith.cmpi eq, %c16_i32, %c0_i32_1 : i32
    %c1_i32 = arith.constant 1 : i32
    %5 = arith.select %4, %c1_i32, %c16_i32 : i32
    %6 = vector.broadcast %5 : i32 to vector<128x1xi32>
    %7 = arith.remsi %3, %6 : vector<128x1xi32>
    %c0_i32_2 = arith.constant 0 : i32
    %8 = vector.broadcast %c0_i32_2 : i32 to vector<128x1xi32>
    %9 = arith.cmpi ne, %7, %8 : vector<128x1xi32>
    %c0_i32_3 = arith.constant 0 : i32
    %10 = vector.broadcast %c0_i32_3 : i32 to vector<128x1xi32>
    %11 = arith.cmpi slt, %7, %10 : vector<128x1xi32>
    %c0_i32_4 = arith.constant 0 : i32
    %12 = arith.cmpi slt, %5, %c0_i32_4 : i32
    %13 = vector.broadcast %12 : i1 to vector<128x1xi1>
    %14 = vector.broadcast %13 : vector<128x1xi1> to vector<128x1xi1>
    %15 = arith.xori %11, %14 : vector<128x1xi1>
    %16 = arith.andi %15, %9 : vector<128x1xi1>
    %17 = vector.broadcast %5 : i32 to vector<128x1xi32>
    %18 = arith.addi %7, %17 : vector<128x1xi32>
    %19 = arith.select %16, %18, %7 : vector<128x1xi1>, vector<128x1xi32>
    %c0_i32_5 = arith.constant 0 : i32
    %20 = vector.broadcast %c0_i32_5 : i32 to vector<128x1xi32>
    %21 = arith.cmpi ne, %19, %20 : vector<128x1xi32>
    %c15_i32 = arith.constant 15 : i32
    %22 = vector.broadcast %c15_i32 : i32 to vector<128x1xi32>
    %23 = arith.cmpi ne, %19, %22 : vector<128x1xi32>
    %c0 = arith.constant 0 : index
    %c0_6 = arith.constant 0 : index
    %c0_7 = arith.constant 0 : index
    %24 = vector.load %arg2[%c0, %c0_6, %c0_7] : memref<1x128x8xf32, #tpu.memory_space<vmem>>, vector<1x128x8xf32>
    %25 = vector.shape_cast %24 : vector<1x128x8xf32> to vector<128x8xf32>
    %c0_8 = arith.constant 0 : index
    %c0_9 = arith.constant 0 : index
    %26 = vector.load %arg15[%c0_8, %c0_9] : memref<16x8xf32, #tpu.memory_space<vmem>>, vector<16x8xf32>
    %27 = tpu.concatenate %26, %25 in 0 : vector<16x8xf32>, vector<128x8xf32> -> vector<144x8xf32>
    %28 = math.absf %27 : vector<144x8xf32>
    %cst = arith.constant 0.000000e+00 : f32
    %29 = vector.broadcast %cst : f32 to vector<144x8xf32>
    %30 = arith.subf %29, %28 : vector<144x8xf32>
    %31 = math.exp %30 : vector<144x8xf32>
    %cst_10 = arith.constant 1.000000e+00 : f32
    %32 = vector.broadcast %cst_10 : f32 to vector<144x8xf32>
    %33 = arith.subf %31, %32 : vector<144x8xf32>
    %cst_11 = arith.constant 0.000000e+00 : f32
    %34 = vector.broadcast %cst_11 : f32 to vector<144x8xf32>
    %35 = arith.cmpf ogt, %27, %34 : vector<144x8xf32>
    %36 = arith.select %35, %27, %33 : vector<144x8xi1>, vector<144x8xf32>
    %cst_12 = arith.constant 0.000000e+00 : f32
    %37 = vector.broadcast %cst_12 : f32 to vector<144x8xf32>
    %38 = arith.subf %37, %27 : vector<144x8xf32>
    %39 = arith.select %35, %33, %38 : vector<144x8xi1>, vector<144x8xf32>
    %40 = arith.truncf %36 : vector<144x8xf32> to vector<144x8xbf16>
    %c0_13 = arith.constant 0 : index
    %c0_14 = arith.constant 0 : index
    %41 = vector.load %arg4[%c0_13, %c0_14] : memref<8x48xbf16, #tpu.memory_space<vmem>>, vector<8x48xbf16>
    %cst_15 = arith.constant dense<0.000000e+00> : vector<144x48xf32>
    %42 = tpu.matmul %40, %41, %cst_15 {dimension_numbers = #tpu.dot_dimension_numbers<[1], [0], [0], [1], [0, 0, 1, 1], [], []>} : vector<144x8xbf16>, vector<8x48xbf16>, vector<144x48xf32> -> vector<144x48xf32>
    %43 = arith.truncf %39 : vector<144x8xf32> to vector<144x8xbf16>
    %c0_16 = arith.constant 0 : index
    %c0_17 = arith.constant 0 : index
    %44 = vector.load %arg5[%c0_16, %c0_17] : memref<8x48xbf16, #tpu.memory_space<vmem>>, vector<8x48xbf16>
    %cst_18 = arith.constant dense<0.000000e+00> : vector<144x48xf32>
    %45 = tpu.matmul %43, %44, %cst_18 {dimension_numbers = #tpu.dot_dimension_numbers<[1], [0], [0], [1], [0, 0, 1, 1], [], []>} : vector<144x8xbf16>, vector<8x48xbf16>, vector<144x48xf32> -> vector<144x48xf32>
    %46 = arith.addf %42, %45 : vector<144x48xf32>
    %47 = vector.extract_strided_slice %46 {offsets = [0, 0], sizes = [144, 8], strides = [1, 1]} : vector<144x48xf32> to vector<144x8xf32>
    %cst_19 = arith.constant 0.000000e+00 : f32
    %48 = vector.broadcast %cst_19 : f32 to vector<1x8xf32>
    %49 = vector.extract_strided_slice %47 {offsets = [0, 0], sizes = [127, 8], strides = [1, 1]} : vector<144x8xf32> to vector<127x8xf32>
    %50 = tpu.concatenate %48, %49 in 0 : vector<1x8xf32>, vector<127x8xf32> -> vector<128x8xf32>
    %cst_20 = arith.constant 0.000000e+00 : f32
    %51 = vector.shape_cast %21 : vector<128x1xi1> to vector<128x1xi1>
    %52 = vector.broadcast %51 : vector<128x1xi1> to vector<128x8xi1>
    %53 = vector.broadcast %cst_20 : f32 to vector<128x8xf32>
    %54 = arith.select %52, %50, %53 : vector<128x8xi1>, vector<128x8xf32>
    %55 = vector.extract_strided_slice %46 {offsets = [0, 8], sizes = [144, 8], strides = [1, 1]} : vector<144x48xf32> to vector<144x8xf32>
    %56 = vector.extract_strided_slice %55 {offsets = [0, 0], sizes = [128, 8], strides = [1, 1]} : vector<144x8xf32> to vector<128x8xf32>
    %57 = arith.addf %54, %56 : vector<128x8xf32>
    %58 = vector.extract_strided_slice %46 {offsets = [0, 16], sizes = [144, 8], strides = [1, 1]} : vector<144x48xf32> to vector<144x8xf32>
    %59 = vector.extract_strided_slice %58 {offsets = [1, 0], sizes = [128, 8], strides = [1, 1]} : vector<144x8xf32> to vector<128x8xf32>
    %cst_21 = arith.constant 0.000000e+00 : f32
    %60 = vector.shape_cast %23 : vector<128x1xi1> to vector<128x1xi1>
    %61 = vector.broadcast %60 : vector<128x1xi1> to vector<128x8xi1>
    %62 = vector.broadcast %cst_21 : f32 to vector<128x8xf32>
    %63 = arith.select %61, %59, %62 : vector<128x8xi1>, vector<128x8xf32>
    %64 = arith.addf %57, %63 : vector<128x8xf32>
    %65 = vector.extract_strided_slice %46 {offsets = [0, 24], sizes = [144, 8], strides = [1, 1]} : vector<144x48xf32> to vector<144x8xf32>
    %66 = vector.extract_strided_slice %65 {offsets = [15, 0], sizes = [128, 8], strides = [1, 1]} : vector<144x8xf32> to vector<128x8xf32>
    %cst_22 = arith.constant 0.000000e+00 : f32
    %67 = vector.shape_cast %21 : vector<128x1xi1> to vector<128x1xi1>
    %68 = vector.broadcast %67 : vector<128x1xi1> to vector<128x8xi1>
    %69 = vector.broadcast %cst_22 : f32 to vector<128x8xf32>
    %70 = arith.select %68, %66, %69 : vector<128x8xi1>, vector<128x8xf32>
    %71 = arith.addf %64, %70 : vector<128x8xf32>
    %72 = vector.extract_strided_slice %46 {offsets = [0, 32], sizes = [144, 8], strides = [1, 1]} : vector<144x48xf32> to vector<144x8xf32>
    %73 = vector.extract_strided_slice %72 {offsets = [16, 0], sizes = [128, 8], strides = [1, 1]} : vector<144x8xf32> to vector<128x8xf32>
    %74 = arith.addf %71, %73 : vector<128x8xf32>
    %75 = vector.extract_strided_slice %46 {offsets = [0, 40], sizes = [144, 8], strides = [1, 1]} : vector<144x48xf32> to vector<144x8xf32>
    %76 = vector.extract_strided_slice %75 {offsets = [17, 0], sizes = [127, 8], strides = [1, 1]} : vector<144x8xf32> to vector<127x8xf32>
    %cst_23 = arith.constant 0.000000e+00 : f32
    %77 = vector.broadcast %cst_23 : f32 to vector<1x8xf32>
    %78 = tpu.concatenate %76, %77 in 0 : vector<127x8xf32>, vector<1x8xf32> -> vector<128x8xf32>
    %cst_24 = arith.constant 0.000000e+00 : f32
    %79 = vector.shape_cast %23 : vector<128x1xi1> to vector<128x1xi1>
    %80 = vector.broadcast %79 : vector<128x1xi1> to vector<128x8xi1>
    %81 = vector.broadcast %cst_24 : f32 to vector<128x8xf32>
    %82 = arith.select %80, %78, %81 : vector<128x8xi1>, vector<128x8xf32>
    %83 = arith.addf %74, %82 : vector<128x8xf32>
    %c0_25 = arith.constant 0 : index
    %c0_26 = arith.constant 0 : index
    %84 = vector.load %arg6[%c0_25, %c0_26] : memref<1x8xf32, #tpu.memory_space<vmem>>, vector<1x8xf32>
    %85 = vector.broadcast %84 : vector<1x8xf32> to vector<128x8xf32>
    %86 = arith.addf %83, %85 : vector<128x8xf32>
    %c0_27 = arith.constant 0 : index
    %c0_28 = arith.constant 0 : index
    %c0_29 = arith.constant 0 : index
    %87 = vector.load %arg3[%c0_27, %c0_28, %c0_29] : memref<1x128x8xf32, #tpu.memory_space<vmem>>, vector<1x128x8xf32>
    %88 = vector.shape_cast %87 : vector<1x128x8xf32> to vector<128x8xf32>
    %89 = math.absf %88 : vector<128x8xf32>
    %cst_30 = arith.constant 0.000000e+00 : f32
    %90 = vector.broadcast %cst_30 : f32 to vector<128x8xf32>
    %91 = arith.subf %90, %89 : vector<128x8xf32>
    %92 = math.exp %91 : vector<128x8xf32>
    %cst_31 = arith.constant 1.000000e+00 : f32
    %93 = vector.broadcast %cst_31 : f32 to vector<128x8xf32>
    %94 = arith.subf %92, %93 : vector<128x8xf32>
    %cst_32 = arith.constant 0.000000e+00 : f32
    %95 = vector.broadcast %cst_32 : f32 to vector<128x8xf32>
    %96 = arith.cmpf ogt, %88, %95 : vector<128x8xf32>
    %97 = arith.select %96, %88, %94 : vector<128x8xi1>, vector<128x8xf32>
    %cst_33 = arith.constant 0.000000e+00 : f32
    %98 = vector.broadcast %cst_33 : f32 to vector<128x8xf32>
    %99 = arith.subf %98, %88 : vector<128x8xf32>
    %100 = arith.select %96, %94, %99 : vector<128x8xi1>, vector<128x8xf32>
    %101 = arith.truncf %97 : vector<128x8xf32> to vector<128x8xbf16>
    %c0_34 = arith.constant 0 : index
    %c0_35 = arith.constant 0 : index
    %102 = vector.load %arg7[%c0_34, %c0_35] : memref<8x8xbf16, #tpu.memory_space<vmem>>, vector<8x8xbf16>
    %cst_36 = arith.constant dense<0.000000e+00> : vector<128x8xf32>
    %103 = tpu.matmul %101, %102, %cst_36 {dimension_numbers = #tpu.dot_dimension_numbers<[1], [0], [0], [1], [0, 0, 1, 1], [], []>} : vector<128x8xbf16>, vector<8x8xbf16>, vector<128x8xf32> -> vector<128x8xf32>
    %104 = arith.addf %86, %103 : vector<128x8xf32>
    %105 = arith.truncf %100 : vector<128x8xf32> to vector<128x8xbf16>
    %c0_37 = arith.constant 0 : index
    %c0_38 = arith.constant 0 : index
    %106 = vector.load %arg8[%c0_37, %c0_38] : memref<8x8xbf16, #tpu.memory_space<vmem>>, vector<8x8xbf16>
    %cst_39 = arith.constant dense<0.000000e+00> : vector<128x8xf32>
    %107 = tpu.matmul %105, %106, %cst_39 {dimension_numbers = #tpu.dot_dimension_numbers<[1], [0], [0], [1], [0, 0, 1, 1], [], []>} : vector<128x8xbf16>, vector<8x8xbf16>, vector<128x8xf32> -> vector<128x8xf32>
    %108 = arith.addf %104, %107 : vector<128x8xf32>
    %c0_40 = arith.constant 0 : index
    %c0_41 = arith.constant 0 : index
    %109 = vector.load %arg9[%c0_40, %c0_41] : memref<1x8xf32, #tpu.memory_space<vmem>>, vector<1x8xf32>
    %110 = vector.broadcast %109 : vector<1x8xf32> to vector<128x8xf32>
    %111 = arith.addf %108, %110 : vector<128x8xf32>
    %c0_42 = arith.constant 0 : index
    %c0_43 = arith.constant 0 : index
    %112 = vector.load %arg16[%c0_42, %c0_43] : memref<16x8xf32, #tpu.memory_space<vmem>>, vector<16x8xf32>
    %113 = tpu.concatenate %112, %111 in 0 : vector<16x8xf32>, vector<128x8xf32> -> vector<144x8xf32>
    %114 = vector.extract_strided_slice %25 {offsets = [112, 0], sizes = [16, 8], strides = [1, 1]} : vector<128x8xf32> to vector<16x8xf32>
    %c0_44 = arith.constant 0 : index
    %c0_45 = arith.constant 0 : index
    %115 = vector.load %arg15[%c0_44, %c0_45] : memref<16x8xf32, #tpu.memory_space<vmem>>, vector<16x8xf32>
    tpu.vector_store %arg15[%c0_44, %c0_45], %114 {strides = array<i32>} : memref<16x8xf32, #tpu.memory_space<vmem>>, vector<16x8xf32>,
    %116 = vector.extract_strided_slice %111 {offsets = [112, 0], sizes = [16, 8], strides = [1, 1]} : vector<128x8xf32> to vector<16x8xf32>
    %c0_46 = arith.constant 0 : index
    %c0_47 = arith.constant 0 : index
    %117 = vector.load %arg16[%c0_46, %c0_47] : memref<16x8xf32, #tpu.memory_space<vmem>>, vector<16x8xf32>
    tpu.vector_store %arg16[%c0_46, %c0_47], %116 {strides = array<i32>} : memref<16x8xf32, #tpu.memory_space<vmem>>, vector<16x8xf32>,
    %118 = math.absf %113 : vector<144x8xf32>
    %cst_48 = arith.constant 0.000000e+00 : f32
    %119 = vector.broadcast %cst_48 : f32 to vector<144x8xf32>
    %120 = arith.subf %119, %118 : vector<144x8xf32>
    %121 = math.exp %120 : vector<144x8xf32>
    %cst_49 = arith.constant 1.000000e+00 : f32
    %122 = vector.broadcast %cst_49 : f32 to vector<144x8xf32>
    %123 = arith.subf %121, %122 : vector<144x8xf32>
    %cst_50 = arith.constant 0.000000e+00 : f32
    %124 = vector.broadcast %cst_50 : f32 to vector<144x8xf32>
    %125 = arith.cmpf ogt, %113, %124 : vector<144x8xf32>
    %126 = arith.select %125, %113, %123 : vector<144x8xi1>, vector<144x8xf32>
    %cst_51 = arith.constant 0.000000e+00 : f32
    %127 = vector.broadcast %cst_51 : f32 to vector<144x8xf32>
    %128 = arith.subf %127, %113 : vector<144x8xf32>
    %129 = arith.select %125, %123, %128 : vector<144x8xi1>, vector<144x8xf32>
    %130 = arith.truncf %126 : vector<144x8xf32> to vector<144x8xbf16>
    %c0_52 = arith.constant 0 : index
    %c0_53 = arith.constant 0 : index
    %131 = vector.load %arg10[%c0_52, %c0_53] : memref<8x96xbf16, #tpu.memory_space<vmem>>, vector<8x96xbf16>
    %cst_54 = arith.constant dense<0.000000e+00> : vector<144x96xf32>
    %132 = tpu.matmul %130, %131, %cst_54 {dimension_numbers = #tpu.dot_dimension_numbers<[1], [0], [0], [1], [0, 0, 1, 1], [], []>} : vector<144x8xbf16>, vector<8x96xbf16>, vector<144x96xf32> -> vector<144x96xf32>
    %133 = arith.truncf %129 : vector<144x8xf32> to vector<144x8xbf16>
    %c0_55 = arith.constant 0 : index
    %c0_56 = arith.constant 0 : index
    %134 = vector.load %arg11[%c0_55, %c0_56] : memref<8x96xbf16, #tpu.memory_space<vmem>>, vector<8x96xbf16>
    %cst_57 = arith.constant dense<0.000000e+00> : vector<144x96xf32>
    %135 = tpu.matmul %133, %134, %cst_57 {dimension_numbers = #tpu.dot_dimension_numbers<[1], [0], [0], [1], [0, 0, 1, 1], [], []>} : vector<144x8xbf16>, vector<8x96xbf16>, vector<144x96xf32> -> vector<144x96xf32>
    %136 = arith.addf %132, %135 : vector<144x96xf32>
    %137 = vector.extract_strided_slice %136 {offsets = [0, 0], sizes = [144, 8], strides = [1, 1]} : vector<144x96xf32> to vector<144x8xf32>
    %cst_58 = arith.constant 0.000000e+00 : f32
    %138 = vector.broadcast %cst_58 : f32 to vector<1x8xf32>
    %139 = vector.extract_strided_slice %137 {offsets = [0, 0], sizes = [127, 8], strides = [1, 1]} : vector<144x8xf32> to vector<127x8xf32>
    %140 = tpu.concatenate %138, %139 in 0 : vector<1x8xf32>, vector<127x8xf32> -> vector<128x8xf32>
    %cst_59 = arith.constant 0.000000e+00 : f32
    %141 = vector.shape_cast %21 : vector<128x1xi1> to vector<128x1xi1>
    %142 = vector.broadcast %141 : vector<128x1xi1> to vector<128x8xi1>
    %143 = vector.broadcast %cst_59 : f32 to vector<128x8xf32>
    %144 = arith.select %142, %140, %143 : vector<128x8xi1>, vector<128x8xf32>
    %145 = vector.extract_strided_slice %136 {offsets = [0, 8], sizes = [144, 8], strides = [1, 1]} : vector<144x96xf32> to vector<144x8xf32>
    %146 = vector.extract_strided_slice %145 {offsets = [0, 0], sizes = [128, 8], strides = [1, 1]} : vector<144x8xf32> to vector<128x8xf32>
    %147 = arith.addf %144, %146 : vector<128x8xf32>
    %148 = vector.extract_strided_slice %136 {offsets = [0, 16], sizes = [144, 8], strides = [1, 1]} : vector<144x96xf32> to vector<144x8xf32>
    %149 = vector.extract_strided_slice %148 {offsets = [1, 0], sizes = [128, 8], strides = [1, 1]} : vector<144x8xf32> to vector<128x8xf32>
    %cst_60 = arith.constant 0.000000e+00 : f32
    %150 = vector.shape_cast %23 : vector<128x1xi1> to vector<128x1xi1>
    %151 = vector.broadcast %150 : vector<128x1xi1> to vector<128x8xi1>
    %152 = vector.broadcast %cst_60 : f32 to vector<128x8xf32>
    %153 = arith.select %151, %149, %152 : vector<128x8xi1>, vector<128x8xf32>
    %154 = arith.addf %147, %153 : vector<128x8xf32>
    %155 = vector.extract_strided_slice %136 {offsets = [0, 24], sizes = [144, 8], strides = [1, 1]} : vector<144x96xf32> to vector<144x8xf32>
    %156 = vector.extract_strided_slice %155 {offsets = [15, 0], sizes = [128, 8], strides = [1, 1]} : vector<144x8xf32> to vector<128x8xf32>
    %cst_61 = arith.constant 0.000000e+00 : f32
    %157 = vector.shape_cast %21 : vector<128x1xi1> to vector<128x1xi1>
    %158 = vector.broadcast %157 : vector<128x1xi1> to vector<128x8xi1>
    %159 = vector.broadcast %cst_61 : f32 to vector<128x8xf32>
    %160 = arith.select %158, %156, %159 : vector<128x8xi1>, vector<128x8xf32>
    %161 = arith.addf %154, %160 : vector<128x8xf32>
    %162 = vector.extract_strided_slice %136 {offsets = [0, 32], sizes = [144, 8], strides = [1, 1]} : vector<144x96xf32> to vector<144x8xf32>
    %163 = vector.extract_strided_slice %162 {offsets = [16, 0], sizes = [128, 8], strides = [1, 1]} : vector<144x8xf32> to vector<128x8xf32>
    %164 = arith.addf %161, %163 : vector<128x8xf32>
    %165 = vector.extract_strided_slice %136 {offsets = [0, 40], sizes = [144, 8], strides = [1, 1]} : vector<144x96xf32> to vector<144x8xf32>
    %166 = vector.extract_strided_slice %165 {offsets = [17, 0], sizes = [127, 8], strides = [1, 1]} : vector<144x8xf32> to vector<127x8xf32>
    %cst_62 = arith.constant 0.000000e+00 : f32
    %167 = vector.broadcast %cst_62 : f32 to vector<1x8xf32>
    %168 = tpu.concatenate %166, %167 in 0 : vector<127x8xf32>, vector<1x8xf32> -> vector<128x8xf32>
    %cst_63 = arith.constant 0.000000e+00 : f32
    %169 = vector.shape_cast %23 : vector<128x1xi1> to vector<128x1xi1>
    %170 = vector.broadcast %169 : vector<128x1xi1> to vector<128x8xi1>
    %171 = vector.broadcast %cst_63 : f32 to vector<128x8xf32>
    %172 = arith.select %170, %168, %171 : vector<128x8xi1>, vector<128x8xf32>
    %173 = arith.addf %164, %172 : vector<128x8xf32>
    %c0_64 = arith.constant 0 : index
    %c0_65 = arith.constant 0 : index
    %174 = vector.load %arg12[%c0_64, %c0_65] : memref<1x8xf32, #tpu.memory_space<vmem>>, vector<1x8xf32>
    %175 = vector.broadcast %174 : vector<1x8xf32> to vector<128x8xf32>
    %176 = arith.addf %173, %175 : vector<128x8xf32>
    %177 = vector.extract_strided_slice %136 {offsets = [0, 48], sizes = [144, 8], strides = [1, 1]} : vector<144x96xf32> to vector<144x8xf32>
    %cst_66 = arith.constant 0.000000e+00 : f32
    %178 = vector.broadcast %cst_66 : f32 to vector<1x8xf32>
    %179 = vector.extract_strided_slice %177 {offsets = [0, 0], sizes = [127, 8], strides = [1, 1]} : vector<144x8xf32> to vector<127x8xf32>
    %180 = tpu.concatenate %178, %179 in 0 : vector<1x8xf32>, vector<127x8xf32> -> vector<128x8xf32>
    %cst_67 = arith.constant 0.000000e+00 : f32
    %181 = vector.shape_cast %21 : vector<128x1xi1> to vector<128x1xi1>
    %182 = vector.broadcast %181 : vector<128x1xi1> to vector<128x8xi1>
    %183 = vector.broadcast %cst_67 : f32 to vector<128x8xf32>
    %184 = arith.select %182, %180, %183 : vector<128x8xi1>, vector<128x8xf32>
    %185 = vector.extract_strided_slice %136 {offsets = [0, 56], sizes = [144, 8], strides = [1, 1]} : vector<144x96xf32> to vector<144x8xf32>
    %186 = vector.extract_strided_slice %185 {offsets = [0, 0], sizes = [128, 8], strides = [1, 1]} : vector<144x8xf32> to vector<128x8xf32>
    %187 = arith.addf %184, %186 : vector<128x8xf32>
    %188 = vector.extract_strided_slice %136 {offsets = [0, 64], sizes = [144, 8], strides = [1, 1]} : vector<144x96xf32> to vector<144x8xf32>
    %189 = vector.extract_strided_slice %188 {offsets = [1, 0], sizes = [128, 8], strides = [1, 1]} : vector<144x8xf32> to vector<128x8xf32>
    %cst_68 = arith.constant 0.000000e+00 : f32
    %190 = vector.shape_cast %23 : vector<128x1xi1> to vector<128x1xi1>
    %191 = vector.broadcast %190 : vector<128x1xi1> to vector<128x8xi1>
    %192 = vector.broadcast %cst_68 : f32 to vector<128x8xf32>
    %193 = arith.select %191, %189, %192 : vector<128x8xi1>, vector<128x8xf32>
    %194 = arith.addf %187, %193 : vector<128x8xf32>
    %195 = vector.extract_strided_slice %136 {offsets = [0, 72], sizes = [144, 8], strides = [1, 1]} : vector<144x96xf32> to vector<144x8xf32>
    %196 = vector.extract_strided_slice %195 {offsets = [15, 0], sizes = [128, 8], strides = [1, 1]} : vector<144x8xf32> to vector<128x8xf32>
    %cst_69 = arith.constant 0.000000e+00 : f32
    %197 = vector.shape_cast %21 : vector<128x1xi1> to vector<128x1xi1>
    %198 = vector.broadcast %197 : vector<128x1xi1> to vector<128x8xi1>
    %199 = vector.broadcast %cst_69 : f32 to vector<128x8xf32>
    %200 = arith.select %198, %196, %199 : vector<128x8xi1>, vector<128x8xf32>
    %201 = arith.addf %194, %200 : vector<128x8xf32>
    %202 = vector.extract_strided_slice %136 {offsets = [0, 80], sizes = [144, 8], strides = [1, 1]} : vector<144x96xf32> to vector<144x8xf32>
    %203 = vector.extract_strided_slice %202 {offsets = [16, 0], sizes = [128, 8], strides = [1, 1]} : vector<144x8xf32> to vector<128x8xf32>
    %204 = arith.addf %201, %203 : vector<128x8xf32>
    %205 = vector.extract_strided_slice %136 {offsets = [0, 88], sizes = [144, 8], strides = [1, 1]} : vector<144x96xf32> to vector<144x8xf32>
    %206 = vector.extract_strided_slice %205 {offsets = [17, 0], sizes = [127, 8], strides = [1, 1]} : vector<144x8xf32> to vector<127x8xf32>
    %cst_70 = arith.constant 0.000000e+00 : f32
    %207 = vector.broadcast %cst_70 : f32 to vector<1x8xf32>
    %208 = tpu.concatenate %206, %207 in 0 : vector<127x8xf32>, vector<1x8xf32> -> vector<128x8xf32>
    %cst_71 = arith.constant 0.000000e+00 : f32
    %209 = vector.shape_cast %23 : vector<128x1xi1> to vector<128x1xi1>
    %210 = vector.broadcast %209 : vector<128x1xi1> to vector<128x8xi1>
    %211 = vector.broadcast %cst_71 : f32 to vector<128x8xf32>
    %212 = arith.select %210, %208, %211 : vector<128x8xi1>, vector<128x8xf32>
    %213 = arith.addf %204, %212 : vector<128x8xf32>
    %c0_72 = arith.constant 0 : index
    %c0_73 = arith.constant 0 : index
    %214 = vector.load %arg13[%c0_72, %c0_73] : memref<1x8xf32, #tpu.memory_space<vmem>>, vector<1x8xf32>
    %215 = vector.broadcast %214 : vector<1x8xf32> to vector<128x8xf32>
    %216 = arith.addf %213, %215 : vector<128x8xf32>
    %cst_74 = arith.constant 0.000000e+00 : f32
    %217 = vector.broadcast %cst_74 : f32 to vector<128x8xf32>
    %218 = arith.subf %217, %216 : vector<128x8xf32>
    %219 = math.exp %218 : vector<128x8xf32>
    %cst_75 = arith.constant 1.000000e+00 : f32
    %220 = vector.broadcast %cst_75 : f32 to vector<128x8xf32>
    %221 = arith.addf %220, %219 : vector<128x8xf32>
    %222 = tpu.reciprocal %221 {approx = true} : vector<128x8xf32> -> vector<128x8xf32>
    %223 = arith.mulf %176, %222 : vector<128x8xf32>
    %224 = arith.addf %25, %223 : vector<128x8xf32>
    %c0_76 = arith.constant 0 : index
    %c0_77 = arith.constant 0 : index
    %c0_78 = arith.constant 0 : index
    %225 = vector.load %arg14[%c0_76, %c0_77, %c0_78] : memref<1x128x8xf32, #tpu.memory_space<vmem>>, vector<1x128x8xf32>
    %226 = vector.shape_cast %225 : vector<1x128x8xf32> to vector<128x8xf32>
    %227 = vector.shape_cast %224 : vector<128x8xf32> to vector<1x128x8xf32>
    tpu.vector_store %arg14[%c0_76, %c0_77, %c0_78], %227 {strides = array<i32>} : memref<1x128x8xf32, #tpu.memory_space<vmem>>, vector<1x128x8xf32>,
    return
  }
  func.func @transform_0(%arg0: i32, %arg1: i32) -> (i32, i32, i32) {
    %c0_i32 = arith.constant 0 : i32
    %c0_i32_0 = arith.constant 0 : i32
    return %arg0, %arg1, %c0_i32 : i32, i32, i32
  }
  func.func @transform_1(%arg0: i32, %arg1: i32) -> (i32, i32, i32) {
    %c0_i32 = arith.constant 0 : i32
    %c0_i32_0 = arith.constant 0 : i32
    return %arg0, %arg1, %c0_i32 : i32, i32, i32
  }
  func.func @transform_2(%arg0: i32, %arg1: i32) -> (i32, i32) {
    %c0_i32 = arith.constant 0 : i32
    %c0_i32_0 = arith.constant 0 : i32
    %c0_i32_1 = arith.constant 0 : i32
    return %c0_i32, %c0_i32_0 : i32, i32
  }
  func.func @transform_3(%arg0: i32, %arg1: i32) -> (i32, i32) {
    %c0_i32 = arith.constant 0 : i32
    %c0_i32_0 = arith.constant 0 : i32
    %c0_i32_1 = arith.constant 0 : i32
    return %c0_i32, %c0_i32_0 : i32, i32
  }
  func.func @transform_4(%arg0: i32, %arg1: i32) -> (i32, i32) {
    %c0_i32 = arith.constant 0 : i32
    %c0_i32_0 = arith.constant 0 : i32
    %c0_i32_1 = arith.constant 0 : i32
    return %c0_i32, %c0_i32_0 : i32, i32
  }
  func.func @transform_5(%arg0: i32, %arg1: i32) -> (i32, i32) {
    %c0_i32 = arith.constant 0 : i32
    %c0_i32_0 = arith.constant 0 : i32
    %c0_i32_1 = arith.constant 0 : i32
    return %c0_i32, %c0_i32_0 : i32, i32
  }
  func.func @transform_6(%arg0: i32, %arg1: i32) -> (i32, i32) {
    %c0_i32 = arith.constant 0 : i32
    %c0_i32_0 = arith.constant 0 : i32
    %c0_i32_1 = arith.constant 0 : i32
    return %c0_i32, %c0_i32_0 : i32, i32
  }
  func.func @transform_7(%arg0: i32, %arg1: i32) -> (i32, i32) {
    %c0_i32 = arith.constant 0 : i32
    %c0_i32_0 = arith.constant 0 : i32
    %c0_i32_1 = arith.constant 0 : i32
    return %c0_i32, %c0_i32_0 : i32, i32
  }
  func.func @transform_8(%arg0: i32, %arg1: i32) -> (i32, i32) {
    %c0_i32 = arith.constant 0 : i32
    %c0_i32_0 = arith.constant 0 : i32
    %c0_i32_1 = arith.constant 0 : i32
    return %c0_i32, %c0_i32_0 : i32, i32
  }
  func.func @transform_9(%arg0: i32, %arg1: i32) -> (i32, i32) {
    %c0_i32 = arith.constant 0 : i32
    %c0_i32_0 = arith.constant 0 : i32
    %c0_i32_1 = arith.constant 0 : i32
    return %c0_i32, %c0_i32_0 : i32, i32
  }
  func.func @transform_10(%arg0: i32, %arg1: i32) -> (i32, i32) {
    %c0_i32 = arith.constant 0 : i32
    %c0_i32_0 = arith.constant 0 : i32
    %c0_i32_1 = arith.constant 0 : i32
    return %c0_i32, %c0_i32_0 : i32, i32
  }
  func.func @transform_11(%arg0: i32, %arg1: i32) -> (i32, i32) {
    %c0_i32 = arith.constant 0 : i32
    %c0_i32_0 = arith.constant 0 : i32
    %c0_i32_1 = arith.constant 0 : i32
    return %c0_i32, %c0_i32_0 : i32, i32
  }
  func.func @transform_12(%arg0: i32, %arg1: i32) -> (i32, i32, i32) {
    %c0_i32 = arith.constant 0 : i32
    %c0_i32_0 = arith.constant 0 : i32
    return %arg0, %arg1, %c0_i32 : i32, i32, i32
  }
}

</mosaic_0001>

<llo_original>
// kernel: tpu_custom_call.1
$region0: #{tpu_custom_call.1}
  #allocation0 [shape = 'u32[]', space=smem, size = 0x4, offset = 0x4, fixed_abs, tag = 'smem constant byte address 0x4 - core index']
  #allocation1 [shape = 'u32[144,128]{1,0:T(1,128)}', space=vmem, size = 0x12000, scoped, tag = 'internal scratch']
  #allocation2 [shape = 'f32[16,8]{1,0:T(8,128)}', space=vmem, size = 0x2000, scoped, tag = 'scratch operand']
  #allocation3 [shape = 'f32[16,8]{1,0:T(8,128)}', space=vmem, size = 0x2000, scoped, tag = 'scratch operand']
  %s0 = inlined_call_operand.vmem [shape: f32[2,256,8], index: 0, kind: input, shape index: {}]
  %s1 = inlined_call_operand.vmem [shape: f32[2,256,8], index: 1, kind: input, shape index: {}]
  %s2 = inlined_call_operand.vmem [shape: bf16[8,48], index: 2, kind: input, shape index: {}]
  %s3 = inlined_call_operand.vmem [shape: bf16[8,48], index: 3, kind: input, shape index: {}]
  %s4 = inlined_call_operand.vmem [shape: f32[1,8], index: 4, kind: input, shape index: {}]
  %s5 = inlined_call_operand.vmem [shape: bf16[8,8], index: 5, kind: input, shape index: {}]
  %s6 = inlined_call_operand.vmem [shape: bf16[8,8], index: 6, kind: input, shape index: {}]
  %s7 = inlined_call_operand.vmem [shape: f32[1,8], index: 7, kind: input, shape index: {}]
  %s8 = inlined_call_operand.vmem [shape: bf16[8,96], index: 8, kind: input, shape index: {}]
  %s9 = inlined_call_operand.vmem [shape: bf16[8,96], index: 9, kind: input, shape index: {}]
  %s10 = inlined_call_operand.vmem [shape: f32[1,8], index: 10, kind: input, shape index: {}]
  %s11 = inlined_call_operand.vmem [shape: f32[1,8], index: 11, kind: input, shape index: {}]
  %s12 = inlined_call_operand.vmem [shape: f32[2,256,8], index: 12, kind: output, shape index: {}]
  %s13 = sld [smem:[#allocation0]]
  $region85: #{tpu_custom_call.1} parent=0
    _
  %s15 = ssub.s32 1, %s13
  %s16 = scalar_select 0, %s15, %s13
  loop: start=0, step=1, limit=6
  $region2: #{tpu_custom_call.1} parent=0 // loop_pre_header
    _
  $region3: #{tpu_custom_call.1} parent=0 // loop_header
    %s18 = sphi 0, %s22
    %p19 = scmp.ge.s32.totalorder %s18, 6
    %s25 = sphi 0, %s37
    %s26 = sphi 0, %s33
    %s27 = sphi 0, %s25
    %s28 = sphi 0, %s26
    %s29 = sphi 0, %s27
    %s30 = sphi 0, %s28
    %s42 = sphi 0, %s44
    %s45 = sphi 0, %s42
    %s46 = sphi 0, %s45
    %s62 = sphi 0, %s46
    %s70 = sphi 0, %s72
    %s73 = sphi 0, %s70
    %s74 = sphi 0, %s73
    %s90 = sphi 0, %s74
    %s94 = sphi 0, %s94
    %s96 = sphi 0, %s94
    %s97 = sphi 0, %s96
    %s111 = sphi 0, %s97
    %s115 = sphi 0, %s115
    %s117 = sphi 0, %s115
    %s118 = sphi 0, %s117
    %s132 = sphi 0, %s118
    %s136 = sphi 0, %s136
    %s138 = sphi 0, %s136
    %s139 = sphi 0, %s138
    %s153 = sphi 0, %s139
    %s157 = sphi 0, %s157
    %s159 = sphi 0, %s157
    %s160 = sphi 0, %s159
    %s174 = sphi 0, %s160
    %s178 = sphi 0, %s178
    %s180 = sphi 0, %s178
    %s181 = sphi 0, %s180
    %s195 = sphi 0, %s181
    %s199 = sphi 0, %s199
    %s201 = sphi 0, %s199
    %s202 = sphi 0, %s201
    %s216 = sphi 0, %s202
    %s220 = sphi 0, %s220
    %s222 = sphi 0, %s220
    %s223 = sphi 0, %s222
    %s237 = sphi 0, %s223
    %s241 = sphi 0, %s241
    %s243 = sphi 0, %s241
    %s244 = sphi 0, %s243
    %s258 = sphi 0, %s244
    %s262 = sphi 0, %s262
    %s264 = sphi 0, %s262
    %s265 = sphi 0, %s264
    %s279 = sphi 0, %s265
    %s283 = sphi 0, %s283
    %s285 = sphi 0, %s283
    %s286 = sphi 0, %s285
    %s300 = sphi 0, %s286
    %s308 = sphi 0, %s310
    %s311 = sphi 0, %s308
    %s312 = sphi 0, %s311
    %s328 = sphi 0, %s312
  $region4: #{tpu_custom_call.1} parent=0 // loop_header_branch
    %21 = sbr.rel (%p19) target = $region8
  $region5: #{tpu_custom_call.1} parent=0 // loop_body
    %s23 = ssub.s32 %s18, 1
    %s24 = ssub.s32 %s18, 2
    %s31 = sadd.s32 1, %s26
    %p32 = scmp.ge.s32.totalorder %s31, 2
    %s33 = scalar_select %p32, 0, %s31
    %s34 = sadd.s32 1, %s25
    %s35 = scalar_select %p32, %s34, %s25
    %p36 = scmp.ge.s32.totalorder %s35, 2
    %s37 = scalar_select %p36, 0, %s35
    %s38 = ssub.s32 %s25, %s37
    %s39 = ssub.s32 %s26, %s33
    %s40 = sor.u32 %s38, %s39
    %p41 = scmp.eq.s32.totalorder %s40, 0
    %s43 = sadd.s32 %s42, 1
    %s44 = scalar_select %p41, %s42, %s43
    %p47 = pneg %p41
    %p48 = scmp.eq.s32.totalorder %s18, 3
    %p49 = por %p47, %p48
    %p50 = scmp.ne.s32.totalorder %s42, %s45
    %p51 = scmp.eq.s32.totalorder %s18, 0
    %p52 = por %p50, %p51
    %p53 = scmp.ne.s32.totalorder %s42, %s45
    %p54 = scmp.eq.s32.totalorder %s23, 3
    %p55 = por %p53, %p54
    %p56 = scmp.ne.s32.totalorder %s45, %s46
    %p57 = scmp.eq.s32.totalorder %s23, 0
    %p58 = por %p56, %p57
    %p59 = scmp.ne.s32.totalorder %s45, %s46
    %p60 = scmp.eq.s32.totalorder %s24, 3
    %p61 = por %p59, %p60
    %p63 = scmp.ne.s32.totalorder %s46, %s62
    %p64 = scmp.eq.s32.totalorder %s24, 0
    %p65 = por %p63, %p64
    %s66 = ssub.s32 %s25, %s37
    %s67 = ssub.s32 %s26, %s33
    %s68 = sor.u32 %s66, %s67
    %p69 = scmp.eq.s32.totalorder %s68, 0
    %s71 = sadd.s32 %s70, 1
    %s72 = scalar_select %p69, %s70, %s71
    %p75 = pneg %p69
    %p76 = scmp.eq.s32.totalorder %s18, 3
    %p77 = por %p75, %p76
    %p78 = scmp.ne.s32.totalorder %s70, %s73
    %p79 = scmp.eq.s32.totalorder %s18, 0
    %p80 = por %p78, %p79
    %p81 = scmp.ne.s32.totalorder %s70, %s73
    %p82 = scmp.eq.s32.totalorder %s23, 3
    %p83 = por %p81, %p82
    %p84 = scmp.ne.s32.totalorder %s73, %s74
    %p85 = scmp.eq.s32.totalorder %s23, 0
    %p86 = por %p84, %p85
    %p87 = scmp.ne.s32.totalorder %s73, %s74
    %p88 = scmp.eq.s32.totalorder %s24, 3
    %p89 = por %p87, %p88
    %p91 = scmp.ne.s32.totalorder %s74, %s90
    %p92 = scmp.eq.s32.totalorder %s24, 0
    %p93 = por %p91, %p92
    %s95 = sadd.s32 %s94, 1
    %p98 = scmp.eq.s32.totalorder %s18, 3
    %p99 = scmp.ne.s32.totalorder %s94, %s96
    %p100 = scmp.eq.s32.totalorder %s18, 0
    %p101 = por %p99, %p100
    %p102 = scmp.ne.s32.totalorder %s94, %s96
    %p103 = scmp.eq.s32.totalorder %s23, 3
    %p104 = por %p102, %p103
    %p105 = scmp.ne.s32.totalorder %s96, %s97
    %p106 = scmp.eq.s32.totalorder %s23, 0
    %p107 = por %p105, %p106
    %p108 = scmp.ne.s32.totalorder %s96, %s97
    %p109 = scmp.eq.s32.totalorder %s24, 3
    %p110 = por %p108, %p109
    %p112 = scmp.ne.s32.totalorder %s97, %s111
    %p113 = scmp.eq.s32.totalorder %s24, 0
    %p114 = por %p112, %p113
    %s116 = sadd.s32 %s115, 1
    %p119 = scmp.eq.s32.totalorder %s18, 3
    %p120 = scmp.ne.s32.totalorder %s115, %s117
    %p121 = scmp.eq.s32.totalorder %s18, 0
    %p122 = por %p120, %p121
    %p123 = scmp.ne.s32.totalorder %s115, %s117
    %p124 = scmp.eq.s32.totalorder %s23, 3
    %p125 = por %p123, %p124
    %p126 = scmp.ne.s32.totalorder %s117, %s118
    %p127 = scmp.eq.s32.totalorder %s23, 0
    %p128 = por %p126, %p127
    %p129 = scmp.ne.s32.totalorder %s117, %s118
    %p130 = scmp.eq.s32.totalorder %s24, 3
    %p131 = por %p129, %p130
    %p133 = scmp.ne.s32.totalorder %s118, %s132
    %p134 = scmp.eq.s32.totalorder %s24, 0
    %p135 = por %p133, %p134
    %s137 = sadd.s32 %s136, 1
    %p140 = scmp.eq.s32.totalorder %s18, 3
    %p141 = scmp.ne.s32.totalorder %s136, %s138
    %p142 = scmp.eq.s32.totalorder %s18, 0
    %p143 = por %p141, %p142
    %p144 = scmp.ne.s32.totalorder %s136, %s138
    %p145 = scmp.eq.s32.totalorder %s23, 3
    %p146 = por %p144, %p145
    %p147 = scmp.ne.s32.totalorder %s138, %s139
    %p148 = scmp.eq.s32.totalorder %s23, 0
    %p149 = por %p147, %p148
    %p150 = scmp.ne.s32.totalorder %s138, %s139
    %p151 = scmp.eq.s32.totalorder %s24, 3
    %p152 = por %p150, %p151
    %p154 = scmp.ne.s32.totalorder %s139, %s153
    %p155 = scmp.eq.s32.totalorder %s24, 0
    %p156 = por %p154, %p155
    %s158 = sadd.s32 %s157, 1
    %p161 = scmp.eq.s32.totalorder %s18, 3
    %p162 = scmp.ne.s32.totalorder %s157, %s159
    %p163 = scmp.eq.s32.totalorder %s18, 0
    %p164 = por %p162, %p163
    %p165 = scmp.ne.s32.totalorder %s157, %s159
    %p166 = scmp.eq.s32.totalorder %s23, 3
    %p167 = por %p165, %p166
    %p168 = scmp.ne.s32.totalorder %s159, %s160
    %p169 = scmp.eq.s32.totalorder %s23, 0
    %p170 = por %p168, %p169
    %p171 = scmp.ne.s32.totalorder %s159, %s160
    %p172 = scmp.eq.s32.totalorder %s24, 3
    %p173 = por %p171, %p172
    %p175 = scmp.ne.s32.totalorder %s160, %s174
    %p176 = scmp.eq.s32.totalorder %s24, 0
    %p177 = por %p175, %p176
    %s179 = sadd.s32 %s178, 1
    %p182 = scmp.eq.s32.totalorder %s18, 3
    %p183 = scmp.ne.s32.totalorder %s178, %s180
    %p184 = scmp.eq.s32.totalorder %s18, 0
    %p185 = por %p183, %p184
    %p186 = scmp.ne.s32.totalorder %s178, %s180
    %p187 = scmp.eq.s32.totalorder %s23, 3
    %p188 = por %p186, %p187
    %p189 = scmp.ne.s32.totalorder %s180, %s181
    %p190 = scmp.eq.s32.totalorder %s23, 0
    %p191 = por %p189, %p190
    %p192 = scmp.ne.s32.totalorder %s180, %s181
    %p193 = scmp.eq.s32.totalorder %s24, 3
    %p194 = por %p192, %p193
    %p196 = scmp.ne.s32.totalorder %s181, %s195
    %p197 = scmp.eq.s32.totalorder %s24, 0
    %p198 = por %p196, %p197
    %s200 = sadd.s32 %s199, 1
    %p203 = scmp.eq.s32.totalorder %s18, 3
    %p204 = scmp.ne.s32.totalorder %s199, %s201
    %p205 = scmp.eq.s32.totalorder %s18, 0
    %p206 = por %p204, %p205
    %p207 = scmp.ne.s32.totalorder %s199, %s201
    %p208 = scmp.eq.s32.totalorder %s23, 3
    %p209 = por %p207, %p208
    %p210 = scmp.ne.s32.totalorder %s201, %s202
    %p211 = scmp.eq.s32.totalorder %s23, 0
    %p212 = por %p210, %p211
    %p213 = scmp.ne.s32.totalorder %s201, %s202
    %p214 = scmp.eq.s32.totalorder %s24, 3
    %p215 = por %p213, %p214
    %p217 = scmp.ne.s32.totalorder %s202, %s216
    %p218 = scmp.eq.s32.totalorder %s24, 0
    %p219 = por %p217, %p218
    %s221 = sadd.s32 %s220, 1
    %p224 = scmp.eq.s32.totalorder %s18, 3
    %p225 = scmp.ne.s32.totalorder %s220, %s222
    %p226 = scmp.eq.s32.totalorder %s18, 0
    %p227 = por %p225, %p226
    %p228 = scmp.ne.s32.totalorder %s220, %s222
    %p229 = scmp.eq.s32.totalorder %s23, 3
    %p230 = por %p228, %p229
    %p231 = scmp.ne.s32.totalorder %s222, %s223
    %p232 = scmp.eq.s32.totalorder %s23, 0
    %p233 = por %p231, %p232
    %p234 = scmp.ne.s32.totalorder %s222, %s223
    %p235 = scmp.eq.s32.totalorder %s24, 3
    %p236 = por %p234, %p235
    %p238 = scmp.ne.s32.totalorder %s223, %s237
    %p239 = scmp.eq.s32.totalorder %s24, 0
    %p240 = por %p238, %p239
    %s242 = sadd.s32 %s241, 1
    %p245 = scmp.eq.s32.totalorder %s18, 3
    %p246 = scmp.ne.s32.totalorder %s241, %s243
    %p247 = scmp.eq.s32.totalorder %s18, 0
    %p248 = por %p246, %p247
    %p249 = scmp.ne.s32.totalorder %s241, %s243
    %p250 = scmp.eq.s32.totalorder %s23, 3
    %p251 = por %p249, %p250
    %p252 = scmp.ne.s32.totalorder %s243, %s244
    %p253 = scmp.eq.s32.totalorder %s23, 0
    %p254 = por %p252, %p253
    %p255 = scmp.ne.s32.totalorder %s243, %s244
    %p256 = scmp.eq.s32.totalorder %s24, 3
    %p257 = por %p255, %p256
    %p259 = scmp.ne.s32.totalorder %s244, %s258
    %p260 = scmp.eq.s32.totalorder %s24, 0
    %p261 = por %p259, %p260
    %s263 = sadd.s32 %s262, 1
    %p266 = scmp.eq.s32.totalorder %s18, 3
    %p267 = scmp.ne.s32.totalorder %s262, %s264
    %p268 = scmp.eq.s32.totalorder %s18, 0
    %p269 = por %p267, %p268
    %p270 = scmp.ne.s32.totalorder %s262, %s264
    %p271 = scmp.eq.s32.totalorder %s23, 3
    %p272 = por %p270, %p271
    %p273 = scmp.ne.s32.totalorder %s264, %s265
    %p274 = scmp.eq.s32.totalorder %s23, 0
    %p275 = por %p273, %p274
    %p276 = scmp.ne.s32.totalorder %s264, %s265
    %p277 = scmp.eq.s32.totalorder %s24, 3
    %p278 = por %p276, %p277
    %p280 = scmp.ne.s32.totalorder %s265, %s279
    %p281 = scmp.eq.s32.totalorder %s24, 0
    %p282 = por %p280, %p281
    %s284 = sadd.s32 %s283, 1
    %p287 = scmp.eq.s32.totalorder %s18, 3
    %p288 = scmp.ne.s32.totalorder %s283, %s285
    %p289 = scmp.eq.s32.totalorder %s18, 0
    %p290 = por %p288, %p289
    %p291 = scmp.ne.s32.totalorder %s283, %s285
    %p292 = scmp.eq.s32.totalorder %s23, 3
    %p293 = por %p291, %p292
    %p294 = scmp.ne.s32.totalorder %s285, %s286
    %p295 = scmp.eq.s32.totalorder %s23, 0
    %p296 = por %p294, %p295
    %p297 = scmp.ne.s32.totalorder %s285, %s286
    %p298 = scmp.eq.s32.totalorder %s24, 3
    %p299 = por %p297, %p298
    %p301 = scmp.ne.s32.totalorder %s286, %s300
    %p302 = scmp.eq.s32.totalorder %s24, 0
    %p303 = por %p301, %p302
    %s304 = ssub.s32 %s25, %s37
    %s305 = ssub.s32 %s26, %s33
    %s306 = sor.u32 %s304, %s305
    %p307 = scmp.eq.s32.totalorder %s306, 0
    %s309 = sadd.s32 %s308, 1
    %s310 = scalar_select %p307, %s308, %s309
    %p313 = pneg %p307
    %p314 = scmp.eq.s32.totalorder %s18, 3
    %p315 = por %p313, %p314
    %p316 = scmp.ne.s32.totalorder %s308, %s311
    %p317 = scmp.eq.s32.totalorder %s18, 0
    %p318 = por %p316, %p317
    %p319 = scmp.ne.s32.totalorder %s308, %s311
    %p320 = scmp.eq.s32.totalorder %s23, 3
    %p321 = por %p319, %p320
    %p322 = scmp.ne.s32.totalorder %s311, %s312
    %p323 = scmp.eq.s32.totalorder %s23, 0
    %p324 = por %p322, %p323
    %p325 = scmp.ne.s32.totalorder %s311, %s312
    %p326 = scmp.eq.s32.totalorder %s24, 3
    %p327 = por %p325, %p326
    %p329 = scmp.ne.s32.totalorder %s312, %s328
    %p330 = scmp.eq.s32.totalorder %s24, 0
    %p331 = por %p329, %p330
    %p332 = scmp.le.s32.totalorder 1, %s18
    %p333 = scmp.lt.s32.totalorder %s18, 5
    %p334 = pnand %p332, %p333
    %p335 = pneg %p334
    // Predicated region
    $region9: #{tpu_custom_call.1} parent=5 // pred_check
      _
    $region10: #{tpu_custom_call.1} parent=5 // pred_check_branch
      %337 = sbr.rel (%p334) target = $region12
    $region11: #{tpu_custom_call.1} parent=5 // pred_region
      %s338 = ssub.s32 %s18, 1
      // Predicated region
      $region13: #{tpu_custom_call.1} parent=11 // pred_check
        %p339 = pneg %p107
      $region14: #{tpu_custom_call.1} parent=11 // pred_check_branch
        %341 = sbr.rel (%p339) target = $region16
      $region15: #{tpu_custom_call.1} parent=11 // pred_region
        _
      $region16: #{tpu_custom_call.1} parent=11 // pred_fallthru
        _
      // Predicated region
      $region17: #{tpu_custom_call.1} parent=11 // pred_check
        %p342 = pneg %p128
      $region18: #{tpu_custom_call.1} parent=11 // pred_check_branch
        %344 = sbr.rel (%p342) target = $region20
      $region19: #{tpu_custom_call.1} parent=11 // pred_region
        _
      $region20: #{tpu_custom_call.1} parent=11 // pred_fallthru
        _
      // Predicated region
      $region21: #{tpu_custom_call.1} parent=11 // pred_check
        %p345 = pneg %p149
      $region22: #{tpu_custom_call.1} parent=11 // pred_check_branch
        %347 = sbr.rel (%p345) target = $region24
      $region23: #{tpu_custom_call.1} parent=11 // pred_region
        _
      $region24: #{tpu_custom_call.1} parent=11 // pred_fallthru
        _
      // Predicated region
      $region25: #{tpu_custom_call.1} parent=11 // pred_check
        %p348 = pneg %p170
      $region26: #{tpu_custom_call.1} parent=11 // pred_check_branch
        %350 = sbr.rel (%p348) target = $region28
      $region27: #{tpu_custom_call.1} parent=11 // pred_region
        _
      $region28: #{tpu_custom_call.1} parent=11 // pred_fallthru
        _
      // Predicated region
      $region29: #{tpu_custom_call.1} parent=11 // pred_check
        %p351 = pneg %p191
      $region30: #{tpu_custom_call.1} parent=11 // pred_check_branch
        %353 = sbr.rel (%p351) target = $region32
      $region31: #{tpu_custom_call.1} parent=11 // pred_region
        _
      $region32: #{tpu_custom_call.1} parent=11 // pred_fallthru
        _
      // Predicated region
      $region33: #{tpu_custom_call.1} parent=11 // pred_check
        %p354 = pneg %p212
      $region34: #{tpu_custom_call.1} parent=11 // pred_check_branch
        %356 = sbr.rel (%p354) target = $region36
      $region35: #{tpu_custom_call.1} parent=11 // pred_region
        _
      $region36: #{tpu_custom_call.1} parent=11 // pred_fallthru
        _
      // Predicated region
      $region37: #{tpu_custom_call.1} parent=11 // pred_check
        %p357 = pneg %p233
      $region38: #{tpu_custom_call.1} parent=11 // pred_check_branch
        %359 = sbr.rel (%p357) target = $region40
      $region39: #{tpu_custom_call.1} parent=11 // pred_region
        _
      $region40: #{tpu_custom_call.1} parent=11 // pred_fallthru
        _
      // Predicated region
      $region41: #{tpu_custom_call.1} parent=11 // pred_check
        %p360 = pneg %p254
      $region42: #{tpu_custom_call.1} parent=11 // pred_check_branch
        %362 = sbr.rel (%p360) target = $region44
      $region43: #{tpu_custom_call.1} parent=11 // pred_region
        _
      $region44: #{tpu_custom_call.1} parent=11 // pred_fallthru
        _
      // Predicated region
      $region45: #{tpu_custom_call.1} parent=11 // pred_check
        %p363 = pneg %p275
      $region46: #{tpu_custom_call.1} parent=11 // pred_check_branch
        %365 = sbr.rel (%p363) target = $region48
      $region47: #{tpu_custom_call.1} parent=11 // pred_region
        _
      $region48: #{tpu_custom_call.1} parent=11 // pred_fallthru
        _
      // Predicated region
      $region49: #{tpu_custom_call.1} parent=11 // pred_check
        %p366 = pneg %p296
      $region50: #{tpu_custom_call.1} parent=11 // pred_check_branch
        %368 = sbr.rel (%p366) target = $region52
      $region51: #{tpu_custom_call.1} parent=11 // pred_region
        _
      $region52: #{tpu_custom_call.1} parent=11 // pred_fallthru
        _
    $region12: #{tpu_custom_call.1} parent=5 // pred_fallthru
      _
    %p369 = scmp.lt.s32.totalorder %s18, 4
    // Predicated region
    $region53: #{tpu_custom_call.1} parent=5 // pred_check
      %p370 = pneg %p369
    $region54: #{tpu_custom_call.1} parent=5 // pred_check_branch
      %372 = sbr.rel (%p370) target = $region56
    $region55: #{tpu_custom_call.1} parent=5 // pred_region
      // Predicated region
      $region57: #{tpu_custom_call.1} parent=55 // pred_check
        %p373 = pneg %p52
      $region58: #{tpu_custom_call.1} parent=55 // pred_check_branch
        %375 = sbr.rel (%p373) target = $region60
      $region59: #{tpu_custom_call.1} parent=55 // pred_region
        %s376 = smul.u32 16, %s26
        %p377 = scmp.lt.s32.totalorder %s25, 1
        %s378 = scalar_select %p377, %s25, 1
        %p379 = scmp.lt.s32.totalorder %s376, 31
        %s380 = scalar_select %p379, %s376, 31
        %s381 = smul.addr %s378, 32
        %s382 = sadd.s32 %s380, %s381
        %s383 = smul.addr %s382, 8
        %s384 = scalar_lea.vmem %s0, %s383
        %s385 = smul.u32 16, %s26
      $region60: #{tpu_custom_call.1} parent=55 // pred_fallthru
        _
      // Predicated region
      $region61: #{tpu_custom_call.1} parent=55 // pred_check
        %p386 = pneg %p80
      $region62: #{tpu_custom_call.1} parent=55 // pred_check_branch
        %388 = sbr.rel (%p386) target = $region64
      $region63: #{tpu_custom_call.1} parent=55 // pred_region
        %s389 = smul.u32 16, %s26
        %p390 = scmp.lt.s32.totalorder %s25, 1
        %s391 = scalar_select %p390, %s25, 1
        %p392 = scmp.lt.s32.totalorder %s389, 31
        %s393 = scalar_select %p392, %s389, 31
        %s394 = smul.addr %s391, 32
        %s395 = sadd.s32 %s393, %s394
        %s396 = smul.addr %s395, 8
        %s397 = scalar_lea.vmem %s1, %s396
        %s398 = smul.u32 16, %s26
      $region64: #{tpu_custom_call.1} parent=55 // pred_fallthru
        _
    $region56: #{tpu_custom_call.1} parent=5 // pred_fallthru
      _
    %p399 = scmp.le.s32.totalorder 1, %s18
    %p400 = scmp.lt.s32.totalorder %s18, 5
    %p401 = pnand %p399, %p400
    %p402 = pneg %p401
    // Predicated region
    $region65: #{tpu_custom_call.1} parent=5 // pred_check
      _
    $region66: #{tpu_custom_call.1} parent=5 // pred_check_branch
      %404 = sbr.rel (%p401) target = $region68
    $region67: #{tpu_custom_call.1} parent=5 // pred_region
      %s405 = ssub.s32 %s18, 1
      %s406 = smul.u32 16, %s28
      %p407 = scmp.lt.s32.totalorder %s27, 1
      %s408 = scalar_select %p407, %s27, 1
      %p409 = scmp.lt.s32.totalorder %s406, 31
      %s410 = scalar_select %p409, %s406, 31
      %s411 = smul.addr %s408, 32
      %s412 = sadd.s32 %s410, %s411
      %s413 = smul.addr %s412, 8
      %s414 = scalar_lea.vmem %s0, %s413
      %p415 = pneg %p58
      %p416 = pneg %p55
      %s417 = smul.u32 16, %s28
      %p418 = scmp.lt.s32.totalorder %s27, 1
      %s419 = scalar_select %p418, %s27, 1
      %p420 = scmp.lt.s32.totalorder %s417, 31
      %s421 = scalar_select %p420, %s417, 31
      %s422 = smul.addr %s419, 32
      %s423 = sadd.s32 %s421, %s422
      %s424 = smul.addr %s423, 8
      %s425 = scalar_lea.vmem %s1, %s424
      %p426 = pneg %p86
      %p427 = pneg %p83
      %p428 = pneg %p107
      %p429 = pneg %p104
      %p430 = pneg %p128
      %p431 = pneg %p125
      %p432 = pneg %p149
      %p433 = pneg %p146
      %p434 = pneg %p170
      %p435 = pneg %p167
      %p436 = pneg %p191
      %p437 = pneg %p188
      %p438 = pneg %p212
      %p439 = pneg %p209
      %p440 = pneg %p233
      %p441 = pneg %p230
      %p442 = pneg %p254
      %p443 = pneg %p251
      %p444 = pneg %p275
      %p445 = pneg %p272
      %p446 = pneg %p296
      %p447 = pneg %p293
      %p448 = pneg %p324
      %p449 = pneg %p321
      %s450 = smul.u32 16, %s28
      %p451 = scmp.lt.s32.totalorder %s27, 1
      %s452 = scalar_select %p451, %s27, 1
      %p453 = scmp.lt.s32.totalorder %s450, 31
      %s454 = scalar_select %p453, %s450, 31
      %s455 = smul.addr %s452, 32
      %s456 = sadd.s32 %s454, %s455
      %s457 = smul.addr %s456, 8
      %s458 = scalar_lea.vmem %s12, %s457
      %s459 = smul.u32 16, %s28
      %p460 = scmp.lt.s32.totalorder %s27, 1
      %s461 = scalar_select %p460, %s27, 1
      %p462 = scmp.lt.s32.totalorder %s459, 31
      %s463 = scalar_select %p462, %s459, 31
      %s464 = smul.addr %s461, 32
      %s465 = sadd.s32 %s463, %s464
      %s466 = smul.addr %s465, 8
      %s467 = scalar_lea.vmem %s0, %s466
      %s468 = smul.u32 16, %s28
      %s469 = smul.u32 16, %s28
      %p470 = scmp.lt.s32.totalorder %s27, 1
      %s471 = scalar_select %p470, %s27, 1
      %p472 = scmp.lt.s32.totalorder %s469, 31
      %s473 = scalar_select %p472, %s469, 31
      %s474 = smul.addr %s471, 32
      %s475 = sadd.s32 %s473, %s474
      %s476 = smul.addr %s475, 8
      %s477 = scalar_lea.vmem %s1, %s476
      %s478 = smul.u32 16, %s28
      %s479 = smul.u32 16, %s28
      %p480 = scmp.lt.s32.totalorder %s27, 1
      %s481 = scalar_select %p480, %s27, 1
      %p482 = scmp.lt.s32.totalorder %s479, 31
      %s483 = scalar_select %p482, %s479, 31
      %s484 = smul.addr %s481, 32
      %s485 = sadd.s32 %s483, %s484
      %s486 = smul.addr %s485, 8
      %s487 = scalar_lea.vmem %s12, %s486
      %s488 = smul.u32 16, %s28
      %p490 = scmp.eq.s32.totalorder %s28, 0
      // Predicated region
      $region69: #{tpu_custom_call.1} parent=67 // pred_check
        %p491 = pneg %p490
      $region70: #{tpu_custom_call.1} parent=67 // pred_check_branch
        %493 = sbr.rel (%p491) target = $region72
      $region71: #{tpu_custom_call.1} parent=67 // pred_region
        %vm494 = vcmask 64512
        %495 = vst.msk [vmem:[#allocation2] sm:$0xff] %vm494, 0.0
        %496 = vst.msk [vmem:[#allocation2 + $0x8] sm:$0xff] %vm494, 0.0
        %497 = vst.msk [vmem:[#allocation3] sm:$0xff] %vm494, 0.0
        %498 = vst.msk [vmem:[#allocation3 + $0x8] sm:$0xff] %vm494, 0.0
      $region72: #{tpu_custom_call.1} parent=67 // pred_fallthru
        _
      %v499 = vlaneseq
      %v500 = vshrl.u32 %v499, 7
      %v501 = vadd.s32 %v500, 8
      %v502 = vadd.s32 %v500, 16
      %v503 = vadd.s32 %v500, 24
      %v504 = vadd.s32 %v500, 32
      %v505 = vadd.s32 %v500, 40
      %v506 = vadd.s32 %v500, 48
      %v507 = vadd.s32 %v500, 56
      %v508 = vadd.s32 %v500, 64
      %v509 = vadd.s32 %v500, 72
      %v510 = vadd.s32 %v500, 80
      %v511 = vadd.s32 %v500, 88
      %v512 = vadd.s32 %v500, 96
      %v513 = vadd.s32 %v500, 104
      %v514 = vadd.s32 %v500, 112
      %v515 = vadd.s32 %v500, 120
      %vm516 = vcmp.lt.s32.totalorder %v500, 0
      %v517 = vsub.s32 0, %v500
      %v518 = vsel %vm516, %v517, %v500
      %v519 = vshrl.u32 %v518, 4
      %v520 = vand.u32 %v518, 15
      %v521 = vsub.s32 0, %v520
      %v522 = vsel %vm516, %v521, %v520
      %vm523 = vcmp.lt.s32.totalorder %v501, 0
      %v524 = vsub.s32 0, %v501
      %v525 = vsel %vm523, %v524, %v501
      %v526 = vshrl.u32 %v525, 4
      %v527 = vand.u32 %v525, 15
      %v528 = vsub.s32 0, %v527
      %v529 = vsel %vm523, %v528, %v527
      %vm530 = vcmp.lt.s32.totalorder %v502, 0
      %v531 = vsub.s32 0, %v502
      %v532 = vsel %vm530, %v531, %v502
      %v533 = vshrl.u32 %v532, 4
      %v534 = vand.u32 %v532, 15
      %v535 = vsub.s32 0, %v534
      %v536 = vsel %vm530, %v535, %v534
      %vm537 = vcmp.lt.s32.totalorder %v503, 0
      %v538 = vsub.s32 0, %v503
      %v539 = vsel %vm537, %v538, %v503
      %v540 = vshrl.u32 %v539, 4
      %v541 = vand.u32 %v539, 15
      %v542 = vsub.s32 0, %v541
      %v543 = vsel %vm537, %v542, %v541
      %vm544 = vcmp.lt.s32.totalorder %v504, 0
      %v545 = vsub.s32 0, %v504
      %v546 = vsel %vm544, %v545, %v504
      %v547 = vshrl.u32 %v546, 4
      %v548 = vand.u32 %v546, 15
      %v549 = vsub.s32 0, %v548
      %v550 = vsel %vm544, %v549, %v548
      %vm551 = vcmp.lt.s32.totalorder %v505, 0
      %v552 = vsub.s32 0, %v505
      %v553 = vsel %vm551, %v552, %v505
      %v554 = vshrl.u32 %v553, 4
      %v555 = vand.u32 %v553, 15
      %v556 = vsub.s32 0, %v555
      %v557 = vsel %vm551, %v556, %v555
      %vm558 = vcmp.lt.s32.totalorder %v506, 0
      %v559 = vsub.s32 0, %v506
      %v560 = vsel %vm558, %v559, %v506
      %v561 = vshrl.u32 %v560, 4
      %v562 = vand.u32 %v560, 15
      %v563 = vsub.s32 0, %v562
      %v564 = vsel %vm558, %v563, %v562
      %vm565 = vcmp.lt.s32.totalorder %v507, 0
      %v566 = vsub.s32 0, %v507
      %v567 = vsel %vm565, %v566, %v507
      %v568 = vshrl.u32 %v567, 4
      %v569 = vand.u32 %v567, 15
      %v570 = vsub.s32 0, %v569
      %v571 = vsel %vm565, %v570, %v569
      %vm572 = vcmp.lt.s32.totalorder %v508, 0
      %v573 = vsub.s32 0, %v508
      %v574 = vsel %vm572, %v573, %v508
      %v575 = vshrl.u32 %v574, 4
      %v576 = vand.u32 %v574, 15
      %v577 = vsub.s32 0, %v576
      %v578 = vsel %vm572, %v577, %v576
      %vm579 = vcmp.lt.s32.totalorder %v509, 0
      %v580 = vsub.s32 0, %v509
      %v581 = vsel %vm579, %v580, %v509
      %v582 = vshrl.u32 %v581, 4
      %v583 = vand.u32 %v581, 15
      %v584 = vsub.s32 0, %v583
      %v585 = vsel %vm579, %v584, %v583
      %vm586 = vcmp.lt.s32.totalorder %v510, 0
      %v587 = vsub.s32 0, %v510
      %v588 = vsel %vm586, %v587, %v510
      %v589 = vshrl.u32 %v588, 4
      %v590 = vand.u32 %v588, 15
      %v591 = vsub.s32 0, %v590
      %v592 = vsel %vm586, %v591, %v590
      %vm593 = vcmp.lt.s32.totalorder %v511, 0
      %v594 = vsub.s32 0, %v511
      %v595 = vsel %vm593, %v594, %v511
      %v596 = vshrl.u32 %v595, 4
      %v597 = vand.u32 %v595, 15
      %v598 = vsub.s32 0, %v597
      %v599 = vsel %vm593, %v598, %v597
      %vm600 = vcmp.lt.s32.totalorder %v512, 0
      %v601 = vsub.s32 0, %v512
      %v602 = vsel %vm600, %v601, %v512
      %v603 = vshrl.u32 %v602, 4
      %v604 = vand.u32 %v602, 15
      %v605 = vsub.s32 0, %v604
      %v606 = vsel %vm600, %v605, %v604
      %vm607 = vcmp.lt.s32.totalorder %v513, 0
      %v608 = vsub.s32 0, %v513
      %v609 = vsel %vm607, %v608, %v513
      %v610 = vshrl.u32 %v609, 4
      %v611 = vand.u32 %v609, 15
      %v612 = vsub.s32 0, %v611
      %v613 = vsel %vm607, %v612, %v611
      %vm614 = vcmp.lt.s32.totalorder %v514, 0
      %v615 = vsub.s32 0, %v514
      %v616 = vsel %vm614, %v615, %v514
      %v617 = vshrl.u32 %v616, 4
      %v618 = vand.u32 %v616, 15
      %v619 = vsub.s32 0, %v618
      %v620 = vsel %vm614, %v619, %v618
      %vm621 = vcmp.lt.s32.totalorder %v515, 0
      %v622 = vsub.s32 0, %v515
      %v623 = vsel %vm621, %v622, %v515
      %v624 = vshrl.u32 %v623, 4
      %v625 = vand.u32 %v623, 15
      %v626 = vsub.s32 0, %v625
      %v627 = vsel %vm621, %v626, %v625
      %vm628 = vcmp.ne.s32.totalorder %v522, 0
      %vm629 = vcmp.ne.s32.totalorder %v529, 0
      %vm630 = vcmp.ne.s32.totalorder %v536, 0
      %vm631 = vcmp.ne.s32.totalorder %v543, 0
      %vm632 = vcmp.ne.s32.totalorder %v550, 0
      %vm633 = vcmp.ne.s32.totalorder %v557, 0
      %vm634 = vcmp.ne.s32.totalorder %v564, 0
      %vm635 = vcmp.ne.s32.totalorder %v571, 0
      %vm636 = vcmp.ne.s32.totalorder %v578, 0
      %vm637 = vcmp.ne.s32.totalorder %v585, 0
      %vm638 = vcmp.ne.s32.totalorder %v592, 0
      %vm639 = vcmp.ne.s32.totalorder %v599, 0
      %vm640 = vcmp.ne.s32.totalorder %v606, 0
      %vm641 = vcmp.ne.s32.totalorder %v613, 0
      %vm642 = vcmp.ne.s32.totalorder %v620, 0
      %vm643 = vcmp.ne.s32.totalorder %v627, 0
      %vm644 = vcmp.lt.s32.totalorder %v522, 0
      %vm645 = vcmp.lt.s32.totalorder %v529, 0
      %vm646 = vcmp.lt.s32.totalorder %v536, 0
      %vm647 = vcmp.lt.s32.totalorder %v543, 0
      %vm648 = vcmp.lt.s32.totalorder %v550, 0
      %vm649 = vcmp.lt.s32.totalorder %v557, 0
      %vm650 = vcmp.lt.s32.totalorder %v564, 0
      %vm651 = vcmp.lt.s32.totalorder %v571, 0
      %vm652 = vcmp.lt.s32.totalorder %v578, 0
      %vm653 = vcmp.lt.s32.totalorder %v585, 0
      %vm654 = vcmp.lt.s32.totalorder %v592, 0
      %vm655 = vcmp.lt.s32.totalorder %v599, 0
      %vm656 = vcmp.lt.s32.totalorder %v606, 0
      %vm657 = vcmp.lt.s32.totalorder %v613, 0
      %vm658 = vcmp.lt.s32.totalorder %v620, 0
      %vm659 = vcmp.lt.s32.totalorder %v627, 0
      %vm660 = vmand %vm644, %vm628
      %vm661 = vmand %vm645, %vm629
      %vm662 = vmand %vm646, %vm630
      %vm663 = vmand %vm647, %vm631
      %vm664 = vmand %vm648, %vm632
      %vm665 = vmand %vm649, %vm633
      %vm666 = vmand %vm650, %vm634
      %vm667 = vmand %vm651, %vm635
      %vm668 = vmand %vm652, %vm636
      %vm669 = vmand %vm653, %vm637
      %vm670 = vmand %vm654, %vm638
      %vm671 = vmand %vm655, %vm639
      %vm672 = vmand %vm656, %vm640
      %vm673 = vmand %vm657, %vm641
      %vm674 = vmand %vm658, %vm642
      %vm675 = vmand %vm659, %vm643
      %v676 = vadd.s32 %v522, 16
      %v677 = vadd.s32 %v529, 16
      %v678 = vadd.s32 %v536, 16
      %v679 = vadd.s32 %v543, 16
      %v680 = vadd.s32 %v550, 16
      %v681 = vadd.s32 %v557, 16
      %v682 = vadd.s32 %v564, 16
      %v683 = vadd.s32 %v571, 16
      %v684 = vadd.s32 %v578, 16
      %v685 = vadd.s32 %v585, 16
      %v686 = vadd.s32 %v592, 16
      %v687 = vadd.s32 %v599, 16
      %v688 = vadd.s32 %v606, 16
      %v689 = vadd.s32 %v613, 16
      %v690 = vadd.s32 %v620, 16
      %v691 = vadd.s32 %v627, 16
      %v692 = vsel %vm660, %v676, %v522
      %v693 = vsel %vm661, %v677, %v529
      %v694 = vsel %vm662, %v678, %v536
      %v695 = vsel %vm663, %v679, %v543
      %v696 = vsel %vm664, %v680, %v550
      %v697 = vsel %vm665, %v681, %v557
      %v698 = vsel %vm666, %v682, %v564
      %v699 = vsel %vm667, %v683, %v571
      %v700 = vsel %vm668, %v684, %v578
      %v701 = vsel %vm669, %v685, %v585
      %v702 = vsel %vm670, %v686, %v592
      %v703 = vsel %vm671, %v687, %v599
      %v704 = vsel %vm672, %v688, %v606
      %v705 = vsel %vm673, %v689, %v613
      %v706 = vsel %vm674, %v690, %v620
      %v707 = vsel %vm675, %v691, %v627
      %vm708 = vcmp.ne.s32.totalorder %v692, 0
      %vm709 = vcmp.ne.s32.totalorder %v693, 0
      %vm710 = vcmp.ne.s32.totalorder %v694, 0
      %vm711 = vcmp.ne.s32.totalorder %v695, 0
      %vm712 = vcmp.ne.s32.totalorder %v696, 0
      %vm713 = vcmp.ne.s32.totalorder %v697, 0
      %vm714 = vcmp.ne.s32.totalorder %v698, 0
      %vm715 = vcmp.ne.s32.totalorder %v699, 0
      %vm716 = vcmp.ne.s32.totalorder %v700, 0
      %vm717 = vcmp.ne.s32.totalorder %v701, 0
      %vm718 = vcmp.ne.s32.totalorder %v702, 0
      %vm719 = vcmp.ne.s32.totalorder %v703, 0
      %vm720 = vcmp.ne.s32.totalorder %v704, 0
      %vm721 = vcmp.ne.s32.totalorder %v705, 0
      %vm722 = vcmp.ne.s32.totalorder %v706, 0
      %vm723 = vcmp.ne.s32.totalorder %v707, 0
      %vm724 = vcmp.ne.s32.totalorder %v692, 15
      %vm725 = vcmp.ne.s32.totalorder %v693, 15
      %vm726 = vcmp.ne.s32.totalorder %v694, 15
      %vm727 = vcmp.ne.s32.totalorder %v695, 15
      %vm728 = vcmp.ne.s32.totalorder %v696, 15
      %vm729 = vcmp.ne.s32.totalorder %v697, 15
      %vm730 = vcmp.ne.s32.totalorder %v698, 15
      %vm731 = vcmp.ne.s32.totalorder %v699, 15
      %vm732 = vcmp.ne.s32.totalorder %v700, 15
      %vm733 = vcmp.ne.s32.totalorder %v701, 15
      %vm734 = vcmp.ne.s32.totalorder %v702, 15
      %vm735 = vcmp.ne.s32.totalorder %v703, 15
      %vm736 = vcmp.ne.s32.totalorder %v704, 15
      %vm737 = vcmp.ne.s32.totalorder %v705, 15
      %vm738 = vcmp.ne.s32.totalorder %v706, 15
      %vm739 = vcmp.ne.s32.totalorder %v707, 15
      %v740 = vld [vmem:[%s467] sm:$0xff]
      %v741 = vld [vmem:[%s467 + $0x8] sm:$0xff]
      %v742 = vld [vmem:[%s467 + $0x10] sm:$0xff]
      %v743 = vld [vmem:[%s467 + $0x18] sm:$0xff]
      %v744 = vld [vmem:[%s467 + $0x20] sm:$0xff]
      %v745 = vld [vmem:[%s467 + $0x28] sm:$0xff]
      %v746 = vld [vmem:[%s467 + $0x30] sm:$0xff]
      %v747 = vld [vmem:[%s467 + $0x38] sm:$0xff]
      %v748 = vld [vmem:[%s467 + $0x40] sm:$0xff]
      %v749 = vld [vmem:[%s467 + $0x48] sm:$0xff]
      %v750 = vld [vmem:[%s467 + $0x50] sm:$0xff]
      %v751 = vld [vmem:[%s467 + $0x58] sm:$0xff]
      %v752 = vld [vmem:[%s467 + $0x60] sm:$0xff]
      %v753 = vld [vmem:[%s467 + $0x68] sm:$0xff]
      %v754 = vld [vmem:[%s467 + $0x70] sm:$0xff]
      %v755 = vld [vmem:[%s467 + $0x78] sm:$0xff]
      %v756 = vld [vmem:[#allocation2] sm:$0xff]
      %v757 = vld [vmem:[#allocation2 + $0x8] sm:$0xff]
      %v758 = vand.u32 2147483647, %v756
      %v759 = vand.u32 2147483647, %v757
      %v760 = vand.u32 2147483647, %v740
      %v761 = vand.u32 2147483647, %v741
      %v762 = vand.u32 2147483647, %v742
      %v763 = vand.u32 2147483647, %v743
      %v764 = vand.u32 2147483647, %v744
      %v765 = vand.u32 2147483647, %v745
      %v766 = vand.u32 2147483647, %v746
      %v767 = vand.u32 2147483647, %v747
      %v768 = vand.u32 2147483647, %v748
      %v769 = vand.u32 2147483647, %v749
      %v770 = vand.u32 2147483647, %v750
      %v771 = vand.u32 2147483647, %v751
      %v772 = vand.u32 2147483647, %v752
      %v773 = vand.u32 2147483647, %v753
      %v774 = vand.u32 2147483647, %v754
      %v775 = vand.u32 2147483647, %v755
      %v776 = vsub.f32 0.0, %v758
      %v777 = vsub.f32 0.0, %v759
      %v778 = vsub.f32 0.0, %v760
      %v779 = vsub.f32 0.0, %v761
      %v780 = vsub.f32 0.0, %v762
      %v781 = vsub.f32 0.0, %v763
      %v782 = vsub.f32 0.0, %v764
      %v783 = vsub.f32 0.0, %v765
      %v784 = vsub.f32 0.0, %v766
      %v785 = vsub.f32 0.0, %v767
      %v786 = vsub.f32 0.0, %v768
      %v787 = vsub.f32 0.0, %v769
      %v788 = vsub.f32 0.0, %v770
      %v789 = vsub.f32 0.0, %v771
      %v790 = vsub.f32 0.0, %v772
      %v791 = vsub.f32 0.0, %v773
      %v792 = vsub.f32 0.0, %v774
      %v793 = vsub.f32 0.0, %v775
      %v794 = vmul.f32 %v776, 1.442695
      %v795 = vpow.pop %v794
      %v796 = vmul.f32 %v777, 1.442695
      %v797 = vpow.pop %v796
      %v798 = vmul.f32 %v778, 1.442695
      %v799 = vpow.pop %v798
      %v800 = vmul.f32 %v779, 1.442695
      %v801 = vpow.pop %v800
      %v802 = vmul.f32 %v780, 1.442695
      %v803 = vpow.pop %v802
      %v804 = vmul.f32 %v781, 1.442695
      %v805 = vpow.pop %v804
      %v806 = vmul.f32 %v782, 1.442695
      %v807 = vpow.pop %v806
      %v808 = vmul.f32 %v783, 1.442695
      %v809 = vpow.pop %v808
      %v810 = vmul.f32 %v784, 1.442695
      %v811 = vpow.pop %v810
      %v812 = vmul.f32 %v785, 1.442695
      %v813 = vpow.pop %v812
      %v814 = vmul.f32 %v786, 1.442695
      %v815 = vpow.pop %v814
      %v816 = vmul.f32 %v787, 1.442695
      %v817 = vpow.pop %v816
      %v818 = vmul.f32 %v788, 1.442695
      %v819 = vpow.pop %v818
      %v820 = vmul.f32 %v789, 1.442695
      %v821 = vpow.pop %v820
      %v822 = vmul.f32 %v790, 1.442695
      %v823 = vpow.pop %v822
      %v824 = vmul.f32 %v791, 1.442695
      %v825 = vpow.pop %v824
      %v826 = vmul.f32 %v792, 1.442695
      %v827 = vpow.pop %v826
      %v828 = vmul.f32 %v793, 1.442695
      %v829 = vpow.pop %v828
      %v830 = vsub.f32 %v795, 1.0
      %v831 = vsub.f32 %v797, 1.0
      %v832 = vsub.f32 %v799, 1.0
      %v833 = vsub.f32 %v801, 1.0
      %v834 = vsub.f32 %v803, 1.0
      %v835 = vsub.f32 %v805, 1.0
      %v836 = vsub.f32 %v807, 1.0
      %v837 = vsub.f32 %v809, 1.0
      %v838 = vsub.f32 %v811, 1.0
      %v839 = vsub.f32 %v813, 1.0
      %v840 = vsub.f32 %v815, 1.0
      %v841 = vsub.f32 %v817, 1.0
      %v842 = vsub.f32 %v819, 1.0
      %v843 = vsub.f32 %v821, 1.0
      %v844 = vsub.f32 %v823, 1.0
      %v845 = vsub.f32 %v825, 1.0
      %v846 = vsub.f32 %v827, 1.0
      %v847 = vsub.f32 %v829, 1.0
      %vm848 = vcmp.gt.f32.partialorder %v756, 0.0
      %vm849 = vcmp.gt.f32.partialorder %v757, 0.0
      %vm850 = vcmp.gt.f32.partialorder %v740, 0.0
      %vm851 = vcmp.gt.f32.partialorder %v741, 0.0
      %vm852 = vcmp.gt.f32.partialorder %v742, 0.0
      %vm853 = vcmp.gt.f32.partialorder %v743, 0.0
      %vm854 = vcmp.gt.f32.partialorder %v744, 0.0
      %vm855 = vcmp.gt.f32.partialorder %v745, 0.0
      %vm856 = vcmp.gt.f32.partialorder %v746, 0.0
      %vm857 = vcmp.gt.f32.partialorder %v747, 0.0
      %vm858 = vcmp.gt.f32.partialorder %v748, 0.0
      %vm859 = vcmp.gt.f32.partialorder %v749, 0.0
      %vm860 = vcmp.gt.f32.partialorder %v750, 0.0
      %vm861 = vcmp.gt.f32.partialorder %v751, 0.0
      %vm862 = vcmp.gt.f32.partialorder %v752, 0.0
      %vm863 = vcmp.gt.f32.partialorder %v753, 0.0
      %vm864 = vcmp.gt.f32.partialorder %v754, 0.0
      %vm865 = vcmp.gt.f32.partialorder %v755, 0.0
      %v866 = vsel %vm848, %v756, %v830
      %v867 = vsel %vm849, %v757, %v831
      %v868 = vsel %vm850, %v740, %v832
      %v869 = vsel %vm851, %v741, %v833
      %v870 = vsel %vm852, %v742, %v834
      %v871 = vsel %vm853, %v743, %v835
      %v872 = vsel %vm854, %v744, %v836
      %v873 = vsel %vm855, %v745, %v837
      %v874 = vsel %vm856, %v746, %v838
      %v875 = vsel %vm857, %v747, %v839
      %v876 = vsel %vm858, %v748, %v840
      %v877 = vsel %vm859, %v749, %v841
      %v878 = vsel %vm860, %v750, %v842
      %v879 = vsel %vm861, %v751, %v843
      %v880 = vsel %vm862, %v752, %v844
      %v881 = vsel %vm863, %v753, %v845
      %v882 = vsel %vm864, %v754, %v846
      %v883 = vsel %vm865, %v755, %v847
      %v884 = vsub.f32 0.0, %v756
      %v885 = vsub.f32 0.0, %v757
      %v886 = vsub.f32 0.0, %v740
      %v887 = vsub.f32 0.0, %v741
      %v888 = vsub.f32 0.0, %v742
      %v889 = vsub.f32 0.0, %v743
      %v890 = vsub.f32 0.0, %v744
      %v891 = vsub.f32 0.0, %v745
      %v892 = vsub.f32 0.0, %v746
      %v893 = vsub.f32 0.0, %v747
      %v894 = vsub.f32 0.0, %v748
      %v895 = vsub.f32 0.0, %v749
      %v896 = vsub.f32 0.0, %v750
      %v897 = vsub.f32 0.0, %v751
      %v898 = vsub.f32 0.0, %v752
      %v899 = vsub.f32 0.0, %v753
      %v900 = vsub.f32 0.0, %v754
      %v901 = vsub.f32 0.0, %v755
      %v902 = vsel %vm848, %v830, %v884
      %v903 = vsel %vm849, %v831, %v885
      %v904 = vsel %vm850, %v832, %v886
      %v905 = vsel %vm851, %v833, %v887
      %v906 = vsel %vm852, %v834, %v888
      %v907 = vsel %vm853, %v835, %v889
      %v908 = vsel %vm854, %v836, %v890
      %v909 = vsel %vm855, %v837, %v891
      %v910 = vsel %vm856, %v838, %v892
      %v911 = vsel %vm857, %v839, %v893
      %v912 = vsel %vm858, %v840, %v894
      %v913 = vsel %vm859, %v841, %v895
      %v914 = vsel %vm860, %v842, %v896
      %v915 = vsel %vm861, %v843, %v897
      %v916 = vsel %vm862, %v844, %v898
      %v917 = vsel %vm863, %v845, %v899
      %v918 = vsel %vm864, %v846, %v900
      %v919 = vsel %vm865, %v847, %v901
      %v920 = vpack.c.bf16 %v867, %v866
      %v921 = vpack.c.bf16 %v869, %v868
      %v922 = vpack.c.bf16 %v871, %v870
      %v923 = vpack.c.bf16 %v873, %v872
      %v924 = vpack.c.bf16 %v875, %v874
      %v925 = vpack.c.bf16 %v877, %v876
      %v926 = vpack.c.bf16 %v879, %v878
      %v927 = vpack.c.bf16 %v881, %v880
      %v928 = vpack.c.bf16 %v883, %v882
      %v929 = vld [vmem:[%s2] sm:$0xf]
      %v930 = vpack.c.bf16 %v903, %v902
      %v931 = vpack.c.bf16 %v905, %v904
      %v932 = vpack.c.bf16 %v907, %v906
      %v933 = vpack.c.bf16 %v909, %v908
      %v934 = vpack.c.bf16 %v911, %v910
      %v935 = vpack.c.bf16 %v913, %v912
      %v936 = vpack.c.bf16 %v915, %v914
      %v937 = vpack.c.bf16 %v917, %v916
      %v938 = vpack.c.bf16 %v919, %v918
      %v939 = vld [vmem:[%s3] sm:$0xf]
      %vm940 = vcmask 64512
      %v942 = vsel %vm940, %v930, 0
      %v945 = vsel %vm940, %v931, 0
      %v948 = vsel %vm940, %v932, 0
      %v951 = vsel %vm940, %v933, 0
      %v954 = vsel %vm940, %v934, 0
      %v957 = vsel %vm940, %v935, 0
      %v960 = vsel %vm940, %v936, 0
      %v963 = vsel %vm940, %v937, 0
      %v966 = vsel %vm940, %v938, 0
      %vm968 = vcmask 1043456
      %v970 = vsel %vm968, %v939, 0
      %972 = vmatprep.subr.bf16.mxu0 0
      %973 = vmatpush1.bf16.msra.mxu0 %v970
      %974 = vmatprep.subr.bf16.mxu0 0
      %975 = vmatpush1.bf16.msra.mxu0 0
      %976 = vmatprep.subr.bf16.mxu0 0
      %977 = vmatpush1.bf16.msra.mxu0 0
      %978 = vmatprep.subr.bf16.mxu0 0
      %979 = vmatpush1.bf16.msra.mxu0 0
      %980 = vmatprep.subr.bf16.mxu0 0
      %981 = vmatpush1.bf16.msra.mxu0 0
      %982 = vmatprep.subr.bf16.mxu0 0
      %983 = vmatpush1.bf16.msra.mxu0 0
      %984 = vmatprep.subr.bf16.mxu0 0
      %985 = vmatpush1.bf16.msra.mxu0 0
      %986 = vmatprep.subr.bf16.mxu0 0
      %987 = vmatpush1.bf16.msra.mxu0 0
      %988 = vmatprep.subr.bf16.mxu0 0
      %989 = vmatpush1.bf16.msra.mxu0 0
      %990 = vmatprep.subr.bf16.mxu0 0
      %991 = vmatpush1.bf16.msra.mxu0 0
      %992 = vmatprep.subr.bf16.mxu0 0
      %993 = vmatpush1.bf16.msra.mxu0 0
      %994 = vmatprep.subr.bf16.mxu0 0
      %995 = vmatpush1.bf16.msra.mxu0 0
      %996 = vmatprep.subr.bf16.mxu0 0
      %997 = vmatpush1.bf16.msra.mxu0 0
      %998 = vmatprep.subr.bf16.mxu0 0
      %999 = vmatpush1.bf16.msra.mxu0 0
      %1000 = vmatprep.subr.bf16.mxu0 0
      %1001 = vmatpush1.bf16.msra.mxu0 0
      %1002 = vmatprep.subr.bf16.mxu0 0
      %1003 = vmatpush1.bf16.msra.mxu0 0
      %1004 = vmatprep.mubr.bf16.mxu0 0
      %1005 = vmatmul.mubr.bf16.gmra.mrb[0].mxu0 %v942
      %v1006 = vpop.f32.mrb[0].mxu0
      %v1007 = vadd.f32 0.0, %v1006
      %v1008 = vpop.f32.mrb[0].mxu0
      %v1009 = vpop.f32.mrb[0].mxu0
      %v1010 = vadd.f32 0.0, %v1009
      %v1011 = vpop.f32.mrb[0].mxu0
      %1012 = vmatprep.mubr.bf16.mxu0 0
      %1013 = vmatmul.mubr.bf16.gmra.mrb[0].mxu0 %v945
      %v1014 = vpop.f32.mrb[0].mxu0
      %v1015 = vadd.f32 0.0, %v1014
      %v1016 = vpop.f32.mrb[0].mxu0
      %v1017 = vpop.f32.mrb[0].mxu0
      %v1018 = vadd.f32 0.0, %v1017
      %v1019 = vpop.f32.mrb[0].mxu0
      %1020 = vmatprep.mubr.bf16.mxu0 0
      %1021 = vmatmul.mubr.bf16.gmra.mrb[0].mxu0 %v948
      %v1022 = vpop.f32.mrb[0].mxu0
      %v1023 = vadd.f32 0.0, %v1022
      %v1024 = vpop.f32.mrb[0].mxu0
      %v1025 = vpop.f32.mrb[0].mxu0
      %v1026 = vadd.f32 0.0, %v1025
      %v1027 = vpop.f32.mrb[0].mxu0
      %1028 = vmatprep.mubr.bf16.mxu0 0
      %1029 = vmatmul.mubr.bf16.gmra.mrb[0].mxu0 %v951
      %v1030 = vpop.f32.mrb[0].mxu0
      %v1031 = vadd.f32 0.0, %v1030
      %v1032 = vpop.f32.mrb[0].mxu0
      %v1033 = vpop.f32.mrb[0].mxu0
      %v1034 = vadd.f32 0.0, %v1033
      %v1035 = vpop.f32.mrb[0].mxu0
      %1036 = vmatprep.mubr.bf16.mxu0 0
      %1037 = vmatmul.mubr.bf16.gmra.mrb[0].mxu0 %v954
      %v1038 = vpop.f32.mrb[0].mxu0
      %v1039 = vadd.f32 0.0, %v1038
      %v1040 = vpop.f32.mrb[0].mxu0
      %v1041 = vpop.f32.mrb[0].mxu0
      %v1042 = vadd.f32 0.0, %v1041
      %v1043 = vpop.f32.mrb[0].mxu0
      %1044 = vmatprep.mubr.bf16.mxu0 0
      %1045 = vmatmul.mubr.bf16.gmra.mrb[0].mxu0 %v957
      %v1046 = vpop.f32.mrb[0].mxu0
      %v1047 = vadd.f32 0.0, %v1046
      %v1048 = vpop.f32.mrb[0].mxu0
      %v1049 = vpop.f32.mrb[0].mxu0
      %v1050 = vadd.f32 0.0, %v1049
      %v1051 = vpop.f32.mrb[0].mxu0
      %1052 = vmatprep.mubr.bf16.mxu0 0
      %1053 = vmatmul.mubr.bf16.gmra.mrb[0].mxu0 %v960
      %v1054 = vpop.f32.mrb[0].mxu0
      %v1055 = vadd.f32 0.0, %v1054
      %v1056 = vpop.f32.mrb[0].mxu0
      %v1057 = vpop.f32.mrb[0].mxu0
      %v1058 = vadd.f32 0.0, %v1057
      %v1059 = vpop.f32.mrb[0].mxu0
      %1060 = vmatprep.mubr.bf16.mxu0 0
      %1061 = vmatmul.mubr.bf16.gmra.mrb[0].mxu0 %v963
      %v1062 = vpop.f32.mrb[0].mxu0
      %v1063 = vadd.f32 0.0, %v1062
      %v1064 = vpop.f32.mrb[0].mxu0
      %v1065 = vpop.f32.mrb[0].mxu0
      %v1066 = vadd.f32 0.0, %v1065
      %v1067 = vpop.f32.mrb[0].mxu0
      %1068 = vmatprep.mubr.bf16.mxu0 0
      %1069 = vmatmul.mubr.bf16.gmra.mrb[0].mxu0 %v966
      %v1070 = vpop.f32.mrb[0].mxu0
      %v1071 = vadd.f32 0.0, %v1070
      %v1072 = vpop.f32.mrb[0].mxu0
      %v1073 = vpop.f32.mrb[0].mxu0
      %v1074 = vadd.f32 0.0, %v1073
      %v1075 = vpop.f32.mrb[0].mxu0
      %1076 = vdwg.mxu0
      %v1078 = vsel %vm940, %v920, 0
      %v1081 = vsel %vm940, %v921, 0
      %v1084 = vsel %vm940, %v922, 0
      %v1087 = vsel %vm940, %v923, 0
      %v1090 = vsel %vm940, %v924, 0
      %v1093 = vsel %vm940, %v925, 0
      %v1096 = vsel %vm940, %v926, 0
      %v1099 = vsel %vm940, %v927, 0
      %v1102 = vsel %vm940, %v928, 0
      %v1105 = vsel %vm968, %v929, 0
      %1107 = vmatprep.subr.bf16.mxu0 0
      %1108 = vmatpush1.bf16.msra.mxu0 %v1105
      %1109 = vmatprep.subr.bf16.mxu0 0
      %1110 = vmatpush1.bf16.msra.mxu0 0
      %1111 = vmatprep.subr.bf16.mxu0 0
      %1112 = vmatpush1.bf16.msra.mxu0 0
      %1113 = vmatprep.subr.bf16.mxu0 0
      %1114 = vmatpush1.bf16.msra.mxu0 0
      %1115 = vmatprep.subr.bf16.mxu0 0
      %1116 = vmatpush1.bf16.msra.mxu0 0
      %1117 = vmatprep.subr.bf16.mxu0 0
      %1118 = vmatpush1.bf16.msra.mxu0 0
      %1119 = vmatprep.subr.bf16.mxu0 0
      %1120 = vmatpush1.bf16.msra.mxu0 0
      %1121 = vmatprep.subr.bf16.mxu0 0
      %1122 = vmatpush1.bf16.msra.mxu0 0
      %1123 = vmatprep.subr.bf16.mxu0 0
      %1124 = vmatpush1.bf16.msra.mxu0 0
      %1125 = vmatprep.subr.bf16.mxu0 0
      %1126 = vmatpush1.bf16.msra.mxu0 0
      %1127 = vmatprep.subr.bf16.mxu0 0
      %1128 = vmatpush1.bf16.msra.mxu0 0
      %1129 = vmatprep.subr.bf16.mxu0 0
      %1130 = vmatpush1.bf16.msra.mxu0 0
      %1131 = vmatprep.subr.bf16.mxu0 0
      %1132 = vmatpush1.bf16.msra.mxu0 0
      %1133 = vmatprep.subr.bf16.mxu0 0
      %1134 = vmatpush1.bf16.msra.mxu0 0
      %1135 = vmatprep.subr.bf16.mxu0 0
      %1136 = vmatpush1.bf16.msra.mxu0 0
      %1137 = vmatprep.subr.bf16.mxu0 0
      %1138 = vmatpush1.bf16.msra.mxu0 0
      %1139 = vmatprep.mubr.bf16.mxu0 0
      %1140 = vmatmul.mubr.bf16.gmra.mrb[0].mxu0 %v1078
      %v1141 = vpop.f32.mrb[0].mxu0
      %v1142 = vadd.f32 %v1007, %v1141
      %v1143 = vpop.f32.mrb[0].mxu0
      %v1144 = vpop.f32.mrb[0].mxu0
      %v1145 = vadd.f32 %v1010, %v1144
      %v1146 = vpop.f32.mrb[0].mxu0
      %1147 = vmatprep.mubr.bf16.mxu0 0
      %1148 = vmatmul.mubr.bf16.gmra.mrb[0].mxu0 %v1081
      %v1149 = vpop.f32.mrb[0].mxu0
      %v1150 = vadd.f32 %v1015, %v1149
      %v1151 = vpop.f32.mrb[0].mxu0
      %v1152 = vpop.f32.mrb[0].mxu0
      %v1153 = vadd.f32 %v1018, %v1152
      %v1154 = vpop.f32.mrb[0].mxu0
      %1155 = vmatprep.mubr.bf16.mxu0 0
      %1156 = vmatmul.mubr.bf16.gmra.mrb[0].mxu0 %v1084
      %v1157 = vpop.f32.mrb[0].mxu0
      %v1158 = vadd.f32 %v1023, %v1157
      %v1159 = vpop.f32.mrb[0].mxu0
      %v1160 = vpop.f32.mrb[0].mxu0
      %v1161 = vadd.f32 %v1026, %v1160
      %v1162 = vpop.f32.mrb[0].mxu0
      %1163 = vmatprep.mubr.bf16.mxu0 0
      %1164 = vmatmul.mubr.bf16.gmra.mrb[0].mxu0 %v1087
      %v1165 = vpop.f32.mrb[0].mxu0
      %v1166 = vadd.f32 %v1031, %v1165
      %v1167 = vpop.f32.mrb[0].mxu0
      %v1168 = vpop.f32.mrb[0].mxu0
      %v1169 = vadd.f32 %v1034, %v1168
      %v1170 = vpop.f32.mrb[0].mxu0
      %1171 = vmatprep.mubr.bf16.mxu0 0
      %1172 = vmatmul.mubr.bf16.gmra.mrb[0].mxu0 %v1090
      %v1173 = vpop.f32.mrb[0].mxu0
      %v1174 = vadd.f32 %v1039, %v1173
      %v1175 = vpop.f32.mrb[0].mxu0
      %v1176 = vpop.f32.mrb[0].mxu0
      %v1177 = vadd.f32 %v1042, %v1176
      %v1178 = vpop.f32.mrb[0].mxu0
      %1179 = vmatprep.mubr.bf16.mxu0 0
      %1180 = vmatmul.mubr.bf16.gmra.mrb[0].mxu0 %v1093
      %v1181 = vpop.f32.mrb[0].mxu0
      %v1182 = vadd.f32 %v1047, %v1181
      %v1183 = vpop.f32.mrb[0].mxu0
      %v1184 = vpop.f32.mrb[0].mxu0
      %v1185 = vadd.f32 %v1050, %v1184
      %v1186 = vpop.f32.mrb[0].mxu0
      %1187 = vmatprep.mubr.bf16.mxu0 0
      %1188 = vmatmul.mubr.bf16.gmra.mrb[0].mxu0 %v1096
      %v1189 = vpop.f32.mrb[0].mxu0
      %v1190 = vadd.f32 %v1055, %v1189
      %v1191 = vpop.f32.mrb[0].mxu0
      %v1192 = vpop.f32.mrb[0].mxu0
      %v1193 = vadd.f32 %v1058, %v1192
      %v1194 = vpop.f32.mrb[0].mxu0
      %1195 = vmatprep.mubr.bf16.mxu0 0
      %1196 = vmatmul.mubr.bf16.gmra.mrb[0].mxu0 %v1099
      %v1197 = vpop.f32.mrb[0].mxu0
      %v1198 = vadd.f32 %v1063, %v1197
      %v1199 = vpop.f32.mrb[0].mxu0
      %v1200 = vpop.f32.mrb[0].mxu0
      %v1201 = vadd.f32 %v1066, %v1200
      %v1202 = vpop.f32.mrb[0].mxu0
      %1203 = vmatprep.mubr.bf16.mxu0 0
      %1204 = vmatmul.mubr.bf16.gmra.mrb[0].mxu0 %v1102
      %v1205 = vpop.f32.mrb[0].mxu0
      %v1206 = vadd.f32 %v1071, %v1205
      %v1207 = vpop.f32.mrb[0].mxu0
      %v1208 = vpop.f32.mrb[0].mxu0
      %v1209 = vadd.f32 %v1074, %v1208
      %v1210 = vpop.f32.mrb[0].mxu0
      %1211 = vdwg.mxu0
      %vm1228 = vcmask 1040384
      %v1229 = vrot.slane %v1142, 7
      %v1230 = vrot.slane %v1145, 7
      %v1231 = vsel %vm1228, %v1229, %v1230
      %v1232 = vrot.slane %v1150, 7
      %v1233 = vsel %vm1228, %v1230, %v1232
      %v1234 = vrot.slane %v1153, 7
      %v1235 = vsel %vm1228, %v1232, %v1234
      %v1236 = vrot.slane %v1158, 7
      %v1237 = vsel %vm1228, %v1234, %v1236
      %v1238 = vrot.slane %v1161, 7
      %v1239 = vsel %vm1228, %v1236, %v1238
      %v1240 = vrot.slane %v1166, 7
      %v1241 = vsel %vm1228, %v1238, %v1240
      %v1242 = vrot.slane %v1169, 7
      %v1243 = vsel %vm1228, %v1240, %v1242
      %v1244 = vrot.slane %v1174, 7
      %v1245 = vsel %vm1228, %v1242, %v1244
      %v1246 = vrot.slane %v1177, 7
      %v1247 = vsel %vm1228, %v1244, %v1246
      %v1248 = vrot.slane %v1182, 7
      %v1249 = vsel %vm1228, %v1246, %v1248
      %v1250 = vrot.slane %v1185, 7
      %v1251 = vsel %vm1228, %v1248, %v1250
      %v1252 = vrot.slane %v1190, 7
      %v1253 = vsel %vm1228, %v1250, %v1252
      %v1254 = vrot.slane %v1193, 7
      %v1255 = vsel %vm1228, %v1252, %v1254
      %v1256 = vrot.slane %v1198, 7
      %v1257 = vsel %vm1228, %v1254, %v1256
      %v1258 = vrot.slane %v1201, 7
      %v1259 = vsel %vm1228, %v1256, %v1258
      %v1276 = vsel %vm1228, 0.0, %v1229
      %v1277 = vsel %vm708, 1, 0
      %v1278 = vsel %vm709, 1, 0
      %v1279 = vsel %vm710, 1, 0
      %v1280 = vsel %vm711, 1, 0
      %v1281 = vsel %vm712, 1, 0
      %v1282 = vsel %vm713, 1, 0
      %v1283 = vsel %vm714, 1, 0
      %v1284 = vsel %vm715, 1, 0
      %v1285 = vsel %vm716, 1, 0
      %v1286 = vsel %vm717, 1, 0
      %v1287 = vsel %vm718, 1, 0
      %v1288 = vsel %vm719, 1, 0
      %v1289 = vsel %vm720, 1, 0
      %v1290 = vsel %vm721, 1, 0
      %v1291 = vsel %vm722, 1, 0
      %v1292 = vsel %vm723, 1, 0
      %vm1293 = vcmp.eq.s32.totalorder %v1277, 1
      %vm1294 = vcmp.eq.s32.totalorder %v1278, 1
      %vm1295 = vcmp.eq.s32.totalorder %v1279, 1
      %vm1296 = vcmp.eq.s32.totalorder %v1280, 1
      %vm1297 = vcmp.eq.s32.totalorder %v1281, 1
      %vm1298 = vcmp.eq.s32.totalorder %v1282, 1
      %vm1299 = vcmp.eq.s32.totalorder %v1283, 1
      %vm1300 = vcmp.eq.s32.totalorder %v1284, 1
      %vm1301 = vcmp.eq.s32.totalorder %v1285, 1
      %vm1302 = vcmp.eq.s32.totalorder %v1286, 1
      %vm1303 = vcmp.eq.s32.totalorder %v1287, 1
      %vm1304 = vcmp.eq.s32.totalorder %v1288, 1
      %vm1305 = vcmp.eq.s32.totalorder %v1289, 1
      %vm1306 = vcmp.eq.s32.totalorder %v1290, 1
      %vm1307 = vcmp.eq.s32.totalorder %v1291, 1
      %vm1308 = vcmp.eq.s32.totalorder %v1292, 1
      %v1309 = vsel %vm1293, %v1276, 0.0
      %v1310 = vsel %vm1294, %v1231, 0.0
      %v1311 = vsel %vm1295, %v1233, 0.0
      %v1312 = vsel %vm1296, %v1235, 0.0
      %v1313 = vsel %vm1297, %v1237, 0.0
      %v1314 = vsel %vm1298, %v1239, 0.0
      %v1315 = vsel %vm1299, %v1241, 0.0
      %v1316 = vsel %vm1300, %v1243, 0.0
      %v1317 = vsel %vm1301, %v1245, 0.0
      %v1318 = vsel %vm1302, %v1247, 0.0
      %v1319 = vsel %vm1303, %v1249, 0.0
      %v1320 = vsel %vm1304, %v1251, 0.0
      %v1321 = vsel %vm1305, %v1253, 0.0
      %v1322 = vsel %vm1306, %v1255, 0.0
      %v1323 = vsel %vm1307, %v1257, 0.0
      %v1324 = vsel %vm1308, %v1259, 0.0
      %1325 = vrot.lane.b32.xlu0 %v1142, 120
      %v1326 = vpop.permute.xlu0 %1325
      %1327 = vrot.lane.b32.xlu0 %v1145, 120
      %v1328 = vpop.permute.xlu0 %1327
      %1329 = vrot.lane.b32.xlu0 %v1150, 120
      %v1330 = vpop.permute.xlu0 %1329
      %1331 = vrot.lane.b32.xlu0 %v1153, 120
      %v1332 = vpop.permute.xlu0 %1331
      %1333 = vrot.lane.b32.xlu0 %v1158, 120
      %v1334 = vpop.permute.xlu0 %1333
      %1335 = vrot.lane.b32.xlu0 %v1161, 120
      %v1336 = vpop.permute.xlu0 %1335
      %1337 = vrot.lane.b32.xlu0 %v1166, 120
      %v1338 = vpop.permute.xlu0 %1337
      %1339 = vrot.lane.b32.xlu0 %v1169, 120
      %v1340 = vpop.permute.xlu0 %1339
      %1341 = vrot.lane.b32.xlu0 %v1174, 120
      %v1342 = vpop.permute.xlu0 %1341
      %1343 = vrot.lane.b32.xlu0 %v1177, 120
      %v1344 = vpop.permute.xlu0 %1343
      %1345 = vrot.lane.b32.xlu0 %v1182, 120
      %v1346 = vpop.permute.xlu0 %1345
      %1347 = vrot.lane.b32.xlu0 %v1185, 120
      %v1348 = vpop.permute.xlu0 %1347
      %1349 = vrot.lane.b32.xlu0 %v1190, 120
      %v1350 = vpop.permute.xlu0 %1349
      %1351 = vrot.lane.b32.xlu0 %v1193, 120
      %v1352 = vpop.permute.xlu0 %1351
      %1353 = vrot.lane.b32.xlu0 %v1198, 120
      %v1354 = vpop.permute.xlu0 %1353
      %1355 = vrot.lane.b32.xlu0 %v1201, 120
      %v1356 = vpop.permute.xlu0 %1355
      %v1373 = vadd.f32 %v1309, %v1326
      %v1374 = vadd.f32 %v1310, %v1328
      %v1375 = vadd.f32 %v1311, %v1330
      %v1376 = vadd.f32 %v1312, %v1332
      %v1377 = vadd.f32 %v1313, %v1334
      %v1378 = vadd.f32 %v1314, %v1336
      %v1379 = vadd.f32 %v1315, %v1338
      %v1380 = vadd.f32 %v1316, %v1340
      %v1381 = vadd.f32 %v1317, %v1342
      %v1382 = vadd.f32 %v1318, %v1344
      %v1383 = vadd.f32 %v1319, %v1346
      %v1384 = vadd.f32 %v1320, %v1348
      %v1385 = vadd.f32 %v1321, %v1350
      %v1386 = vadd.f32 %v1322, %v1352
      %v1387 = vadd.f32 %v1323, %v1354
      %v1388 = vadd.f32 %v1324, %v1356
      %v1389 = vsel %vm724, 1, 0
      %v1390 = vsel %vm725, 1, 0
      %v1391 = vsel %vm726, 1, 0
      %v1392 = vsel %vm727, 1, 0
      %v1393 = vsel %vm728, 1, 0
      %v1394 = vsel %vm729, 1, 0
      %v1395 = vsel %vm730, 1, 0
      %v1396 = vsel %vm731, 1, 0
      %v1397 = vsel %vm732, 1, 0
      %v1398 = vsel %vm733, 1, 0
      %v1399 = vsel %vm734, 1, 0
      %v1400 = vsel %vm735, 1, 0
      %v1401 = vsel %vm736, 1, 0
      %v1402 = vsel %vm737, 1, 0
      %v1403 = vsel %vm738, 1, 0
      %v1404 = vsel %vm739, 1, 0
      %vm1405 = vcmp.eq.s32.totalorder %v1389, 1
      %vm1406 = vcmp.eq.s32.totalorder %v1390, 1
      %vm1407 = vcmp.eq.s32.totalorder %v1391, 1
      %vm1408 = vcmp.eq.s32.totalorder %v1392, 1
      %vm1409 = vcmp.eq.s32.totalorder %v1393, 1
      %vm1410 = vcmp.eq.s32.totalorder %v1394, 1
      %vm1411 = vcmp.eq.s32.totalorder %v1395, 1
      %vm1412 = vcmp.eq.s32.totalorder %v1396, 1
      %vm1413 = vcmp.eq.s32.totalorder %v1397, 1
      %vm1414 = vcmp.eq.s32.totalorder %v1398, 1
      %vm1415 = vcmp.eq.s32.totalorder %v1399, 1
      %vm1416 = vcmp.eq.s32.totalorder %v1400, 1
      %vm1417 = vcmp.eq.s32.totalorder %v1401, 1
      %vm1418 = vcmp.eq.s32.totalorder %v1402, 1
      %vm1419 = vcmp.eq.s32.totalorder %v1403, 1
      %vm1420 = vcmp.eq.s32.totalorder %v1404, 1
      %vm1422 = vcmask 1046528
      %v1423 = vrot.slane %v1142, 1
      %v1424 = vrot.slane %v1145, 1
      %v1425 = vsel %vm1422, %v1423, %v1424
      %v1426 = vrot.slane %v1150, 1
      %v1427 = vsel %vm1422, %v1424, %v1426
      %v1428 = vrot.slane %v1153, 1
      %v1429 = vsel %vm1422, %v1426, %v1428
      %v1430 = vrot.slane %v1158, 1
      %v1431 = vsel %vm1422, %v1428, %v1430
      %v1432 = vrot.slane %v1161, 1
      %v1433 = vsel %vm1422, %v1430, %v1432
      %v1434 = vrot.slane %v1166, 1
      %v1435 = vsel %vm1422, %v1432, %v1434
      %v1436 = vrot.slane %v1169, 1
      %v1437 = vsel %vm1422, %v1434, %v1436
      %v1438 = vrot.slane %v1174, 1
      %v1439 = vsel %vm1422, %v1436, %v1438
      %v1440 = vrot.slane %v1177, 1
      %v1441 = vsel %vm1422, %v1438, %v1440
      %v1442 = vrot.slane %v1182, 1
      %v1443 = vsel %vm1422, %v1440, %v1442
      %v1444 = vrot.slane %v1185, 1
      %v1445 = vsel %vm1422, %v1442, %v1444
      %v1446 = vrot.slane %v1190, 1
      %v1447 = vsel %vm1422, %v1444, %v1446
      %v1448 = vrot.slane %v1193, 1
      %v1449 = vsel %vm1422, %v1446, %v1448
      %v1450 = vrot.slane %v1198, 1
      %v1451 = vsel %vm1422, %v1448, %v1450
      %v1452 = vrot.slane %v1201, 1
      %v1453 = vsel %vm1422, %v1450, %v1452
      %v1454 = vrot.slane %v1206, 1
      %v1455 = vsel %vm1422, %v1452, %v1454
      %1456 = vrot.lane.b32.xlu0 %v1425, 112
      %v1457 = vpop.permute.xlu0 %1456
      %1458 = vrot.lane.b32.xlu0 %v1427, 112
      %v1459 = vpop.permute.xlu0 %1458
      %1460 = vrot.lane.b32.xlu0 %v1429, 112
      %v1461 = vpop.permute.xlu0 %1460
      %1462 = vrot.lane.b32.xlu0 %v1431, 112
      %v1463 = vpop.permute.xlu0 %1462
      %1464 = vrot.lane.b32.xlu0 %v1433, 112
      %v1465 = vpop.permute.xlu0 %1464
      %1466 = vrot.lane.b32.xlu0 %v1435, 112
      %v1467 = vpop.permute.xlu0 %1466
      %1468 = vrot.lane.b32.xlu0 %v1437, 112
      %v1469 = vpop.permute.xlu0 %1468
      %1470 = vrot.lane.b32.xlu0 %v1439, 112
      %v1471 = vpop.permute.xlu0 %1470
      %1472 = vrot.lane.b32.xlu0 %v1441, 112
      %v1473 = vpop.permute.xlu0 %1472
      %1474 = vrot.lane.b32.xlu0 %v1443, 112
      %v1475 = vpop.permute.xlu0 %1474
      %1476 = vrot.lane.b32.xlu0 %v1445, 112
      %v1477 = vpop.permute.xlu0 %1476
      %1478 = vrot.lane.b32.xlu0 %v1447, 112
      %v1479 = vpop.permute.xlu0 %1478
      %1480 = vrot.lane.b32.xlu0 %v1449, 112
      %v1481 = vpop.permute.xlu0 %1480
      %1482 = vrot.lane.b32.xlu0 %v1451, 112
      %v1483 = vpop.permute.xlu0 %1482
      %1484 = vrot.lane.b32.xlu0 %v1453, 112
      %v1485 = vpop.permute.xlu0 %1484
      %1486 = vrot.lane.b32.xlu0 %v1455, 112
      %v1487 = vpop.permute.xlu0 %1486
      %v1504 = vsel %vm1405, %v1457, 0.0
      %v1505 = vsel %vm1406, %v1459, 0.0
      %v1506 = vsel %vm1407, %v1461, 0.0
      %v1507 = vsel %vm1408, %v1463, 0.0
      %v1508 = vsel %vm1409, %v1465, 0.0
      %v1509 = vsel %vm1410, %v1467, 0.0
      %v1510 = vsel %vm1411, %v1469, 0.0
      %v1511 = vsel %vm1412, %v1471, 0.0
      %v1512 = vsel %vm1413, %v1473, 0.0
      %v1513 = vsel %vm1414, %v1475, 0.0
      %v1514 = vsel %vm1415, %v1477, 0.0
      %v1515 = vsel %vm1416, %v1479, 0.0
      %v1516 = vsel %vm1417, %v1481, 0.0
      %v1517 = vsel %vm1418, %v1483, 0.0
      %v1518 = vsel %vm1419, %v1485, 0.0
      %v1519 = vsel %vm1420, %v1487, 0.0
      %v1520 = vadd.f32 %v1373, %v1504
      %v1521 = vadd.f32 %v1374, %v1505
      %v1522 = vadd.f32 %v1375, %v1506
      %v1523 = vadd.f32 %v1376, %v1507
      %v1524 = vadd.f32 %v1377, %v1508
      %v1525 = vadd.f32 %v1378, %v1509
      %v1526 = vadd.f32 %v1379, %v1510
      %v1527 = vadd.f32 %v1380, %v1511
      %v1528 = vadd.f32 %v1381, %v1512
      %v1529 = vadd.f32 %v1382, %v1513
      %v1530 = vadd.f32 %v1383, %v1514
      %v1531 = vadd.f32 %v1384, %v1515
      %v1532 = vadd.f32 %v1385, %v1516
      %v1533 = vadd.f32 %v1386, %v1517
      %v1534 = vadd.f32 %v1387, %v1518
      %v1535 = vadd.f32 %v1388, %v1519
      %v1537 = vrot.slane %v1206, 7
      %v1538 = vsel %vm1228, %v1258, %v1537
      %v1539 = vrot.slane %v1209, 7
      %v1540 = vsel %vm1228, %v1537, %v1539
      %1541 = vrot.lane.b32.xlu0 %v1233, 104
      %v1542 = vpop.permute.xlu0 %1541
      %1543 = vrot.lane.b32.xlu0 %v1235, 104
      %v1544 = vpop.permute.xlu0 %1543
      %1545 = vrot.lane.b32.xlu0 %v1237, 104
      %v1546 = vpop.permute.xlu0 %1545
      %1547 = vrot.lane.b32.xlu0 %v1239, 104
      %v1548 = vpop.permute.xlu0 %1547
      %1549 = vrot.lane.b32.xlu0 %v1241, 104
      %v1550 = vpop.permute.xlu0 %1549
      %1551 = vrot.lane.b32.xlu0 %v1243, 104
      %v1552 = vpop.permute.xlu0 %1551
      %1553 = vrot.lane.b32.xlu0 %v1245, 104
      %v1554 = vpop.permute.xlu0 %1553
      %1555 = vrot.lane.b32.xlu0 %v1247, 104
      %v1556 = vpop.permute.xlu0 %1555
      %1557 = vrot.lane.b32.xlu0 %v1249, 104
      %v1558 = vpop.permute.xlu0 %1557
      %1559 = vrot.lane.b32.xlu0 %v1251, 104
      %v1560 = vpop.permute.xlu0 %1559
      %1561 = vrot.lane.b32.xlu0 %v1253, 104
      %v1562 = vpop.permute.xlu0 %1561
      %1563 = vrot.lane.b32.xlu0 %v1255, 104
      %v1564 = vpop.permute.xlu0 %1563
      %1565 = vrot.lane.b32.xlu0 %v1257, 104
      %v1566 = vpop.permute.xlu0 %1565
      %1567 = vrot.lane.b32.xlu0 %v1259, 104
      %v1568 = vpop.permute.xlu0 %1567
      %1569 = vrot.lane.b32.xlu0 %v1538, 104
      %v1570 = vpop.permute.xlu0 %1569
      %1571 = vrot.lane.b32.xlu0 %v1540, 104
      %v1572 = vpop.permute.xlu0 %1571
      %v1589 = vsel %vm1293, %v1542, 0.0
      %v1590 = vsel %vm1294, %v1544, 0.0
      %v1591 = vsel %vm1295, %v1546, 0.0
      %v1592 = vsel %vm1296, %v1548, 0.0
      %v1593 = vsel %vm1297, %v1550, 0.0
      %v1594 = vsel %vm1298, %v1552, 0.0
      %v1595 = vsel %vm1299, %v1554, 0.0
      %v1596 = vsel %vm1300, %v1556, 0.0
      %v1597 = vsel %vm1301, %v1558, 0.0
      %v1598 = vsel %vm1302, %v1560, 0.0
      %v1599 = vsel %vm1303, %v1562, 0.0
      %v1600 = vsel %vm1304, %v1564, 0.0
      %v1601 = vsel %vm1305, %v1566, 0.0
      %v1602 = vsel %vm1306, %v1568, 0.0
      %v1603 = vsel %vm1307, %v1570, 0.0
      %v1604 = vsel %vm1308, %v1572, 0.0
      %v1605 = vadd.f32 %v1520, %v1589
      %v1606 = vadd.f32 %v1521, %v1590
      %v1607 = vadd.f32 %v1522, %v1591
      %v1608 = vadd.f32 %v1523, %v1592
      %v1609 = vadd.f32 %v1524, %v1593
      %v1610 = vadd.f32 %v1525, %v1594
      %v1611 = vadd.f32 %v1526, %v1595
      %v1612 = vadd.f32 %v1527, %v1596
      %v1613 = vadd.f32 %v1528, %v1597
      %v1614 = vadd.f32 %v1529, %v1598
      %v1615 = vadd.f32 %v1530, %v1599
      %v1616 = vadd.f32 %v1531, %v1600
      %v1617 = vadd.f32 %v1532, %v1601
      %v1618 = vadd.f32 %v1533, %v1602
      %v1619 = vadd.f32 %v1534, %v1603
      %v1620 = vadd.f32 %v1535, %v1604
      %1621 = vrot.lane.b32.xlu0 %v1150, 96
      %v1622 = vpop.permute.xlu0 %1621
      %1623 = vrot.lane.b32.xlu0 %v1153, 96
      %v1624 = vpop.permute.xlu0 %1623
      %1625 = vrot.lane.b32.xlu0 %v1158, 96
      %v1626 = vpop.permute.xlu0 %1625
      %1627 = vrot.lane.b32.xlu0 %v1161, 96
      %v1628 = vpop.permute.xlu0 %1627
      %1629 = vrot.lane.b32.xlu0 %v1166, 96
      %v1630 = vpop.permute.xlu0 %1629
      %1631 = vrot.lane.b32.xlu0 %v1169, 96
      %v1632 = vpop.permute.xlu0 %1631
      %1633 = vrot.lane.b32.xlu0 %v1174, 96
      %v1634 = vpop.permute.xlu0 %1633
      %1635 = vrot.lane.b32.xlu0 %v1177, 96
      %v1636 = vpop.permute.xlu0 %1635
      %1637 = vrot.lane.b32.xlu0 %v1182, 96
      %v1638 = vpop.permute.xlu0 %1637
      %1639 = vrot.lane.b32.xlu0 %v1185, 96
      %v1640 = vpop.permute.xlu0 %1639
      %1641 = vrot.lane.b32.xlu0 %v1190, 96
      %v1642 = vpop.permute.xlu0 %1641
      %1643 = vrot.lane.b32.xlu0 %v1193, 96
      %v1644 = vpop.permute.xlu0 %1643
      %1645 = vrot.lane.b32.xlu0 %v1198, 96
      %v1646 = vpop.permute.xlu0 %1645
      %1647 = vrot.lane.b32.xlu0 %v1201, 96
      %v1648 = vpop.permute.xlu0 %1647
      %1649 = vrot.lane.b32.xlu0 %v1206, 96
      %v1650 = vpop.permute.xlu0 %1649
      %1651 = vrot.lane.b32.xlu0 %v1209, 96
      %v1652 = vpop.permute.xlu0 %1651
      %v1669 = vadd.f32 %v1605, %v1622
      %v1670 = vadd.f32 %v1606, %v1624
      %v1671 = vadd.f32 %v1607, %v1626
      %v1672 = vadd.f32 %v1608, %v1628
      %v1673 = vadd.f32 %v1609, %v1630
      %v1674 = vadd.f32 %v1610, %v1632
      %v1675 = vadd.f32 %v1611, %v1634
      %v1676 = vadd.f32 %v1612, %v1636
      %v1677 = vadd.f32 %v1613, %v1638
      %v1678 = vadd.f32 %v1614, %v1640
      %v1679 = vadd.f32 %v1615, %v1642
      %v1680 = vadd.f32 %v1616, %v1644
      %v1681 = vadd.f32 %v1617, %v1646
      %v1682 = vadd.f32 %v1618, %v1648
      %v1683 = vadd.f32 %v1619, %v1650
      %v1684 = vadd.f32 %v1620, %v1652
      %v1685 = vrot.slane %v1209, 1
      %v1686 = vsel %vm1422, %v1454, %v1685
      %v1703 = vsel %vm1422, %v1685, 0.0
      %v1704 = vsel %vm1405, %v1429, 0.0
      %v1705 = vsel %vm1406, %v1431, 0.0
      %v1706 = vsel %vm1407, %v1433, 0.0
      %v1707 = vsel %vm1408, %v1435, 0.0
      %v1708 = vsel %vm1409, %v1437, 0.0
      %v1709 = vsel %vm1410, %v1439, 0.0
      %v1710 = vsel %vm1411, %v1441, 0.0
      %v1711 = vsel %vm1412, %v1443, 0.0
      %v1712 = vsel %vm1413, %v1445, 0.0
      %v1713 = vsel %vm1414, %v1447, 0.0
      %v1714 = vsel %vm1415, %v1449, 0.0
      %v1715 = vsel %vm1416, %v1451, 0.0
      %v1716 = vsel %vm1417, %v1453, 0.0
      %v1717 = vsel %vm1418, %v1455, 0.0
      %v1718 = vsel %vm1419, %v1686, 0.0
      %v1719 = vsel %vm1420, %v1703, 0.0
      %1736 = vrot.lane.b32.xlu0 %v1704, 88
      %v1737 = vpop.permute.xlu0 %1736
      %1738 = vrot.lane.b32.xlu0 %v1705, 88
      %v1739 = vpop.permute.xlu0 %1738
      %1740 = vrot.lane.b32.xlu0 %v1706, 88
      %v1741 = vpop.permute.xlu0 %1740
      %1742 = vrot.lane.b32.xlu0 %v1707, 88
      %v1743 = vpop.permute.xlu0 %1742
      %1744 = vrot.lane.b32.xlu0 %v1708, 88
      %v1745 = vpop.permute.xlu0 %1744
      %1746 = vrot.lane.b32.xlu0 %v1709, 88
      %v1747 = vpop.permute.xlu0 %1746
      %1748 = vrot.lane.b32.xlu0 %v1710, 88
      %v1749 = vpop.permute.xlu0 %1748
      %1750 = vrot.lane.b32.xlu0 %v1711, 88
      %v1751 = vpop.permute.xlu0 %1750
      %1752 = vrot.lane.b32.xlu0 %v1712, 88
      %v1753 = vpop.permute.xlu0 %1752
      %1754 = vrot.lane.b32.xlu0 %v1713, 88
      %v1755 = vpop.permute.xlu0 %1754
      %1756 = vrot.lane.b32.xlu0 %v1714, 88
      %v1757 = vpop.permute.xlu0 %1756
      %1758 = vrot.lane.b32.xlu0 %v1715, 88
      %v1759 = vpop.permute.xlu0 %1758
      %1760 = vrot.lane.b32.xlu0 %v1716, 88
      %v1761 = vpop.permute.xlu0 %1760
      %1762 = vrot.lane.b32.xlu0 %v1717, 88
      %v1763 = vpop.permute.xlu0 %1762
      %1764 = vrot.lane.b32.xlu0 %v1718, 88
      %v1765 = vpop.permute.xlu0 %1764
      %1766 = vrot.lane.b32.xlu0 %v1719, 88
      %v1767 = vpop.permute.xlu0 %1766
      %v1784 = vadd.f32 %v1669, %v1737
      %v1785 = vadd.f32 %v1670, %v1739
      %v1786 = vadd.f32 %v1671, %v1741
      %v1787 = vadd.f32 %v1672, %v1743
      %v1788 = vadd.f32 %v1673, %v1745
      %v1789 = vadd.f32 %v1674, %v1747
      %v1790 = vadd.f32 %v1675, %v1749
      %v1791 = vadd.f32 %v1676, %v1751
      %v1792 = vadd.f32 %v1677, %v1753
      %v1793 = vadd.f32 %v1678, %v1755
      %v1794 = vadd.f32 %v1679, %v1757
      %v1795 = vadd.f32 %v1680, %v1759
      %v1796 = vadd.f32 %v1681, %v1761
      %v1797 = vadd.f32 %v1682, %v1763
      %v1798 = vadd.f32 %v1683, %v1765
      %v1799 = vadd.f32 %v1684, %v1767
      %v1800 = vld [vmem:[%s4] sm:$0x1]
      %v1802 = vlaneseq
      %v1803 = vshrl.u32 %v1802, 7
      %v1804 = vsub.s32 0, %v1803
      %v1805 = vrot.slane %v1800, %v1804
      %v1807 = vadd.f32 %v1784, %v1805
      %v1808 = vadd.f32 %v1785, %v1805
      %v1809 = vadd.f32 %v1786, %v1805
      %v1810 = vadd.f32 %v1787, %v1805
      %v1811 = vadd.f32 %v1788, %v1805
      %v1812 = vadd.f32 %v1789, %v1805
      %v1813 = vadd.f32 %v1790, %v1805
      %v1814 = vadd.f32 %v1791, %v1805
      %v1815 = vadd.f32 %v1792, %v1805
      %v1816 = vadd.f32 %v1793, %v1805
      %v1817 = vadd.f32 %v1794, %v1805
      %v1818 = vadd.f32 %v1795, %v1805
      %v1819 = vadd.f32 %v1796, %v1805
      %v1820 = vadd.f32 %v1797, %v1805
      %v1821 = vadd.f32 %v1798, %v1805
      %v1822 = vadd.f32 %v1799, %v1805
      %v1823 = vld [vmem:[%s477] sm:$0xff]
      %v1824 = vld [vmem:[%s477 + $0x8] sm:$0xff]
      %v1825 = vld [vmem:[%s477 + $0x10] sm:$0xff]
      %v1826 = vld [vmem:[%s477 + $0x18] sm:$0xff]
      %v1827 = vld [vmem:[%s477 + $0x20] sm:$0xff]
      %v1828 = vld [vmem:[%s477 + $0x28] sm:$0xff]
      %v1829 = vld [vmem:[%s477 + $0x30] sm:$0xff]
      %v1830 = vld [vmem:[%s477 + $0x38] sm:$0xff]
      %v1831 = vld [vmem:[%s477 + $0x40] sm:$0xff]
      %v1832 = vld [vmem:[%s477 + $0x48] sm:$0xff]
      %v1833 = vld [vmem:[%s477 + $0x50] sm:$0xff]
      %v1834 = vld [vmem:[%s477 + $0x58] sm:$0xff]
      %v1835 = vld [vmem:[%s477 + $0x60] sm:$0xff]
      %v1836 = vld [vmem:[%s477 + $0x68] sm:$0xff]
      %v1837 = vld [vmem:[%s477 + $0x70] sm:$0xff]
      %v1838 = vld [vmem:[%s477 + $0x78] sm:$0xff]
      %v1839 = vand.u32 2147483647, %v1823
      %v1840 = vand.u32 2147483647, %v1824
      %v1841 = vand.u32 2147483647, %v1825
      %v1842 = vand.u32 2147483647, %v1826
      %v1843 = vand.u32 2147483647, %v1827
      %v1844 = vand.u32 2147483647, %v1828
      %v1845 = vand.u32 2147483647, %v1829
      %v1846 = vand.u32 2147483647, %v1830
      %v1847 = vand.u32 2147483647, %v1831
      %v1848 = vand.u32 2147483647, %v1832
      %v1849 = vand.u32 2147483647, %v1833
      %v1850 = vand.u32 2147483647, %v1834
      %v1851 = vand.u32 2147483647, %v1835
      %v1852 = vand.u32 2147483647, %v1836
      %v1853 = vand.u32 2147483647, %v1837
      %v1854 = vand.u32 2147483647, %v1838
      %v1855 = vsub.f32 0.0, %v1839
      %v1856 = vsub.f32 0.0, %v1840
      %v1857 = vsub.f32 0.0, %v1841
      %v1858 = vsub.f32 0.0, %v1842
      %v1859 = vsub.f32 0.0, %v1843
      %v1860 = vsub.f32 0.0, %v1844
      %v1861 = vsub.f32 0.0, %v1845
      %v1862 = vsub.f32 0.0, %v1846
      %v1863 = vsub.f32 0.0, %v1847
      %v1864 = vsub.f32 0.0, %v1848
      %v1865 = vsub.f32 0.0, %v1849
      %v1866 = vsub.f32 0.0, %v1850
      %v1867 = vsub.f32 0.0, %v1851
      %v1868 = vsub.f32 0.0, %v1852
      %v1869 = vsub.f32 0.0, %v1853
      %v1870 = vsub.f32 0.0, %v1854
      %v1871 = vmul.f32 %v1855, 1.442695
      %v1872 = vpow.pop %v1871
      %v1873 = vmul.f32 %v1856, 1.442695
      %v1874 = vpow.pop %v1873
      %v1875 = vmul.f32 %v1857, 1.442695
      %v1876 = vpow.pop %v1875
      %v1877 = vmul.f32 %v1858, 1.442695
      %v1878 = vpow.pop %v1877
      %v1879 = vmul.f32 %v1859, 1.442695
      %v1880 = vpow.pop %v1879
      %v1881 = vmul.f32 %v1860, 1.442695
      %v1882 = vpow.pop %v1881
      %v1883 = vmul.f32 %v1861, 1.442695
      %v1884 = vpow.pop %v1883
      %v1885 = vmul.f32 %v1862, 1.442695
      %v1886 = vpow.pop %v1885
      %v1887 = vmul.f32 %v1863, 1.442695
      %v1888 = vpow.pop %v1887
      %v1889 = vmul.f32 %v1864, 1.442695
      %v1890 = vpow.pop %v1889
      %v1891 = vmul.f32 %v1865, 1.442695
      %v1892 = vpow.pop %v1891
      %v1893 = vmul.f32 %v1866, 1.442695
      %v1894 = vpow.pop %v1893
      %v1895 = vmul.f32 %v1867, 1.442695
      %v1896 = vpow.pop %v1895
      %v1897 = vmul.f32 %v1868, 1.442695
      %v1898 = vpow.pop %v1897
      %v1899 = vmul.f32 %v1869, 1.442695
      %v1900 = vpow.pop %v1899
      %v1901 = vmul.f32 %v1870, 1.442695
      %v1902 = vpow.pop %v1901
      %v1903 = vsub.f32 %v1872, 1.0
      %v1904 = vsub.f32 %v1874, 1.0
      %v1905 = vsub.f32 %v1876, 1.0
      %v1906 = vsub.f32 %v1878, 1.0
      %v1907 = vsub.f32 %v1880, 1.0
      %v1908 = vsub.f32 %v1882, 1.0
      %v1909 = vsub.f32 %v1884, 1.0
      %v1910 = vsub.f32 %v1886, 1.0
      %v1911 = vsub.f32 %v1888, 1.0
      %v1912 = vsub.f32 %v1890, 1.0
      %v1913 = vsub.f32 %v1892, 1.0
      %v1914 = vsub.f32 %v1894, 1.0
      %v1915 = vsub.f32 %v1896, 1.0
      %v1916 = vsub.f32 %v1898, 1.0
      %v1917 = vsub.f32 %v1900, 1.0
      %v1918 = vsub.f32 %v1902, 1.0
      %vm1919 = vcmp.gt.f32.partialorder %v1823, 0.0
      %vm1920 = vcmp.gt.f32.partialorder %v1824, 0.0
      %vm1921 = vcmp.gt.f32.partialorder %v1825, 0.0
      %vm1922 = vcmp.gt.f32.partialorder %v1826, 0.0
      %vm1923 = vcmp.gt.f32.partialorder %v1827, 0.0
      %vm1924 = vcmp.gt.f32.partialorder %v1828, 0.0
      %vm1925 = vcmp.gt.f32.partialorder %v1829, 0.0
      %vm1926 = vcmp.gt.f32.partialorder %v1830, 0.0
      %vm1927 = vcmp.gt.f32.partialorder %v1831, 0.0
      %vm1928 = vcmp.gt.f32.partialorder %v1832, 0.0
      %vm1929 = vcmp.gt.f32.partialorder %v1833, 0.0
      %vm1930 = vcmp.gt.f32.partialorder %v1834, 0.0
      %vm1931 = vcmp.gt.f32.partialorder %v1835, 0.0
      %vm1932 = vcmp.gt.f32.partialorder %v1836, 0.0
      %vm1933 = vcmp.gt.f32.partialorder %v1837, 0.0
      %vm1934 = vcmp.gt.f32.partialorder %v1838, 0.0
      %v1935 = vsel %vm1919, %v1823, %v1903
      %v1936 = vsel %vm1920, %v1824, %v1904
      %v1937 = vsel %vm1921, %v1825, %v1905
      %v1938 = vsel %vm1922, %v1826, %v1906
      %v1939 = vsel %vm1923, %v1827, %v1907
      %v1940 = vsel %vm1924, %v1828, %v1908
      %v1941 = vsel %vm1925, %v1829, %v1909
      %v1942 = vsel %vm1926, %v1830, %v1910
      %v1943 = vsel %vm1927, %v1831, %v1911
      %v1944 = vsel %vm1928, %v1832, %v1912
      %v1945 = vsel %vm1929, %v1833, %v1913
      %v1946 = vsel %vm1930, %v1834, %v1914
      %v1947 = vsel %vm1931, %v1835, %v1915
      %v1948 = vsel %vm1932, %v1836, %v1916
      %v1949 = vsel %vm1933, %v1837, %v1917
      %v1950 = vsel %vm1934, %v1838, %v1918
      %v1951 = vsub.f32 0.0, %v1823
      %v1952 = vsub.f32 0.0, %v1824
      %v1953 = vsub.f32 0.0, %v1825
      %v1954 = vsub.f32 0.0, %v1826
      %v1955 = vsub.f32 0.0, %v1827
      %v1956 = vsub.f32 0.0, %v1828
      %v1957 = vsub.f32 0.0, %v1829
      %v1958 = vsub.f32 0.0, %v1830
      %v1959 = vsub.f32 0.0, %v1831
      %v1960 = vsub.f32 0.0, %v1832
      %v1961 = vsub.f32 0.0, %v1833
      %v1962 = vsub.f32 0.0, %v1834
      %v1963 = vsub.f32 0.0, %v1835
      %v1964 = vsub.f32 0.0, %v1836
      %v1965 = vsub.f32 0.0, %v1837
      %v1966 = vsub.f32 0.0, %v1838
      %v1967 = vsel %vm1919, %v1903, %v1951
      %v1968 = vsel %vm1920, %v1904, %v1952
      %v1969 = vsel %vm1921, %v1905, %v1953
      %v1970 = vsel %vm1922, %v1906, %v1954
      %v1971 = vsel %vm1923, %v1907, %v1955
      %v1972 = vsel %vm1924, %v1908, %v1956
      %v1973 = vsel %vm1925, %v1909, %v1957
      %v1974 = vsel %vm1926, %v1910, %v1958
      %v1975 = vsel %vm1927, %v1911, %v1959
      %v1976 = vsel %vm1928, %v1912, %v1960
      %v1977 = vsel %vm1929, %v1913, %v1961
      %v1978 = vsel %vm1930, %v1914, %v1962
      %v1979 = vsel %vm1931, %v1915, %v1963
      %v1980 = vsel %vm1932, %v1916, %v1964
      %v1981 = vsel %vm1933, %v1917, %v1965
      %v1982 = vsel %vm1934, %v1918, %v1966
      %v1983 = vpack.c.bf16 %v1936, %v1935
      %v1984 = vpack.c.bf16 %v1938, %v1937
      %v1985 = vpack.c.bf16 %v1940, %v1939
      %v1986 = vpack.c.bf16 %v1942, %v1941
      %v1987 = vpack.c.bf16 %v1944, %v1943
      %v1988 = vpack.c.bf16 %v1946, %v1945
      %v1989 = vpack.c.bf16 %v1948, %v1947
      %v1990 = vpack.c.bf16 %v1950, %v1949
      %v1991 = vld [vmem:[%s5] sm:$0xf]
      %v1993 = vsel %vm940, %v1983, 0
      %v1996 = vsel %vm940, %v1984, 0
      %v1999 = vsel %vm940, %v1985, 0
      %v2002 = vsel %vm940, %v1986, 0
      %v2005 = vsel %vm940, %v1987, 0
      %v2008 = vsel %vm940, %v1988, 0
      %v2011 = vsel %vm940, %v1989, 0
      %v2014 = vsel %vm940, %v1990, 0
      %v2017 = vsel %vm968, %v1991, 0
      %2019 = vmatprep.subr.bf16.mxu0 0
      %2020 = vmatpush1.bf16.msra.mxu0 %v2017
      %2021 = vmatprep.subr.bf16.mxu0 0
      %2022 = vmatpush1.bf16.msra.mxu0 0
      %2023 = vmatprep.subr.bf16.mxu0 0
      %2024 = vmatpush1.bf16.msra.mxu0 0
      %2025 = vmatprep.subr.bf16.mxu0 0
      %2026 = vmatpush1.bf16.msra.mxu0 0
      %2027 = vmatprep.subr.bf16.mxu0 0
      %2028 = vmatpush1.bf16.msra.mxu0 0
      %2029 = vmatprep.subr.bf16.mxu0 0
      %2030 = vmatpush1.bf16.msra.mxu0 0
      %2031 = vmatprep.subr.bf16.mxu0 0
      %2032 = vmatpush1.bf16.msra.mxu0 0
      %2033 = vmatprep.subr.bf16.mxu0 0
      %2034 = vmatpush1.bf16.msra.mxu0 0
      %2035 = vmatprep.subr.bf16.mxu0 0
      %2036 = vmatpush1.bf16.msra.mxu0 0
      %2037 = vmatprep.subr.bf16.mxu0 0
      %2038 = vmatpush1.bf16.msra.mxu0 0
      %2039 = vmatprep.subr.bf16.mxu0 0
      %2040 = vmatpush1.bf16.msra.mxu0 0
      %2041 = vmatprep.subr.bf16.mxu0 0
      %2042 = vmatpush1.bf16.msra.mxu0 0
      %2043 = vmatprep.subr.bf16.mxu0 0
      %2044 = vmatpush1.bf16.msra.mxu0 0
      %2045 = vmatprep.subr.bf16.mxu0 0
      %2046 = vmatpush1.bf16.msra.mxu0 0
      %2047 = vmatprep.subr.bf16.mxu0 0
      %2048 = vmatpush1.bf16.msra.mxu0 0
      %2049 = vmatprep.subr.bf16.mxu0 0
      %2050 = vmatpush1.bf16.msra.mxu0 0
      %2051 = vmatprep.mubr.bf16.mxu0 0
      %2052 = vmatmul.mubr.bf16.gmra.mrb[0].mxu0 %v1993
      %v2053 = vpop.f32.mrb[0].mxu0
      %v2054 = vadd.f32 0.0, %v2053
      %v2055 = vpop.f32.mrb[0].mxu0
      %v2056 = vpop.f32.mrb[0].mxu0
      %v2057 = vadd.f32 0.0, %v2056
      %v2058 = vpop.f32.mrb[0].mxu0
      %2059 = vmatprep.mubr.bf16.mxu0 0
      %2060 = vmatmul.mubr.bf16.gmra.mrb[0].mxu0 %v1996
      %v2061 = vpop.f32.mrb[0].mxu0
      %v2062 = vadd.f32 0.0, %v2061
      %v2063 = vpop.f32.mrb[0].mxu0
      %v2064 = vpop.f32.mrb[0].mxu0
      %v2065 = vadd.f32 0.0, %v2064
      %v2066 = vpop.f32.mrb[0].mxu0
      %2067 = vmatprep.mubr.bf16.mxu0 0
      %2068 = vmatmul.mubr.bf16.gmra.mrb[0].mxu0 %v1999
      %v2069 = vpop.f32.mrb[0].mxu0
      %v2070 = vadd.f32 0.0, %v2069
      %v2071 = vpop.f32.mrb[0].mxu0
      %v2072 = vpop.f32.mrb[0].mxu0
      %v2073 = vadd.f32 0.0, %v2072
      %v2074 = vpop.f32.mrb[0].mxu0
      %2075 = vmatprep.mubr.bf16.mxu0 0
      %2076 = vmatmul.mubr.bf16.gmra.mrb[0].mxu0 %v2002
      %v2077 = vpop.f32.mrb[0].mxu0
      %v2078 = vadd.f32 0.0, %v2077
      %v2079 = vpop.f32.mrb[0].mxu0
      %v2080 = vpop.f32.mrb[0].mxu0
      %v2081 = vadd.f32 0.0, %v2080
      %v2082 = vpop.f32.mrb[0].mxu0
      %2083 = vmatprep.mubr.bf16.mxu0 0
      %2084 = vmatmul.mubr.bf16.gmra.mrb[0].mxu0 %v2005
      %v2085 = vpop.f32.mrb[0].mxu0
      %v2086 = vadd.f32 0.0, %v2085
      %v2087 = vpop.f32.mrb[0].mxu0
      %v2088 = vpop.f32.mrb[0].mxu0
      %v2089 = vadd.f32 0.0, %v2088
      %v2090 = vpop.f32.mrb[0].mxu0
      %2091 = vmatprep.mubr.bf16.mxu0 0
      %2092 = vmatmul.mubr.bf16.gmra.mrb[0].mxu0 %v2008
      %v2093 = vpop.f32.mrb[0].mxu0
      %v2094 = vadd.f32 0.0, %v2093
      %v2095 = vpop.f32.mrb[0].mxu0
      %v2096 = vpop.f32.mrb[0].mxu0
      %v2097 = vadd.f32 0.0, %v2096
      %v2098 = vpop.f32.mrb[0].mxu0
      %2099 = vmatprep.mubr.bf16.mxu0 0
      %2100 = vmatmul.mubr.bf16.gmra.mrb[0].mxu0 %v2011
      %v2101 = vpop.f32.mrb[0].mxu0
      %v2102 = vadd.f32 0.0, %v2101
      %v2103 = vpop.f32.mrb[0].mxu0
      %v2104 = vpop.f32.mrb[0].mxu0
      %v2105 = vadd.f32 0.0, %v2104
      %v2106 = vpop.f32.mrb[0].mxu0
      %2107 = vmatprep.mubr.bf16.mxu0 0
      %2108 = vmatmul.mubr.bf16.gmra.mrb[0].mxu0 %v2014
      %v2109 = vpop.f32.mrb[0].mxu0
      %v2110 = vadd.f32 0.0, %v2109
      %v2111 = vpop.f32.mrb[0].mxu0
      %v2112 = vpop.f32.mrb[0].mxu0
      %v2113 = vadd.f32 0.0, %v2112
      %v2114 = vpop.f32.mrb[0].mxu0
      %2115 = vdwg.mxu0
      %v2116 = vadd.f32 %v1807, %v2054
      %v2117 = vadd.f32 %v1808, %v2057
      %v2118 = vadd.f32 %v1809, %v2062
      %v2119 = vadd.f32 %v1810, %v2065
      %v2120 = vadd.f32 %v1811, %v2070
      %v2121 = vadd.f32 %v1812, %v2073
      %v2122 = vadd.f32 %v1813, %v2078
      %v2123 = vadd.f32 %v1814, %v2081
      %v2124 = vadd.f32 %v1815, %v2086
      %v2125 = vadd.f32 %v1816, %v2089
      %v2126 = vadd.f32 %v1817, %v2094
      %v2127 = vadd.f32 %v1818, %v2097
      %v2128 = vadd.f32 %v1819, %v2102
      %v2129 = vadd.f32 %v1820, %v2105
      %v2130 = vadd.f32 %v1821, %v2110
      %v2131 = vadd.f32 %v1822, %v2113
      %v2132 = vpack.c.bf16 %v1968, %v1967
      %v2133 = vpack.c.bf16 %v1970, %v1969
      %v2134 = vpack.c.bf16 %v1972, %v1971
      %v2135 = vpack.c.bf16 %v1974, %v1973
      %v2136 = vpack.c.bf16 %v1976, %v1975
      %v2137 = vpack.c.bf16 %v1978, %v1977
      %v2138 = vpack.c.bf16 %v1980, %v1979
      %v2139 = vpack.c.bf16 %v1982, %v1981
      %v2140 = vld [vmem:[%s6] sm:$0xf]
      %v2142 = vsel %vm940, %v2132, 0
      %v2145 = vsel %vm940, %v2133, 0
      %v2148 = vsel %vm940, %v2134, 0
      %v2151 = vsel %vm940, %v2135, 0
      %v2154 = vsel %vm940, %v2136, 0
      %v2157 = vsel %vm940, %v2137, 0
      %v2160 = vsel %vm940, %v2138, 0
      %v2163 = vsel %vm940, %v2139, 0
      %v2166 = vsel %vm968, %v2140, 0
      %2168 = vmatprep.subr.bf16.mxu0 0
      %2169 = vmatpush1.bf16.msra.mxu0 %v2166
      %2170 = vmatprep.subr.bf16.mxu0 0
      %2171 = vmatpush1.bf16.msra.mxu0 0
      %2172 = vmatprep.subr.bf16.mxu0 0
      %2173 = vmatpush1.bf16.msra.mxu0 0
      %2174 = vmatprep.subr.bf16.mxu0 0
      %2175 = vmatpush1.bf16.msra.mxu0 0
      %2176 = vmatprep.subr.bf16.mxu0 0
      %2177 = vmatpush1.bf16.msra.mxu0 0
      %2178 = vmatprep.subr.bf16.mxu0 0
      %2179 = vmatpush1.bf16.msra.mxu0 0
      %2180 = vmatprep.subr.bf16.mxu0 0
      %2181 = vmatpush1.bf16.msra.mxu0 0
      %2182 = vmatprep.subr.bf16.mxu0 0
      %2183 = vmatpush1.bf16.msra.mxu0 0
      %2184 = vmatprep.subr.bf16.mxu0 0
      %2185 = vmatpush1.bf16.msra.mxu0 0
      %2186 = vmatprep.subr.bf16.mxu0 0
      %2187 = vmatpush1.bf16.msra.mxu0 0
      %2188 = vmatprep.subr.bf16.mxu0 0
      %2189 = vmatpush1.bf16.msra.mxu0 0
      %2190 = vmatprep.subr.bf16.mxu0 0
      %2191 = vmatpush1.bf16.msra.mxu0 0
      %2192 = vmatprep.subr.bf16.mxu0 0
      %2193 = vmatpush1.bf16.msra.mxu0 0
      %2194 = vmatprep.subr.bf16.mxu0 0
      %2195 = vmatpush1.bf16.msra.mxu0 0
      %2196 = vmatprep.subr.bf16.mxu0 0
      %2197 = vmatpush1.bf16.msra.mxu0 0
      %2198 = vmatprep.subr.bf16.mxu0 0
      %2199 = vmatpush1.bf16.msra.mxu0 0
      %2200 = vmatprep.mubr.bf16.mxu0 0
      %2201 = vmatmul.mubr.bf16.gmra.mrb[0].mxu0 %v2142
      %v2202 = vpop.f32.mrb[0].mxu0
      %v2203 = vadd.f32 0.0, %v2202
      %v2204 = vpop.f32.mrb[0].mxu0
      %v2205 = vpop.f32.mrb[0].mxu0
      %v2206 = vadd.f32 0.0, %v2205
      %v2207 = vpop.f32.mrb[0].mxu0
      %2208 = vmatprep.mubr.bf16.mxu0 0
      %2209 = vmatmul.mubr.bf16.gmra.mrb[0].mxu0 %v2145
      %v2210 = vpop.f32.mrb[0].mxu0
      %v2211 = vadd.f32 0.0, %v2210
      %v2212 = vpop.f32.mrb[0].mxu0
      %v2213 = vpop.f32.mrb[0].mxu0
      %v2214 = vadd.f32 0.0, %v2213
      %v2215 = vpop.f32.mrb[0].mxu0
      %2216 = vmatprep.mubr.bf16.mxu0 0
      %2217 = vmatmul.mubr.bf16.gmra.mrb[0].mxu0 %v2148
      %v2218 = vpop.f32.mrb[0].mxu0
      %v2219 = vadd.f32 0.0, %v2218
      %v2220 = vpop.f32.mrb[0].mxu0
      %v2221 = vpop.f32.mrb[0].mxu0
      %v2222 = vadd.f32 0.0, %v2221
      %v2223 = vpop.f32.mrb[0].mxu0
      %2224 = vmatprep.mubr.bf16.mxu0 0
      %2225 = vmatmul.mubr.bf16.gmra.mrb[0].mxu0 %v2151
      %v2226 = vpop.f32.mrb[0].mxu0
      %v2227 = vadd.f32 0.0, %v2226
      %v2228 = vpop.f32.mrb[0].mxu0
      %v2229 = vpop.f32.mrb[0].mxu0
      %v2230 = vadd.f32 0.0, %v2229
      %v2231 = vpop.f32.mrb[0].mxu0
      %2232 = vmatprep.mubr.bf16.mxu0 0
      %2233 = vmatmul.mubr.bf16.gmra.mrb[0].mxu0 %v2154
      %v2234 = vpop.f32.mrb[0].mxu0
      %v2235 = vadd.f32 0.0, %v2234
      %v2236 = vpop.f32.mrb[0].mxu0
      %v2237 = vpop.f32.mrb[0].mxu0
      %v2238 = vadd.f32 0.0, %v2237
      %v2239 = vpop.f32.mrb[0].mxu0
      %2240 = vmatprep.mubr.bf16.mxu0 0
      %2241 = vmatmul.mubr.bf16.gmra.mrb[0].mxu0 %v2157
      %v2242 = vpop.f32.mrb[0].mxu0
      %v2243 = vadd.f32 0.0, %v2242
      %v2244 = vpop.f32.mrb[0].mxu0
      %v2245 = vpop.f32.mrb[0].mxu0
      %v2246 = vadd.f32 0.0, %v2245
      %v2247 = vpop.f32.mrb[0].mxu0
      %2248 = vmatprep.mubr.bf16.mxu0 0
      %2249 = vmatmul.mubr.bf16.gmra.mrb[0].mxu0 %v2160
      %v2250 = vpop.f32.mrb[0].mxu0
      %v2251 = vadd.f32 0.0, %v2250
      %v2252 = vpop.f32.mrb[0].mxu0
      %v2253 = vpop.f32.mrb[0].mxu0
      %v2254 = vadd.f32 0.0, %v2253
      %v2255 = vpop.f32.mrb[0].mxu0
      %2256 = vmatprep.mubr.bf16.mxu0 0
      %2257 = vmatmul.mubr.bf16.gmra.mrb[0].mxu0 %v2163
      %v2258 = vpop.f32.mrb[0].mxu0
      %v2259 = vadd.f32 0.0, %v2258
      %v2260 = vpop.f32.mrb[0].mxu0
      %v2261 = vpop.f32.mrb[0].mxu0
      %v2262 = vadd.f32 0.0, %v2261
      %v2263 = vpop.f32.mrb[0].mxu0
      %2264 = vdwg.mxu0
      %v2265 = vadd.f32 %v2116, %v2203
      %v2266 = vadd.f32 %v2117, %v2206
      %v2267 = vadd.f32 %v2118, %v2211
      %v2268 = vadd.f32 %v2119, %v2214
      %v2269 = vadd.f32 %v2120, %v2219
      %v2270 = vadd.f32 %v2121, %v2222
      %v2271 = vadd.f32 %v2122, %v2227
      %v2272 = vadd.f32 %v2123, %v2230
      %v2273 = vadd.f32 %v2124, %v2235
      %v2274 = vadd.f32 %v2125, %v2238
      %v2275 = vadd.f32 %v2126, %v2243
      %v2276 = vadd.f32 %v2127, %v2246
      %v2277 = vadd.f32 %v2128, %v2251
      %v2278 = vadd.f32 %v2129, %v2254
      %v2279 = vadd.f32 %v2130, %v2259
      %v2280 = vadd.f32 %v2131, %v2262
      %v2281 = vld [vmem:[%s7] sm:$0x1]
      %v2283 = vlaneseq
      %v2284 = vshrl.u32 %v2283, 7
      %v2285 = vsub.s32 0, %v2284
      %v2286 = vrot.slane %v2281, %v2285
      %v2288 = vadd.f32 %v2265, %v2286
      %v2289 = vadd.f32 %v2266, %v2286
      %v2290 = vadd.f32 %v2267, %v2286
      %v2291 = vadd.f32 %v2268, %v2286
      %v2292 = vadd.f32 %v2269, %v2286
      %v2293 = vadd.f32 %v2270, %v2286
      %v2294 = vadd.f32 %v2271, %v2286
      %v2295 = vadd.f32 %v2272, %v2286
      %v2296 = vadd.f32 %v2273, %v2286
      %v2297 = vadd.f32 %v2274, %v2286
      %v2298 = vadd.f32 %v2275, %v2286
      %v2299 = vadd.f32 %v2276, %v2286
      %v2300 = vadd.f32 %v2277, %v2286
      %v2301 = vadd.f32 %v2278, %v2286
      %v2302 = vadd.f32 %v2279, %v2286
      %v2303 = vadd.f32 %v2280, %v2286
      %v2304 = vld [vmem:[#allocation3] sm:$0xff]
      %v2305 = vld [vmem:[#allocation3 + $0x8] sm:$0xff]
      %2306 = vst.msk [vmem:[#allocation2] sm:$0xff] %vm940, %v754
      %2307 = vst.msk [vmem:[#allocation2 + $0x8] sm:$0xff] %vm940, %v755
      %2308 = vst.msk [vmem:[#allocation3] sm:$0xff] %vm940, %v2302
      %2309 = vst.msk [vmem:[#allocation3 + $0x8] sm:$0xff] %vm940, %v2303
      %v2310 = vand.u32 2147483647, %v2304
      %v2311 = vand.u32 2147483647, %v2305
      %v2312 = vand.u32 2147483647, %v2288
      %v2313 = vand.u32 2147483647, %v2289
      %v2314 = vand.u32 2147483647, %v2290
      %v2315 = vand.u32 2147483647, %v2291
      %v2316 = vand.u32 2147483647, %v2292
      %v2317 = vand.u32 2147483647, %v2293
      %v2318 = vand.u32 2147483647, %v2294
      %v2319 = vand.u32 2147483647, %v2295
      %v2320 = vand.u32 2147483647, %v2296
      %v2321 = vand.u32 2147483647, %v2297
      %v2322 = vand.u32 2147483647, %v2298
      %v2323 = vand.u32 2147483647, %v2299
      %v2324 = vand.u32 2147483647, %v2300
      %v2325 = vand.u32 2147483647, %v2301
      %v2326 = vand.u32 2147483647, %v2302
      %v2327 = vand.u32 2147483647, %v2303
      %v2328 = vsub.f32 0.0, %v2310
      %v2329 = vsub.f32 0.0, %v2311
      %v2330 = vsub.f32 0.0, %v2312
      %v2331 = vsub.f32 0.0, %v2313
      %v2332 = vsub.f32 0.0, %v2314
      %v2333 = vsub.f32 0.0, %v2315
      %v2334 = vsub.f32 0.0, %v2316
      %v2335 = vsub.f32 0.0, %v2317
      %v2336 = vsub.f32 0.0, %v2318
      %v2337 = vsub.f32 0.0, %v2319
      %v2338 = vsub.f32 0.0, %v2320
      %v2339 = vsub.f32 0.0, %v2321
      %v2340 = vsub.f32 0.0, %v2322
      %v2341 = vsub.f32 0.0, %v2323
      %v2342 = vsub.f32 0.0, %v2324
      %v2343 = vsub.f32 0.0, %v2325
      %v2344 = vsub.f32 0.0, %v2326
      %v2345 = vsub.f32 0.0, %v2327
      %v2346 = vmul.f32 %v2328, 1.442695
      %v2347 = vpow.pop %v2346
      %v2348 = vmul.f32 %v2329, 1.442695
      %v2349 = vpow.pop %v2348
      %v2350 = vmul.f32 %v2330, 1.442695
      %v2351 = vpow.pop %v2350
      %v2352 = vmul.f32 %v2331, 1.442695
      %v2353 = vpow.pop %v2352
      %v2354 = vmul.f32 %v2332, 1.442695
      %v2355 = vpow.pop %v2354
      %v2356 = vmul.f32 %v2333, 1.442695
      %v2357 = vpow.pop %v2356
      %v2358 = vmul.f32 %v2334, 1.442695
      %v2359 = vpow.pop %v2358
      %v2360 = vmul.f32 %v2335, 1.442695
      %v2361 = vpow.pop %v2360
      %v2362 = vmul.f32 %v2336, 1.442695
      %v2363 = vpow.pop %v2362
      %v2364 = vmul.f32 %v2337, 1.442695
      %v2365 = vpow.pop %v2364
      %v2366 = vmul.f32 %v2338, 1.442695
      %v2367 = vpow.pop %v2366
      %v2368 = vmul.f32 %v2339, 1.442695
      %v2369 = vpow.pop %v2368
      %v2370 = vmul.f32 %v2340, 1.442695
      %v2371 = vpow.pop %v2370
      %v2372 = vmul.f32 %v2341, 1.442695
      %v2373 = vpow.pop %v2372
      %v2374 = vmul.f32 %v2342, 1.442695
      %v2375 = vpow.pop %v2374
      %v2376 = vmul.f32 %v2343, 1.442695
      %v2377 = vpow.pop %v2376
      %v2378 = vmul.f32 %v2344, 1.442695
      %v2379 = vpow.pop %v2378
      %v2380 = vmul.f32 %v2345, 1.442695
      %v2381 = vpow.pop %v2380
      %v2382 = vsub.f32 %v2347, 1.0
      %v2383 = vsub.f32 %v2349, 1.0
      %v2384 = vsub.f32 %v2351, 1.0
      %v2385 = vsub.f32 %v2353, 1.0
      %v2386 = vsub.f32 %v2355, 1.0
      %v2387 = vsub.f32 %v2357, 1.0
      %v2388 = vsub.f32 %v2359, 1.0
      %v2389 = vsub.f32 %v2361, 1.0
      %v2390 = vsub.f32 %v2363, 1.0
      %v2391 = vsub.f32 %v2365, 1.0
      %v2392 = vsub.f32 %v2367, 1.0
      %v2393 = vsub.f32 %v2369, 1.0
      %v2394 = vsub.f32 %v2371, 1.0
      %v2395 = vsub.f32 %v2373, 1.0
      %v2396 = vsub.f32 %v2375, 1.0
      %v2397 = vsub.f32 %v2377, 1.0
      %v2398 = vsub.f32 %v2379, 1.0
      %v2399 = vsub.f32 %v2381, 1.0
      %vm2400 = vcmp.gt.f32.partialorder %v2304, 0.0
      %vm2401 = vcmp.gt.f32.partialorder %v2305, 0.0
      %vm2402 = vcmp.gt.f32.partialorder %v2288, 0.0
      %vm2403 = vcmp.gt.f32.partialorder %v2289, 0.0
      %vm2404 = vcmp.gt.f32.partialorder %v2290, 0.0
      %vm2405 = vcmp.gt.f32.partialorder %v2291, 0.0
      %vm2406 = vcmp.gt.f32.partialorder %v2292, 0.0
      %vm2407 = vcmp.gt.f32.partialorder %v2293, 0.0
      %vm2408 = vcmp.gt.f32.partialorder %v2294, 0.0
      %vm2409 = vcmp.gt.f32.partialorder %v2295, 0.0
      %vm2410 = vcmp.gt.f32.partialorder %v2296, 0.0
      %vm2411 = vcmp.gt.f32.partialorder %v2297, 0.0
      %vm2412 = vcmp.gt.f32.partialorder %v2298, 0.0
      %vm2413 = vcmp.gt.f32.partialorder %v2299, 0.0
      %vm2414 = vcmp.gt.f32.partialorder %v2300, 0.0
      %vm2415 = vcmp.gt.f32.partialorder %v2301, 0.0
      %vm2416 = vcmp.gt.f32.partialorder %v2302, 0.0
      %vm2417 = vcmp.gt.f32.partialorder %v2303, 0.0
      %v2418 = vsel %vm2400, %v2304, %v2382
      %v2419 = vsel %vm2401, %v2305, %v2383
      %v2420 = vsel %vm2402, %v2288, %v2384
      %v2421 = vsel %vm2403, %v2289, %v2385
      %v2422 = vsel %vm2404, %v2290, %v2386
      %v2423 = vsel %vm2405, %v2291, %v2387
      %v2424 = vsel %vm2406, %v2292, %v2388
      %v2425 = vsel %vm2407, %v2293, %v2389
      %v2426 = vsel %vm2408, %v2294, %v2390
      %v2427 = vsel %vm2409, %v2295, %v2391
      %v2428 = vsel %vm2410, %v2296, %v2392
      %v2429 = vsel %vm2411, %v2297, %v2393
      %v2430 = vsel %vm2412, %v2298, %v2394
      %v2431 = vsel %vm2413, %v2299, %v2395
      %v2432 = vsel %vm2414, %v2300, %v2396
      %v2433 = vsel %vm2415, %v2301, %v2397
      %v2434 = vsel %vm2416, %v2302, %v2398
      %v2435 = vsel %vm2417, %v2303, %v2399
      %v2436 = vsub.f32 0.0, %v2304
      %v2437 = vsub.f32 0.0, %v2305
      %v2438 = vsub.f32 0.0, %v2288
      %v2439 = vsub.f32 0.0, %v2289
      %v2440 = vsub.f32 0.0, %v2290
      %v2441 = vsub.f32 0.0, %v2291
      %v2442 = vsub.f32 0.0, %v2292
      %v2443 = vsub.f32 0.0, %v2293
      %v2444 = vsub.f32 0.0, %v2294
      %v2445 = vsub.f32 0.0, %v2295
      %v2446 = vsub.f32 0.0, %v2296
      %v2447 = vsub.f32 0.0, %v2297
      %v2448 = vsub.f32 0.0, %v2298
      %v2449 = vsub.f32 0.0, %v2299
      %v2450 = vsub.f32 0.0, %v2300
      %v2451 = vsub.f32 0.0, %v2301
      %v2452 = vsub.f32 0.0, %v2302
      %v2453 = vsub.f32 0.0, %v2303
      %v2454 = vsel %vm2400, %v2382, %v2436
      %v2455 = vsel %vm2401, %v2383, %v2437
      %v2456 = vsel %vm2402, %v2384, %v2438
      %v2457 = vsel %vm2403, %v2385, %v2439
      %v2458 = vsel %vm2404, %v2386, %v2440
      %v2459 = vsel %vm2405, %v2387, %v2441
      %v2460 = vsel %vm2406, %v2388, %v2442
      %v2461 = vsel %vm2407, %v2389, %v2443
      %v2462 = vsel %vm2408, %v2390, %v2444
      %v2463 = vsel %vm2409, %v2391, %v2445
      %v2464 = vsel %vm2410, %v2392, %v2446
      %v2465 = vsel %vm2411, %v2393, %v2447
      %v2466 = vsel %vm2412, %v2394, %v2448
      %v2467 = vsel %vm2413, %v2395, %v2449
      %v2468 = vsel %vm2414, %v2396, %v2450
      %v2469 = vsel %vm2415, %v2397, %v2451
      %v2470 = vsel %vm2416, %v2398, %v2452
      %v2471 = vsel %vm2417, %v2399, %v2453
      %v2472 = vpack.c.bf16 %v2419, %v2418
      %v2473 = vpack.c.bf16 %v2421, %v2420
      %v2474 = vpack.c.bf16 %v2423, %v2422
      %v2475 = vpack.c.bf16 %v2425, %v2424
      %v2476 = vpack.c.bf16 %v2427, %v2426
      %v2477 = vpack.c.bf16 %v2429, %v2428
      %v2478 = vpack.c.bf16 %v2431, %v2430
      %v2479 = vpack.c.bf16 %v2433, %v2432
      %v2480 = vpack.c.bf16 %v2435, %v2434
      %v2481 = vld [vmem:[%s8] sm:$0xf]
      %v2482 = vpack.c.bf16 %v2455, %v2454
      %v2483 = vpack.c.bf16 %v2457, %v2456
      %v2484 = vpack.c.bf16 %v2459, %v2458
      %v2485 = vpack.c.bf16 %v2461, %v2460
      %v2486 = vpack.c.bf16 %v2463, %v2462
      %v2487 = vpack.c.bf16 %v2465, %v2464
      %v2488 = vpack.c.bf16 %v2467, %v2466
      %v2489 = vpack.c.bf16 %v2469, %v2468
      %v2490 = vpack.c.bf16 %v2471, %v2470
      %v2491 = vld [vmem:[%s9] sm:$0xf]
      %v2493 = vsel %vm940, %v2482, 0
      %v2496 = vsel %vm940, %v2483, 0
      %v2499 = vsel %vm940, %v2484, 0
      %v2502 = vsel %vm940, %v2485, 0
      %v2505 = vsel %vm940, %v2486, 0
      %v2508 = vsel %vm940, %v2487, 0
      %v2511 = vsel %vm940, %v2488, 0
      %v2514 = vsel %vm940, %v2489, 0
      %v2517 = vsel %vm940, %v2490, 0
      %v2520 = vsel %vm968, %v2491, 0
      %2522 = vmatprep.subr.bf16.mxu0 0
      %2523 = vmatpush1.bf16.msra.mxu0 %v2520
      %2524 = vmatprep.subr.bf16.mxu0 0
      %2525 = vmatpush1.bf16.msra.mxu0 0
      %2526 = vmatprep.subr.bf16.mxu0 0
      %2527 = vmatpush1.bf16.msra.mxu0 0
      %2528 = vmatprep.subr.bf16.mxu0 0
      %2529 = vmatpush1.bf16.msra.mxu0 0
      %2530 = vmatprep.subr.bf16.mxu0 0
      %2531 = vmatpush1.bf16.msra.mxu0 0
      %2532 = vmatprep.subr.bf16.mxu0 0
      %2533 = vmatpush1.bf16.msra.mxu0 0
      %2534 = vmatprep.subr.bf16.mxu0 0
      %2535 = vmatpush1.bf16.msra.mxu0 0
      %2536 = vmatprep.subr.bf16.mxu0 0
      %2537 = vmatpush1.bf16.msra.mxu0 0
      %2538 = vmatprep.subr.bf16.mxu0 0
      %2539 = vmatpush1.bf16.msra.mxu0 0
      %2540 = vmatprep.subr.bf16.mxu0 0
      %2541 = vmatpush1.bf16.msra.mxu0 0
      %2542 = vmatprep.subr.bf16.mxu0 0
      %2543 = vmatpush1.bf16.msra.mxu0 0
      %2544 = vmatprep.subr.bf16.mxu0 0
      %2545 = vmatpush1.bf16.msra.mxu0 0
      %2546 = vmatprep.subr.bf16.mxu0 0
      %2547 = vmatpush1.bf16.msra.mxu0 0
      %2548 = vmatprep.subr.bf16.mxu0 0
      %2549 = vmatpush1.bf16.msra.mxu0 0
      %2550 = vmatprep.subr.bf16.mxu0 0
      %2551 = vmatpush1.bf16.msra.mxu0 0
      %2552 = vmatprep.subr.bf16.mxu0 0
      %2553 = vmatpush1.bf16.msra.mxu0 0
      %2554 = vmatprep.mubr.bf16.mxu0 0
      %2555 = vmatmul.mubr.bf16.gmra.mrb[0].mxu0 %v2493
      %v2556 = vpop.f32.mrb[0].mxu0
      %v2557 = vadd.f32 0.0, %v2556
      %v2558 = vpop.f32.mrb[0].mxu0
      %v2559 = vpop.f32.mrb[0].mxu0
      %v2560 = vadd.f32 0.0, %v2559
      %v2561 = vpop.f32.mrb[0].mxu0
      %2562 = vmatprep.mubr.bf16.mxu0 0
      %2563 = vmatmul.mubr.bf16.gmra.mrb[0].mxu0 %v2496
      %v2564 = vpop.f32.mrb[0].mxu0
      %v2565 = vadd.f32 0.0, %v2564
      %v2566 = vpop.f32.mrb[0].mxu0
      %v2567 = vpop.f32.mrb[0].mxu0
      %v2568 = vadd.f32 0.0, %v2567
      %v2569 = vpop.f32.mrb[0].mxu0
      %2570 = vmatprep.mubr.bf16.mxu0 0
      %2571 = vmatmul.mubr.bf16.gmra.mrb[0].mxu0 %v2499
      %v2572 = vpop.f32.mrb[0].mxu0
      %v2573 = vadd.f32 0.0, %v2572
      %v2574 = vpop.f32.mrb[0].mxu0
      %v2575 = vpop.f32.mrb[0].mxu0
      %v2576 = vadd.f32 0.0, %v2575
      %v2577 = vpop.f32.mrb[0].mxu0
      %2578 = vmatprep.mubr.bf16.mxu0 0
      %2579 = vmatmul.mubr.bf16.gmra.mrb[0].mxu0 %v2502
      %v2580 = vpop.f32.mrb[0].mxu0
      %v2581 = vadd.f32 0.0, %v2580
      %v2582 = vpop.f32.mrb[0].mxu0
      %v2583 = vpop.f32.mrb[0].mxu0
      %v2584 = vadd.f32 0.0, %v2583
      %v2585 = vpop.f32.mrb[0].mxu0
      %2586 = vmatprep.mubr.bf16.mxu0 0
      %2587 = vmatmul.mubr.bf16.gmra.mrb[0].mxu0 %v2505
      %v2588 = vpop.f32.mrb[0].mxu0
      %v2589 = vadd.f32 0.0, %v2588
      %v2590 = vpop.f32.mrb[0].mxu0
      %v2591 = vpop.f32.mrb[0].mxu0
      %v2592 = vadd.f32 0.0, %v2591
      %v2593 = vpop.f32.mrb[0].mxu0
      %2594 = vmatprep.mubr.bf16.mxu0 0
      %2595 = vmatmul.mubr.bf16.gmra.mrb[0].mxu0 %v2508
      %v2596 = vpop.f32.mrb[0].mxu0
      %v2597 = vadd.f32 0.0, %v2596
      %v2598 = vpop.f32.mrb[0].mxu0
      %v2599 = vpop.f32.mrb[0].mxu0
      %v2600 = vadd.f32 0.0, %v2599
      %v2601 = vpop.f32.mrb[0].mxu0
      %2602 = vmatprep.mubr.bf16.mxu0 0
      %2603 = vmatmul.mubr.bf16.gmra.mrb[0].mxu0 %v2511
      %v2604 = vpop.f32.mrb[0].mxu0
      %v2605 = vadd.f32 0.0, %v2604
      %v2606 = vpop.f32.mrb[0].mxu0
      %v2607 = vpop.f32.mrb[0].mxu0
      %v2608 = vadd.f32 0.0, %v2607
      %v2609 = vpop.f32.mrb[0].mxu0
      %2610 = vmatprep.mubr.bf16.mxu0 0
      %2611 = vmatmul.mubr.bf16.gmra.mrb[0].mxu0 %v2514
      %v2612 = vpop.f32.mrb[0].mxu0
      %v2613 = vadd.f32 0.0, %v2612
      %v2614 = vpop.f32.mrb[0].mxu0
      %v2615 = vpop.f32.mrb[0].mxu0
      %v2616 = vadd.f32 0.0, %v2615
      %v2617 = vpop.f32.mrb[0].mxu0
      %2618 = vmatprep.mubr.bf16.mxu0 0
      %2619 = vmatmul.mubr.bf16.gmra.mrb[0].mxu0 %v2517
      %v2620 = vpop.f32.mrb[0].mxu0
      %v2621 = vadd.f32 0.0, %v2620
      %v2622 = vpop.f32.mrb[0].mxu0
      %v2623 = vpop.f32.mrb[0].mxu0
      %v2624 = vadd.f32 0.0, %v2623
      %v2625 = vpop.f32.mrb[0].mxu0
      %2626 = vdwg.mxu0
      %v2628 = vsel %vm940, %v2472, 0
      %v2631 = vsel %vm940, %v2473, 0
      %v2634 = vsel %vm940, %v2474, 0
      %v2637 = vsel %vm940, %v2475, 0
      %v2640 = vsel %vm940, %v2476, 0
      %v2643 = vsel %vm940, %v2477, 0
      %v2646 = vsel %vm940, %v2478, 0
      %v2649 = vsel %vm940, %v2479, 0
      %v2652 = vsel %vm940, %v2480, 0
      %v2655 = vsel %vm968, %v2481, 0
      %2657 = vmatprep.subr.bf16.mxu0 0
      %2658 = vmatpush1.bf16.msra.mxu0 %v2655
      %2659 = vmatprep.subr.bf16.mxu0 0
      %2660 = vmatpush1.bf16.msra.mxu0 0
      %2661 = vmatprep.subr.bf16.mxu0 0
      %2662 = vmatpush1.bf16.msra.mxu0 0
      %2663 = vmatprep.subr.bf16.mxu0 0
      %2664 = vmatpush1.bf16.msra.mxu0 0
      %2665 = vmatprep.subr.bf16.mxu0 0
      %2666 = vmatpush1.bf16.msra.mxu0 0
      %2667 = vmatprep.subr.bf16.mxu0 0
      %2668 = vmatpush1.bf16.msra.mxu0 0
      %2669 = vmatprep.subr.bf16.mxu0 0
      %2670 = vmatpush1.bf16.msra.mxu0 0
      %2671 = vmatprep.subr.bf16.mxu0 0
      %2672 = vmatpush1.bf16.msra.mxu0 0
      %2673 = vmatprep.subr.bf16.mxu0 0
      %2674 = vmatpush1.bf16.msra.mxu0 0
      %2675 = vmatprep.subr.bf16.mxu0 0
      %2676 = vmatpush1.bf16.msra.mxu0 0
      %2677 = vmatprep.subr.bf16.mxu0 0
      %2678 = vmatpush1.bf16.msra.mxu0 0
      %2679 = vmatprep.subr.bf16.mxu0 0
      %2680 = vmatpush1.bf16.msra.mxu0 0
      %2681 = vmatprep.subr.bf16.mxu0 0
      %2682 = vmatpush1.bf16.msra.mxu0 0
      %2683 = vmatprep.subr.bf16.mxu0 0
      %2684 = vmatpush1.bf16.msra.mxu0 0
      %2685 = vmatprep.subr.bf16.mxu0 0
      %2686 = vmatpush1.bf16.msra.mxu0 0
      %2687 = vmatprep.subr.bf16.mxu0 0
      %2688 = vmatpush1.bf16.msra.mxu0 0
      %2689 = vmatprep.mubr.bf16.mxu0 0
      %2690 = vmatmul.mubr.bf16.gmra.mrb[0].mxu0 %v2628
      %v2691 = vpop.f32.mrb[0].mxu0
      %v2692 = vadd.f32 %v2557, %v2691
      %v2693 = vpop.f32.mrb[0].mxu0
      %v2694 = vpop.f32.mrb[0].mxu0
      %v2695 = vadd.f32 %v2560, %v2694
      %v2696 = vpop.f32.mrb[0].mxu0
      %2697 = vmatprep.mubr.bf16.mxu0 0
      %2698 = vmatmul.mubr.bf16.gmra.mrb[0].mxu0 %v2631
      %v2699 = vpop.f32.mrb[0].mxu0
      %v2700 = vadd.f32 %v2565, %v2699
      %v2701 = vpop.f32.mrb[0].mxu0
      %v2702 = vpop.f32.mrb[0].mxu0
      %v2703 = vadd.f32 %v2568, %v2702
      %v2704 = vpop.f32.mrb[0].mxu0
      %2705 = vmatprep.mubr.bf16.mxu0 0
      %2706 = vmatmul.mubr.bf16.gmra.mrb[0].mxu0 %v2634
      %v2707 = vpop.f32.mrb[0].mxu0
      %v2708 = vadd.f32 %v2573, %v2707
      %v2709 = vpop.f32.mrb[0].mxu0
      %v2710 = vpop.f32.mrb[0].mxu0
      %v2711 = vadd.f32 %v2576, %v2710
      %v2712 = vpop.f32.mrb[0].mxu0
      %2713 = vmatprep.mubr.bf16.mxu0 0
      %2714 = vmatmul.mubr.bf16.gmra.mrb[0].mxu0 %v2637
      %v2715 = vpop.f32.mrb[0].mxu0
      %v2716 = vadd.f32 %v2581, %v2715
      %v2717 = vpop.f32.mrb[0].mxu0
      %v2718 = vpop.f32.mrb[0].mxu0
      %v2719 = vadd.f32 %v2584, %v2718
      %v2720 = vpop.f32.mrb[0].mxu0
      %2721 = vmatprep.mubr.bf16.mxu0 0
      %2722 = vmatmul.mubr.bf16.gmra.mrb[0].mxu0 %v2640
      %v2723 = vpop.f32.mrb[0].mxu0
      %v2724 = vadd.f32 %v2589, %v2723
      %v2725 = vpop.f32.mrb[0].mxu0
      %v2726 = vpop.f32.mrb[0].mxu0
      %v2727 = vadd.f32 %v2592, %v2726
      %v2728 = vpop.f32.mrb[0].mxu0
      %2729 = vmatprep.mubr.bf16.mxu0 0
      %2730 = vmatmul.mubr.bf16.gmra.mrb[0].mxu0 %v2643
      %v2731 = vpop.f32.mrb[0].mxu0
      %v2732 = vadd.f32 %v2597, %v2731
      %v2733 = vpop.f32.mrb[0].mxu0
      %v2734 = vpop.f32.mrb[0].mxu0
      %v2735 = vadd.f32 %v2600, %v2734
      %v2736 = vpop.f32.mrb[0].mxu0
      %2737 = vmatprep.mubr.bf16.mxu0 0
      %2738 = vmatmul.mubr.bf16.gmra.mrb[0].mxu0 %v2646
      %v2739 = vpop.f32.mrb[0].mxu0
      %v2740 = vadd.f32 %v2605, %v2739
      %v2741 = vpop.f32.mrb[0].mxu0
      %v2742 = vpop.f32.mrb[0].mxu0
      %v2743 = vadd.f32 %v2608, %v2742
      %v2744 = vpop.f32.mrb[0].mxu0
      %2745 = vmatprep.mubr.bf16.mxu0 0
      %2746 = vmatmul.mubr.bf16.gmra.mrb[0].mxu0 %v2649
      %v2747 = vpop.f32.mrb[0].mxu0
      %v2748 = vadd.f32 %v2613, %v2747
      %v2749 = vpop.f32.mrb[0].mxu0
      %v2750 = vpop.f32.mrb[0].mxu0
      %v2751 = vadd.f32 %v2616, %v2750
      %v2752 = vpop.f32.mrb[0].mxu0
      %2753 = vmatprep.mubr.bf16.mxu0 0
      %2754 = vmatmul.mubr.bf16.gmra.mrb[0].mxu0 %v2652
      %v2755 = vpop.f32.mrb[0].mxu0
      %v2756 = vadd.f32 %v2621, %v2755
      %v2757 = vpop.f32.mrb[0].mxu0
      %v2758 = vpop.f32.mrb[0].mxu0
      %v2759 = vadd.f32 %v2624, %v2758
      %v2760 = vpop.f32.mrb[0].mxu0
      %2761 = vdwg.mxu0
      %v2778 = vrot.slane %v2692, 7
      %v2779 = vrot.slane %v2695, 7
      %v2780 = vsel %vm1228, %v2778, %v2779
      %v2781 = vrot.slane %v2700, 7
      %v2782 = vsel %vm1228, %v2779, %v2781
      %v2783 = vrot.slane %v2703, 7
      %v2784 = vsel %vm1228, %v2781, %v2783
      %v2785 = vrot.slane %v2708, 7
      %v2786 = vsel %vm1228, %v2783, %v2785
      %v2787 = vrot.slane %v2711, 7
      %v2788 = vsel %vm1228, %v2785, %v2787
      %v2789 = vrot.slane %v2716, 7
      %v2790 = vsel %vm1228, %v2787, %v2789
      %v2791 = vrot.slane %v2719, 7
      %v2792 = vsel %vm1228, %v2789, %v2791
      %v2793 = vrot.slane %v2724, 7
      %v2794 = vsel %vm1228, %v2791, %v2793
      %v2795 = vrot.slane %v2727, 7
      %v2796 = vsel %vm1228, %v2793, %v2795
      %v2797 = vrot.slane %v2732, 7
      %v2798 = vsel %vm1228, %v2795, %v2797
      %v2799 = vrot.slane %v2735, 7
      %v2800 = vsel %vm1228, %v2797, %v2799
      %v2801 = vrot.slane %v2740, 7
      %v2802 = vsel %vm1228, %v2799, %v2801
      %v2803 = vrot.slane %v2743, 7
      %v2804 = vsel %vm1228, %v2801, %v2803
      %v2805 = vrot.slane %v2748, 7
      %v2806 = vsel %vm1228, %v2803, %v2805
      %v2807 = vrot.slane %v2751, 7
      %v2808 = vsel %vm1228, %v2805, %v2807
      %v2825 = vsel %vm1228, 0.0, %v2778
      %v2826 = vsel %vm1293, %v2825, 0.0
      %v2827 = vsel %vm1294, %v2780, 0.0
      %v2828 = vsel %vm1295, %v2782, 0.0
      %v2829 = vsel %vm1296, %v2784, 0.0
      %v2830 = vsel %vm1297, %v2786, 0.0
      %v2831 = vsel %vm1298, %v2788, 0.0
      %v2832 = vsel %vm1299, %v2790, 0.0
      %v2833 = vsel %vm1300, %v2792, 0.0
      %v2834 = vsel %vm1301, %v2794, 0.0
      %v2835 = vsel %vm1302, %v2796, 0.0
      %v2836 = vsel %vm1303, %v2798, 0.0
      %v2837 = vsel %vm1304, %v2800, 0.0
      %v2838 = vsel %vm1305, %v2802, 0.0
      %v2839 = vsel %vm1306, %v2804, 0.0
      %v2840 = vsel %vm1307, %v2806, 0.0
      %v2841 = vsel %vm1308, %v2808, 0.0
      %2842 = vrot.lane.b32.xlu0 %v2692, 120
      %v2843 = vpop.permute.xlu0 %2842
      %2844 = vrot.lane.b32.xlu0 %v2695, 120
      %v2845 = vpop.permute.xlu0 %2844
      %2846 = vrot.lane.b32.xlu0 %v2700, 120
      %v2847 = vpop.permute.xlu0 %2846
      %2848 = vrot.lane.b32.xlu0 %v2703, 120
      %v2849 = vpop.permute.xlu0 %2848
      %2850 = vrot.lane.b32.xlu0 %v2708, 120
      %v2851 = vpop.permute.xlu0 %2850
      %2852 = vrot.lane.b32.xlu0 %v2711, 120
      %v2853 = vpop.permute.xlu0 %2852
      %2854 = vrot.lane.b32.xlu0 %v2716, 120
      %v2855 = vpop.permute.xlu0 %2854
      %2856 = vrot.lane.b32.xlu0 %v2719, 120
      %v2857 = vpop.permute.xlu0 %2856
      %2858 = vrot.lane.b32.xlu0 %v2724, 120
      %v2859 = vpop.permute.xlu0 %2858
      %2860 = vrot.lane.b32.xlu0 %v2727, 120
      %v2861 = vpop.permute.xlu0 %2860
      %2862 = vrot.lane.b32.xlu0 %v2732, 120
      %v2863 = vpop.permute.xlu0 %2862
      %2864 = vrot.lane.b32.xlu0 %v2735, 120
      %v2865 = vpop.permute.xlu0 %2864
      %2866 = vrot.lane.b32.xlu0 %v2740, 120
      %v2867 = vpop.permute.xlu0 %2866
      %2868 = vrot.lane.b32.xlu0 %v2743, 120
      %v2869 = vpop.permute.xlu0 %2868
      %2870 = vrot.lane.b32.xlu0 %v2748, 120
      %v2871 = vpop.permute.xlu0 %2870
      %2872 = vrot.lane.b32.xlu0 %v2751, 120
      %v2873 = vpop.permute.xlu0 %2872
      %v2890 = vadd.f32 %v2826, %v2843
      %v2891 = vadd.f32 %v2827, %v2845
      %v2892 = vadd.f32 %v2828, %v2847
      %v2893 = vadd.f32 %v2829, %v2849
      %v2894 = vadd.f32 %v2830, %v2851
      %v2895 = vadd.f32 %v2831, %v2853
      %v2896 = vadd.f32 %v2832, %v2855
      %v2897 = vadd.f32 %v2833, %v2857
      %v2898 = vadd.f32 %v2834, %v2859
      %v2899 = vadd.f32 %v2835, %v2861
      %v2900 = vadd.f32 %v2836, %v2863
      %v2901 = vadd.f32 %v2837, %v2865
      %v2902 = vadd.f32 %v2838, %v2867
      %v2903 = vadd.f32 %v2839, %v2869
      %v2904 = vadd.f32 %v2840, %v2871
      %v2905 = vadd.f32 %v2841, %v2873
      %v2907 = vrot.slane %v2692, 1
      %v2908 = vrot.slane %v2695, 1
      %v2909 = vsel %vm1422, %v2907, %v2908
      %v2910 = vrot.slane %v2700, 1
      %v2911 = vsel %vm1422, %v2908, %v2910
      %v2912 = vrot.slane %v2703, 1
      %v2913 = vsel %vm1422, %v2910, %v2912
      %v2914 = vrot.slane %v2708, 1
      %v2915 = vsel %vm1422, %v2912, %v2914
      %v2916 = vrot.slane %v2711, 1
      %v2917 = vsel %vm1422, %v2914, %v2916
      %v2918 = vrot.slane %v2716, 1
      %v2919 = vsel %vm1422, %v2916, %v2918
      %v2920 = vrot.slane %v2719, 1
      %v2921 = vsel %vm1422, %v2918, %v2920
      %v2922 = vrot.slane %v2724, 1
      %v2923 = vsel %vm1422, %v2920, %v2922
      %v2924 = vrot.slane %v2727, 1
      %v2925 = vsel %vm1422, %v2922, %v2924
      %v2926 = vrot.slane %v2732, 1
      %v2927 = vsel %vm1422, %v2924, %v2926
      %v2928 = vrot.slane %v2735, 1
      %v2929 = vsel %vm1422, %v2926, %v2928
      %v2930 = vrot.slane %v2740, 1
      %v2931 = vsel %vm1422, %v2928, %v2930
      %v2932 = vrot.slane %v2743, 1
      %v2933 = vsel %vm1422, %v2930, %v2932
      %v2934 = vrot.slane %v2748, 1
      %v2935 = vsel %vm1422, %v2932, %v2934
      %v2936 = vrot.slane %v2751, 1
      %v2937 = vsel %vm1422, %v2934, %v2936
      %v2938 = vrot.slane %v2756, 1
      %v2939 = vsel %vm1422, %v2936, %v2938
      %2940 = vrot.lane.b32.xlu0 %v2909, 112
      %v2941 = vpop.permute.xlu0 %2940
      %2942 = vrot.lane.b32.xlu0 %v2911, 112
      %v2943 = vpop.permute.xlu0 %2942
      %2944 = vrot.lane.b32.xlu0 %v2913, 112
      %v2945 = vpop.permute.xlu0 %2944
      %2946 = vrot.lane.b32.xlu0 %v2915, 112
      %v2947 = vpop.permute.xlu0 %2946
      %2948 = vrot.lane.b32.xlu0 %v2917, 112
      %v2949 = vpop.permute.xlu0 %2948
      %2950 = vrot.lane.b32.xlu0 %v2919, 112
      %v2951 = vpop.permute.xlu0 %2950
      %2952 = vrot.lane.b32.xlu0 %v2921, 112
      %v2953 = vpop.permute.xlu0 %2952
      %2954 = vrot.lane.b32.xlu0 %v2923, 112
      %v2955 = vpop.permute.xlu0 %2954
      %2956 = vrot.lane.b32.xlu0 %v2925, 112
      %v2957 = vpop.permute.xlu0 %2956
      %2958 = vrot.lane.b32.xlu0 %v2927, 112
      %v2959 = vpop.permute.xlu0 %2958
      %2960 = vrot.lane.b32.xlu0 %v2929, 112
      %v2961 = vpop.permute.xlu0 %2960
      %2962 = vrot.lane.b32.xlu0 %v2931, 112
      %v2963 = vpop.permute.xlu0 %2962
      %2964 = vrot.lane.b32.xlu0 %v2933, 112
      %v2965 = vpop.permute.xlu0 %2964
      %2966 = vrot.lane.b32.xlu0 %v2935, 112
      %v2967 = vpop.permute.xlu0 %2966
      %2968 = vrot.lane.b32.xlu0 %v2937, 112
      %v2969 = vpop.permute.xlu0 %2968
      %2970 = vrot.lane.b32.xlu0 %v2939, 112
      %v2971 = vpop.permute.xlu0 %2970
      %v2988 = vsel %vm1405, %v2941, 0.0
      %v2989 = vsel %vm1406, %v2943, 0.0
      %v2990 = vsel %vm1407, %v2945, 0.0
      %v2991 = vsel %vm1408, %v2947, 0.0
      %v2992 = vsel %vm1409, %v2949, 0.0
      %v2993 = vsel %vm1410, %v2951, 0.0
      %v2994 = vsel %vm1411, %v2953, 0.0
      %v2995 = vsel %vm1412, %v2955, 0.0
      %v2996 = vsel %vm1413, %v2957, 0.0
      %v2997 = vsel %vm1414, %v2959, 0.0
      %v2998 = vsel %vm1415, %v2961, 0.0
      %v2999 = vsel %vm1416, %v2963, 0.0
      %v3000 = vsel %vm1417, %v2965, 0.0
      %v3001 = vsel %vm1418, %v2967, 0.0
      %v3002 = vsel %vm1419, %v2969, 0.0
      %v3003 = vsel %vm1420, %v2971, 0.0
      %v3004 = vadd.f32 %v2890, %v2988
      %v3005 = vadd.f32 %v2891, %v2989
      %v3006 = vadd.f32 %v2892, %v2990
      %v3007 = vadd.f32 %v2893, %v2991
      %v3008 = vadd.f32 %v2894, %v2992
      %v3009 = vadd.f32 %v2895, %v2993
      %v3010 = vadd.f32 %v2896, %v2994
      %v3011 = vadd.f32 %v2897, %v2995
      %v3012 = vadd.f32 %v2898, %v2996
      %v3013 = vadd.f32 %v2899, %v2997
      %v3014 = vadd.f32 %v2900, %v2998
      %v3015 = vadd.f32 %v2901, %v2999
      %v3016 = vadd.f32 %v2902, %v3000
      %v3017 = vadd.f32 %v2903, %v3001
      %v3018 = vadd.f32 %v2904, %v3002
      %v3019 = vadd.f32 %v2905, %v3003
      %v3021 = vrot.slane %v2756, 7
      %v3022 = vsel %vm1228, %v2807, %v3021
      %v3023 = vrot.slane %v2759, 7
      %v3024 = vsel %vm1228, %v3021, %v3023
      %3025 = vrot.lane.b32.xlu0 %v2782, 104
      %v3026 = vpop.permute.xlu0 %3025
      %3027 = vrot.lane.b32.xlu0 %v2784, 104
      %v3028 = vpop.permute.xlu0 %3027
      %3029 = vrot.lane.b32.xlu0 %v2786, 104
      %v3030 = vpop.permute.xlu0 %3029
      %3031 = vrot.lane.b32.xlu0 %v2788, 104
      %v3032 = vpop.permute.xlu0 %3031
      %3033 = vrot.lane.b32.xlu0 %v2790, 104
      %v3034 = vpop.permute.xlu0 %3033
      %3035 = vrot.lane.b32.xlu0 %v2792, 104
      %v3036 = vpop.permute.xlu0 %3035
      %3037 = vrot.lane.b32.xlu0 %v2794, 104
      %v3038 = vpop.permute.xlu0 %3037
      %3039 = vrot.lane.b32.xlu0 %v2796, 104
      %v3040 = vpop.permute.xlu0 %3039
      %3041 = vrot.lane.b32.xlu0 %v2798, 104
      %v3042 = vpop.permute.xlu0 %3041
      %3043 = vrot.lane.b32.xlu0 %v2800, 104
      %v3044 = vpop.permute.xlu0 %3043
      %3045 = vrot.lane.b32.xlu0 %v2802, 104
      %v3046 = vpop.permute.xlu0 %3045
      %3047 = vrot.lane.b32.xlu0 %v2804, 104
      %v3048 = vpop.permute.xlu0 %3047
      %3049 = vrot.lane.b32.xlu0 %v2806, 104
      %v3050 = vpop.permute.xlu0 %3049
      %3051 = vrot.lane.b32.xlu0 %v2808, 104
      %v3052 = vpop.permute.xlu0 %3051
      %3053 = vrot.lane.b32.xlu0 %v3022, 104
      %v3054 = vpop.permute.xlu0 %3053
      %3055 = vrot.lane.b32.xlu0 %v3024, 104
      %v3056 = vpop.permute.xlu0 %3055
      %v3073 = vsel %vm1293, %v3026, 0.0
      %v3074 = vsel %vm1294, %v3028, 0.0
      %v3075 = vsel %vm1295, %v3030, 0.0
      %v3076 = vsel %vm1296, %v3032, 0.0
      %v3077 = vsel %vm1297, %v3034, 0.0
      %v3078 = vsel %vm1298, %v3036, 0.0
      %v3079 = vsel %vm1299, %v3038, 0.0
      %v3080 = vsel %vm1300, %v3040, 0.0
      %v3081 = vsel %vm1301, %v3042, 0.0
      %v3082 = vsel %vm1302, %v3044, 0.0
      %v3083 = vsel %vm1303, %v3046, 0.0
      %v3084 = vsel %vm1304, %v3048, 0.0
      %v3085 = vsel %vm1305, %v3050, 0.0
      %v3086 = vsel %vm1306, %v3052, 0.0
      %v3087 = vsel %vm1307, %v3054, 0.0
      %v3088 = vsel %vm1308, %v3056, 0.0
      %v3089 = vadd.f32 %v3004, %v3073
      %v3090 = vadd.f32 %v3005, %v3074
      %v3091 = vadd.f32 %v3006, %v3075
      %v3092 = vadd.f32 %v3007, %v3076
      %v3093 = vadd.f32 %v3008, %v3077
      %v3094 = vadd.f32 %v3009, %v3078
      %v3095 = vadd.f32 %v3010, %v3079
      %v3096 = vadd.f32 %v3011, %v3080
      %v3097 = vadd.f32 %v3012, %v3081
      %v3098 = vadd.f32 %v3013, %v3082
      %v3099 = vadd.f32 %v3014, %v3083
      %v3100 = vadd.f32 %v3015, %v3084
      %v3101 = vadd.f32 %v3016, %v3085
      %v3102 = vadd.f32 %v3017, %v3086
      %v3103 = vadd.f32 %v3018, %v3087
      %v3104 = vadd.f32 %v3019, %v3088
      %3105 = vrot.lane.b32.xlu0 %v2700, 96
      %v3106 = vpop.permute.xlu0 %3105
      %3107 = vrot.lane.b32.xlu0 %v2703, 96
      %v3108 = vpop.permute.xlu0 %3107
      %3109 = vrot.lane.b32.xlu0 %v2708, 96
      %v3110 = vpop.permute.xlu0 %3109
      %3111 = vrot.lane.b32.xlu0 %v2711, 96
      %v3112 = vpop.permute.xlu0 %3111
      %3113 = vrot.lane.b32.xlu0 %v2716, 96
      %v3114 = vpop.permute.xlu0 %3113
      %3115 = vrot.lane.b32.xlu0 %v2719, 96
      %v3116 = vpop.permute.xlu0 %3115
      %3117 = vrot.lane.b32.xlu0 %v2724, 96
      %v3118 = vpop.permute.xlu0 %3117
      %3119 = vrot.lane.b32.xlu0 %v2727, 96
      %v3120 = vpop.permute.xlu0 %3119
      %3121 = vrot.lane.b32.xlu0 %v2732, 96
      %v3122 = vpop.permute.xlu0 %3121
      %3123 = vrot.lane.b32.xlu0 %v2735, 96
      %v3124 = vpop.permute.xlu0 %3123
      %3125 = vrot.lane.b32.xlu0 %v2740, 96
      %v3126 = vpop.permute.xlu0 %3125
      %3127 = vrot.lane.b32.xlu0 %v2743, 96
      %v3128 = vpop.permute.xlu0 %3127
      %3129 = vrot.lane.b32.xlu0 %v2748, 96
      %v3130 = vpop.permute.xlu0 %3129
      %3131 = vrot.lane.b32.xlu0 %v2751, 96
      %v3132 = vpop.permute.xlu0 %3131
      %3133 = vrot.lane.b32.xlu0 %v2756, 96
      %v3134 = vpop.permute.xlu0 %3133
      %3135 = vrot.lane.b32.xlu0 %v2759, 96
      %v3136 = vpop.permute.xlu0 %3135
      %v3153 = vadd.f32 %v3089, %v3106
      %v3154 = vadd.f32 %v3090, %v3108
      %v3155 = vadd.f32 %v3091, %v3110
      %v3156 = vadd.f32 %v3092, %v3112
      %v3157 = vadd.f32 %v3093, %v3114
      %v3158 = vadd.f32 %v3094, %v3116
      %v3159 = vadd.f32 %v3095, %v3118
      %v3160 = vadd.f32 %v3096, %v3120
      %v3161 = vadd.f32 %v3097, %v3122
      %v3162 = vadd.f32 %v3098, %v3124
      %v3163 = vadd.f32 %v3099, %v3126
      %v3164 = vadd.f32 %v3100, %v3128
      %v3165 = vadd.f32 %v3101, %v3130
      %v3166 = vadd.f32 %v3102, %v3132
      %v3167 = vadd.f32 %v3103, %v3134
      %v3168 = vadd.f32 %v3104, %v3136
      %v3169 = vrot.slane %v2759, 1
      %v3170 = vsel %vm1422, %v2938, %v3169
      %v3187 = vsel %vm1422, %v3169, 0.0
      %v3188 = vsel %vm1405, %v2913, 0.0
      %v3189 = vsel %vm1406, %v2915, 0.0
      %v3190 = vsel %vm1407, %v2917, 0.0
      %v3191 = vsel %vm1408, %v2919, 0.0
      %v3192 = vsel %vm1409, %v2921, 0.0
      %v3193 = vsel %vm1410, %v2923, 0.0
      %v3194 = vsel %vm1411, %v2925, 0.0
      %v3195 = vsel %vm1412, %v2927, 0.0
      %v3196 = vsel %vm1413, %v2929, 0.0
      %v3197 = vsel %vm1414, %v2931, 0.0
      %v3198 = vsel %vm1415, %v2933, 0.0
      %v3199 = vsel %vm1416, %v2935, 0.0
      %v3200 = vsel %vm1417, %v2937, 0.0
      %v3201 = vsel %vm1418, %v2939, 0.0
      %v3202 = vsel %vm1419, %v3170, 0.0
      %v3203 = vsel %vm1420, %v3187, 0.0
      %3220 = vrot.lane.b32.xlu0 %v3188, 88
      %v3221 = vpop.permute.xlu0 %3220
      %3222 = vrot.lane.b32.xlu0 %v3189, 88
      %v3223 = vpop.permute.xlu0 %3222
      %3224 = vrot.lane.b32.xlu0 %v3190, 88
      %v3225 = vpop.permute.xlu0 %3224
      %3226 = vrot.lane.b32.xlu0 %v3191, 88
      %v3227 = vpop.permute.xlu0 %3226
      %3228 = vrot.lane.b32.xlu0 %v3192, 88
      %v3229 = vpop.permute.xlu0 %3228
      %3230 = vrot.lane.b32.xlu0 %v3193, 88
      %v3231 = vpop.permute.xlu0 %3230
      %3232 = vrot.lane.b32.xlu0 %v3194, 88
      %v3233 = vpop.permute.xlu0 %3232
      %3234 = vrot.lane.b32.xlu0 %v3195, 88
      %v3235 = vpop.permute.xlu0 %3234
      %3236 = vrot.lane.b32.xlu0 %v3196, 88
      %v3237 = vpop.permute.xlu0 %3236
      %3238 = vrot.lane.b32.xlu0 %v3197, 88
      %v3239 = vpop.permute.xlu0 %3238
      %3240 = vrot.lane.b32.xlu0 %v3198, 88
      %v3241 = vpop.permute.xlu0 %3240
      %3242 = vrot.lane.b32.xlu0 %v3199, 88
      %v3243 = vpop.permute.xlu0 %3242
      %3244 = vrot.lane.b32.xlu0 %v3200, 88
      %v3245 = vpop.permute.xlu0 %3244
      %3246 = vrot.lane.b32.xlu0 %v3201, 88
      %v3247 = vpop.permute.xlu0 %3246
      %3248 = vrot.lane.b32.xlu0 %v3202, 88
      %v3249 = vpop.permute.xlu0 %3248
      %3250 = vrot.lane.b32.xlu0 %v3203, 88
      %v3251 = vpop.permute.xlu0 %3250
      %v3268 = vadd.f32 %v3153, %v3221
      %v3269 = vadd.f32 %v3154, %v3223
      %v3270 = vadd.f32 %v3155, %v3225
      %v3271 = vadd.f32 %v3156, %v3227
      %v3272 = vadd.f32 %v3157, %v3229
      %v3273 = vadd.f32 %v3158, %v3231
      %v3274 = vadd.f32 %v3159, %v3233
      %v3275 = vadd.f32 %v3160, %v3235
      %v3276 = vadd.f32 %v3161, %v3237
      %v3277 = vadd.f32 %v3162, %v3239
      %v3278 = vadd.f32 %v3163, %v3241
      %v3279 = vadd.f32 %v3164, %v3243
      %v3280 = vadd.f32 %v3165, %v3245
      %v3281 = vadd.f32 %v3166, %v3247
      %v3282 = vadd.f32 %v3167, %v3249
      %v3283 = vadd.f32 %v3168, %v3251
      %v3284 = vld [vmem:[%s10] sm:$0x1]
      %v3286 = vlaneseq
      %v3287 = vshrl.u32 %v3286, 7
      %v3288 = vsub.s32 0, %v3287
      %v3289 = vrot.slane %v3284, %v3288
      %v3291 = vadd.f32 %v3268, %v3289
      %v3292 = vadd.f32 %v3269, %v3289
      %v3293 = vadd.f32 %v3270, %v3289
      %v3294 = vadd.f32 %v3271, %v3289
      %v3295 = vadd.f32 %v3272, %v3289
      %v3296 = vadd.f32 %v3273, %v3289
      %v3297 = vadd.f32 %v3274, %v3289
      %v3298 = vadd.f32 %v3275, %v3289
      %v3299 = vadd.f32 %v3276, %v3289
      %v3300 = vadd.f32 %v3277, %v3289
      %v3301 = vadd.f32 %v3278, %v3289
      %v3302 = vadd.f32 %v3279, %v3289
      %v3303 = vadd.f32 %v3280, %v3289
      %v3304 = vadd.f32 %v3281, %v3289
      %v3305 = vadd.f32 %v3282, %v3289
      %v3306 = vadd.f32 %v3283, %v3289
      %3307 = vrot.lane.b32.xlu0 %v2778, 80
      %v3308 = vpop.permute.xlu0 %3307
      %3309 = vrot.lane.b32.xlu0 %v2780, 80
      %v3310 = vpop.permute.xlu0 %3309
      %3311 = vrot.lane.b32.xlu0 %v2782, 80
      %v3312 = vpop.permute.xlu0 %3311
      %3313 = vrot.lane.b32.xlu0 %v2784, 80
      %v3314 = vpop.permute.xlu0 %3313
      %3315 = vrot.lane.b32.xlu0 %v2786, 80
      %v3316 = vpop.permute.xlu0 %3315
      %3317 = vrot.lane.b32.xlu0 %v2788, 80
      %v3318 = vpop.permute.xlu0 %3317
      %3319 = vrot.lane.b32.xlu0 %v2790, 80
      %v3320 = vpop.permute.xlu0 %3319
      %3321 = vrot.lane.b32.xlu0 %v2792, 80
      %v3322 = vpop.permute.xlu0 %3321
      %3323 = vrot.lane.b32.xlu0 %v2794, 80
      %v3324 = vpop.permute.xlu0 %3323
      %3325 = vrot.lane.b32.xlu0 %v2796, 80
      %v3326 = vpop.permute.xlu0 %3325
      %3327 = vrot.lane.b32.xlu0 %v2798, 80
      %v3328 = vpop.permute.xlu0 %3327
      %3329 = vrot.lane.b32.xlu0 %v2800, 80
      %v3330 = vpop.permute.xlu0 %3329
      %3331 = vrot.lane.b32.xlu0 %v2802, 80
      %v3332 = vpop.permute.xlu0 %3331
      %3333 = vrot.lane.b32.xlu0 %v2804, 80
      %v3334 = vpop.permute.xlu0 %3333
      %3335 = vrot.lane.b32.xlu0 %v2806, 80
      %v3336 = vpop.permute.xlu0 %3335
      %3337 = vrot.lane.b32.xlu0 %v2808, 80
      %v3338 = vpop.permute.xlu0 %3337
      %v3355 = vsel %vm1228, 0.0, %v3308
      %v3356 = vsel %vm1293, %v3355, 0.0
      %v3357 = vsel %vm1294, %v3310, 0.0
      %v3358 = vsel %vm1295, %v3312, 0.0
      %v3359 = vsel %vm1296, %v3314, 0.0
      %v3360 = vsel %vm1297, %v3316, 0.0
      %v3361 = vsel %vm1298, %v3318, 0.0
      %v3362 = vsel %vm1299, %v3320, 0.0
      %v3363 = vsel %vm1300, %v3322, 0.0
      %v3364 = vsel %vm1301, %v3324, 0.0
      %v3365 = vsel %vm1302, %v3326, 0.0
      %v3366 = vsel %vm1303, %v3328, 0.0
      %v3367 = vsel %vm1304, %v3330, 0.0
      %v3368 = vsel %vm1305, %v3332, 0.0
      %v3369 = vsel %vm1306, %v3334, 0.0
      %v3370 = vsel %vm1307, %v3336, 0.0
      %v3371 = vsel %vm1308, %v3338, 0.0
      %3372 = vrot.lane.b32.xlu0 %v2692, 72
      %v3373 = vpop.permute.xlu0 %3372
      %3374 = vrot.lane.b32.xlu0 %v2695, 72
      %v3375 = vpop.permute.xlu0 %3374
      %3376 = vrot.lane.b32.xlu0 %v2700, 72
      %v3377 = vpop.permute.xlu0 %3376
      %3378 = vrot.lane.b32.xlu0 %v2703, 72
      %v3379 = vpop.permute.xlu0 %3378
      %3380 = vrot.lane.b32.xlu0 %v2708, 72
      %v3381 = vpop.permute.xlu0 %3380
      %3382 = vrot.lane.b32.xlu0 %v2711, 72
      %v3383 = vpop.permute.xlu0 %3382
      %3384 = vrot.lane.b32.xlu0 %v2716, 72
      %v3385 = vpop.permute.xlu0 %3384
      %3386 = vrot.lane.b32.xlu0 %v2719, 72
      %v3387 = vpop.permute.xlu0 %3386
      %3388 = vrot.lane.b32.xlu0 %v2724, 72
      %v3389 = vpop.permute.xlu0 %3388
      %3390 = vrot.lane.b32.xlu0 %v2727, 72
      %v3391 = vpop.permute.xlu0 %3390
      %3392 = vrot.lane.b32.xlu0 %v2732, 72
      %v3393 = vpop.permute.xlu0 %3392
      %3394 = vrot.lane.b32.xlu0 %v2735, 72
      %v3395 = vpop.permute.xlu0 %3394
      %3396 = vrot.lane.b32.xlu0 %v2740, 72
      %v3397 = vpop.permute.xlu0 %3396
      %3398 = vrot.lane.b32.xlu0 %v2743, 72
      %v3399 = vpop.permute.xlu0 %3398
      %3400 = vrot.lane.b32.xlu0 %v2748, 72
      %v3401 = vpop.permute.xlu0 %3400
      %3402 = vrot.lane.b32.xlu0 %v2751, 72
      %v3403 = vpop.permute.xlu0 %3402
      %v3420 = vadd.f32 %v3356, %v3373
      %v3421 = vadd.f32 %v3357, %v3375
      %v3422 = vadd.f32 %v3358, %v3377
      %v3423 = vadd.f32 %v3359, %v3379
      %v3424 = vadd.f32 %v3360, %v3381
      %v3425 = vadd.f32 %v3361, %v3383
      %v3426 = vadd.f32 %v3362, %v3385
      %v3427 = vadd.f32 %v3363, %v3387
      %v3428 = vadd.f32 %v3364, %v3389
      %v3429 = vadd.f32 %v3365, %v3391
      %v3430 = vadd.f32 %v3366, %v3393
      %v3431 = vadd.f32 %v3367, %v3395
      %v3432 = vadd.f32 %v3368, %v3397
      %v3433 = vadd.f32 %v3369, %v3399
      %v3434 = vadd.f32 %v3370, %v3401
      %v3435 = vadd.f32 %v3371, %v3403
      %3436 = vrot.lane.b32.xlu0 %v2909, 64
      %v3437 = vpop.permute.xlu0 %3436
      %3438 = vrot.lane.b32.xlu0 %v2911, 64
      %v3439 = vpop.permute.xlu0 %3438
      %3440 = vrot.lane.b32.xlu0 %v2913, 64
      %v3441 = vpop.permute.xlu0 %3440
      %3442 = vrot.lane.b32.xlu0 %v2915, 64
      %v3443 = vpop.permute.xlu0 %3442
      %3444 = vrot.lane.b32.xlu0 %v2917, 64
      %v3445 = vpop.permute.xlu0 %3444
      %3446 = vrot.lane.b32.xlu0 %v2919, 64
      %v3447 = vpop.permute.xlu0 %3446
      %3448 = vrot.lane.b32.xlu0 %v2921, 64
      %v3449 = vpop.permute.xlu0 %3448
      %3450 = vrot.lane.b32.xlu0 %v2923, 64
      %v3451 = vpop.permute.xlu0 %3450
      %3452 = vrot.lane.b32.xlu0 %v2925, 64
      %v3453 = vpop.permute.xlu0 %3452
      %3454 = vrot.lane.b32.xlu0 %v2927, 64
      %v3455 = vpop.permute.xlu0 %3454
      %3456 = vrot.lane.b32.xlu0 %v2929, 64
      %v3457 = vpop.permute.xlu0 %3456
      %3458 = vrot.lane.b32.xlu0 %v2931, 64
      %v3459 = vpop.permute.xlu0 %3458
      %3460 = vrot.lane.b32.xlu0 %v2933, 64
      %v3461 = vpop.permute.xlu0 %3460
      %3462 = vrot.lane.b32.xlu0 %v2935, 64
      %v3463 = vpop.permute.xlu0 %3462
      %3464 = vrot.lane.b32.xlu0 %v2937, 64
      %v3465 = vpop.permute.xlu0 %3464
      %3466 = vrot.lane.b32.xlu0 %v2939, 64
      %v3467 = vpop.permute.xlu0 %3466
      %v3484 = vsel %vm1405, %v3437, 0.0
      %v3485 = vsel %vm1406, %v3439, 0.0
      %v3486 = vsel %vm1407, %v3441, 0.0
      %v3487 = vsel %vm1408, %v3443, 0.0
      %v3488 = vsel %vm1409, %v3445, 0.0
      %v3489 = vsel %vm1410, %v3447, 0.0
      %v3490 = vsel %vm1411, %v3449, 0.0
      %v3491 = vsel %vm1412, %v3451, 0.0
      %v3492 = vsel %vm1413, %v3453, 0.0
      %v3493 = vsel %vm1414, %v3455, 0.0
      %v3494 = vsel %vm1415, %v3457, 0.0
      %v3495 = vsel %vm1416, %v3459, 0.0
      %v3496 = vsel %vm1417, %v3461, 0.0
      %v3497 = vsel %vm1418, %v3463, 0.0
      %v3498 = vsel %vm1419, %v3465, 0.0
      %v3499 = vsel %vm1420, %v3467, 0.0
      %v3500 = vadd.f32 %v3420, %v3484
      %v3501 = vadd.f32 %v3421, %v3485
      %v3502 = vadd.f32 %v3422, %v3486
      %v3503 = vadd.f32 %v3423, %v3487
      %v3504 = vadd.f32 %v3424, %v3488
      %v3505 = vadd.f32 %v3425, %v3489
      %v3506 = vadd.f32 %v3426, %v3490
      %v3507 = vadd.f32 %v3427, %v3491
      %v3508 = vadd.f32 %v3428, %v3492
      %v3509 = vadd.f32 %v3429, %v3493
      %v3510 = vadd.f32 %v3430, %v3494
      %v3511 = vadd.f32 %v3431, %v3495
      %v3512 = vadd.f32 %v3432, %v3496
      %v3513 = vadd.f32 %v3433, %v3497
      %v3514 = vadd.f32 %v3434, %v3498
      %v3515 = vadd.f32 %v3435, %v3499
      %3516 = vrot.lane.b32.xlu0 %v2782, 56
      %v3517 = vpop.permute.xlu0 %3516
      %3518 = vrot.lane.b32.xlu0 %v2784, 56
      %v3519 = vpop.permute.xlu0 %3518
      %3520 = vrot.lane.b32.xlu0 %v2786, 56
      %v3521 = vpop.permute.xlu0 %3520
      %3522 = vrot.lane.b32.xlu0 %v2788, 56
      %v3523 = vpop.permute.xlu0 %3522
      %3524 = vrot.lane.b32.xlu0 %v2790, 56
      %v3525 = vpop.permute.xlu0 %3524
      %3526 = vrot.lane.b32.xlu0 %v2792, 56
      %v3527 = vpop.permute.xlu0 %3526
      %3528 = vrot.lane.b32.xlu0 %v2794, 56
      %v3529 = vpop.permute.xlu0 %3528
      %3530 = vrot.lane.b32.xlu0 %v2796, 56
      %v3531 = vpop.permute.xlu0 %3530
      %3532 = vrot.lane.b32.xlu0 %v2798, 56
      %v3533 = vpop.permute.xlu0 %3532
      %3534 = vrot.lane.b32.xlu0 %v2800, 56
      %v3535 = vpop.permute.xlu0 %3534
      %3536 = vrot.lane.b32.xlu0 %v2802, 56
      %v3537 = vpop.permute.xlu0 %3536
      %3538 = vrot.lane.b32.xlu0 %v2804, 56
      %v3539 = vpop.permute.xlu0 %3538
      %3540 = vrot.lane.b32.xlu0 %v2806, 56
      %v3541 = vpop.permute.xlu0 %3540
      %3542 = vrot.lane.b32.xlu0 %v2808, 56
      %v3543 = vpop.permute.xlu0 %3542
      %3544 = vrot.lane.b32.xlu0 %v3022, 56
      %v3545 = vpop.permute.xlu0 %3544
      %3546 = vrot.lane.b32.xlu0 %v3024, 56
      %v3547 = vpop.permute.xlu0 %3546
      %v3564 = vsel %vm1293, %v3517, 0.0
      %v3565 = vsel %vm1294, %v3519, 0.0
      %v3566 = vsel %vm1295, %v3521, 0.0
      %v3567 = vsel %vm1296, %v3523, 0.0
      %v3568 = vsel %vm1297, %v3525, 0.0
      %v3569 = vsel %vm1298, %v3527, 0.0
      %v3570 = vsel %vm1299, %v3529, 0.0
      %v3571 = vsel %vm1300, %v3531, 0.0
      %v3572 = vsel %vm1301, %v3533, 0.0
      %v3573 = vsel %vm1302, %v3535, 0.0
      %v3574 = vsel %vm1303, %v3537, 0.0
      %v3575 = vsel %vm1304, %v3539, 0.0
      %v3576 = vsel %vm1305, %v3541, 0.0
      %v3577 = vsel %vm1306, %v3543, 0.0
      %v3578 = vsel %vm1307, %v3545, 0.0
      %v3579 = vsel %vm1308, %v3547, 0.0
      %v3580 = vadd.f32 %v3500, %v3564
      %v3581 = vadd.f32 %v3501, %v3565
      %v3582 = vadd.f32 %v3502, %v3566
      %v3583 = vadd.f32 %v3503, %v3567
      %v3584 = vadd.f32 %v3504, %v3568
      %v3585 = vadd.f32 %v3505, %v3569
      %v3586 = vadd.f32 %v3506, %v3570
      %v3587 = vadd.f32 %v3507, %v3571
      %v3588 = vadd.f32 %v3508, %v3572
      %v3589 = vadd.f32 %v3509, %v3573
      %v3590 = vadd.f32 %v3510, %v3574
      %v3591 = vadd.f32 %v3511, %v3575
      %v3592 = vadd.f32 %v3512, %v3576
      %v3593 = vadd.f32 %v3513, %v3577
      %v3594 = vadd.f32 %v3514, %v3578
      %v3595 = vadd.f32 %v3515, %v3579
      %3596 = vrot.lane.b32.xlu0 %v2700, 48
      %v3597 = vpop.permute.xlu0 %3596
      %3598 = vrot.lane.b32.xlu0 %v2703, 48
      %v3599 = vpop.permute.xlu0 %3598
      %3600 = vrot.lane.b32.xlu0 %v2708, 48
      %v3601 = vpop.permute.xlu0 %3600
      %3602 = vrot.lane.b32.xlu0 %v2711, 48
      %v3603 = vpop.permute.xlu0 %3602
      %3604 = vrot.lane.b32.xlu0 %v2716, 48
      %v3605 = vpop.permute.xlu0 %3604
      %3606 = vrot.lane.b32.xlu0 %v2719, 48
      %v3607 = vpop.permute.xlu0 %3606
      %3608 = vrot.lane.b32.xlu0 %v2724, 48
      %v3609 = vpop.permute.xlu0 %3608
      %3610 = vrot.lane.b32.xlu0 %v2727, 48
      %v3611 = vpop.permute.xlu0 %3610
      %3612 = vrot.lane.b32.xlu0 %v2732, 48
      %v3613 = vpop.permute.xlu0 %3612
      %3614 = vrot.lane.b32.xlu0 %v2735, 48
      %v3615 = vpop.permute.xlu0 %3614
      %3616 = vrot.lane.b32.xlu0 %v2740, 48
      %v3617 = vpop.permute.xlu0 %3616
      %3618 = vrot.lane.b32.xlu0 %v2743, 48
      %v3619 = vpop.permute.xlu0 %3618
      %3620 = vrot.lane.b32.xlu0 %v2748, 48
      %v3621 = vpop.permute.xlu0 %3620
      %3622 = vrot.lane.b32.xlu0 %v2751, 48
      %v3623 = vpop.permute.xlu0 %3622
      %3624 = vrot.lane.b32.xlu0 %v2756, 48
      %v3625 = vpop.permute.xlu0 %3624
      %3626 = vrot.lane.b32.xlu0 %v2759, 48
      %v3627 = vpop.permute.xlu0 %3626
      %v3644 = vadd.f32 %v3580, %v3597
      %v3645 = vadd.f32 %v3581, %v3599
      %v3646 = vadd.f32 %v3582, %v3601
      %v3647 = vadd.f32 %v3583, %v3603
      %v3648 = vadd.f32 %v3584, %v3605
      %v3649 = vadd.f32 %v3585, %v3607
      %v3650 = vadd.f32 %v3586, %v3609
      %v3651 = vadd.f32 %v3587, %v3611
      %v3652 = vadd.f32 %v3588, %v3613
      %v3653 = vadd.f32 %v3589, %v3615
      %v3654 = vadd.f32 %v3590, %v3617
      %v3655 = vadd.f32 %v3591, %v3619
      %v3656 = vadd.f32 %v3592, %v3621
      %v3657 = vadd.f32 %v3593, %v3623
      %v3658 = vadd.f32 %v3594, %v3625
      %v3659 = vadd.f32 %v3595, %v3627
      %3660 = vrot.lane.b32.xlu0 %v3188, 40
      %v3661 = vpop.permute.xlu0 %3660
      %3662 = vrot.lane.b32.xlu0 %v3189, 40
      %v3663 = vpop.permute.xlu0 %3662
      %3664 = vrot.lane.b32.xlu0 %v3190, 40
      %v3665 = vpop.permute.xlu0 %3664
      %3666 = vrot.lane.b32.xlu0 %v3191, 40
      %v3667 = vpop.permute.xlu0 %3666
      %3668 = vrot.lane.b32.xlu0 %v3192, 40
      %v3669 = vpop.permute.xlu0 %3668
      %3670 = vrot.lane.b32.xlu0 %v3193, 40
      %v3671 = vpop.permute.xlu0 %3670
      %3672 = vrot.lane.b32.xlu0 %v3194, 40
      %v3673 = vpop.permute.xlu0 %3672
      %3674 = vrot.lane.b32.xlu0 %v3195, 40
      %v3675 = vpop.permute.xlu0 %3674
      %3676 = vrot.lane.b32.xlu0 %v3196, 40
      %v3677 = vpop.permute.xlu0 %3676
      %3678 = vrot.lane.b32.xlu0 %v3197, 40
      %v3679 = vpop.permute.xlu0 %3678
      %3680 = vrot.lane.b32.xlu0 %v3198, 40
      %v3681 = vpop.permute.xlu0 %3680
      %3682 = vrot.lane.b32.xlu0 %v3199, 40
      %v3683 = vpop.permute.xlu0 %3682
      %3684 = vrot.lane.b32.xlu0 %v3200, 40
      %v3685 = vpop.permute.xlu0 %3684
      %3686 = vrot.lane.b32.xlu0 %v3201, 40
      %v3687 = vpop.permute.xlu0 %3686
      %3688 = vrot.lane.b32.xlu0 %v3202, 40
      %v3689 = vpop.permute.xlu0 %3688
      %3690 = vrot.lane.b32.xlu0 %v3203, 40
      %v3691 = vpop.permute.xlu0 %3690
      %v3708 = vadd.f32 %v3644, %v3661
      %v3709 = vadd.f32 %v3645, %v3663
      %v3710 = vadd.f32 %v3646, %v3665
      %v3711 = vadd.f32 %v3647, %v3667
      %v3712 = vadd.f32 %v3648, %v3669
      %v3713 = vadd.f32 %v3649, %v3671
      %v3714 = vadd.f32 %v3650, %v3673
      %v3715 = vadd.f32 %v3651, %v3675
      %v3716 = vadd.f32 %v3652, %v3677
      %v3717 = vadd.f32 %v3653, %v3679
      %v3718 = vadd.f32 %v3654, %v3681
      %v3719 = vadd.f32 %v3655, %v3683
      %v3720 = vadd.f32 %v3656, %v3685
      %v3721 = vadd.f32 %v3657, %v3687
      %v3722 = vadd.f32 %v3658, %v3689
      %v3723 = vadd.f32 %v3659, %v3691
      %v3724 = vld [vmem:[%s11] sm:$0x1]
      %v3726 = vlaneseq
      %v3727 = vshrl.u32 %v3726, 7
      %v3728 = vsub.s32 0, %v3727
      %v3729 = vrot.slane %v3724, %v3728
      %v3731 = vadd.f32 %v3708, %v3729
      %v3732 = vadd.f32 %v3709, %v3729
      %v3733 = vadd.f32 %v3710, %v3729
      %v3734 = vadd.f32 %v3711, %v3729
      %v3735 = vadd.f32 %v3712, %v3729
      %v3736 = vadd.f32 %v3713, %v3729
      %v3737 = vadd.f32 %v3714, %v3729
      %v3738 = vadd.f32 %v3715, %v3729
      %v3739 = vadd.f32 %v3716, %v3729
      %v3740 = vadd.f32 %v3717, %v3729
      %v3741 = vadd.f32 %v3718, %v3729
      %v3742 = vadd.f32 %v3719, %v3729
      %v3743 = vadd.f32 %v3720, %v3729
      %v3744 = vadd.f32 %v3721, %v3729
      %v3745 = vadd.f32 %v3722, %v3729
      %v3746 = vadd.f32 %v3723, %v3729
      %v3747 = vsub.f32 0.0, %v3731
      %v3748 = vsub.f32 0.0, %v3732
      %v3749 = vsub.f32 0.0, %v3733
      %v3750 = vsub.f32 0.0, %v3734
      %v3751 = vsub.f32 0.0, %v3735
      %v3752 = vsub.f32 0.0, %v3736
      %v3753 = vsub.f32 0.0, %v3737
      %v3754 = vsub.f32 0.0, %v3738
      %v3755 = vsub.f32 0.0, %v3739
      %v3756 = vsub.f32 0.0, %v3740
      %v3757 = vsub.f32 0.0, %v3741
      %v3758 = vsub.f32 0.0, %v3742
      %v3759 = vsub.f32 0.0, %v3743
      %v3760 = vsub.f32 0.0, %v3744
      %v3761 = vsub.f32 0.0, %v3745
      %v3762 = vsub.f32 0.0, %v3746
      %v3763 = vmul.f32 %v3747, 1.442695
      %v3764 = vpow.pop %v3763
      %v3765 = vmul.f32 %v3748, 1.442695
      %v3766 = vpow.pop %v3765
      %v3767 = vmul.f32 %v3749, 1.442695
      %v3768 = vpow.pop %v3767
      %v3769 = vmul.f32 %v3750, 1.442695
      %v3770 = vpow.pop %v3769
      %v3771 = vmul.f32 %v3751, 1.442695
      %v3772 = vpow.pop %v3771
      %v3773 = vmul.f32 %v3752, 1.442695
      %v3774 = vpow.pop %v3773
      %v3775 = vmul.f32 %v3753, 1.442695
      %v3776 = vpow.pop %v3775
      %v3777 = vmul.f32 %v3754, 1.442695
      %v3778 = vpow.pop %v3777
      %v3779 = vmul.f32 %v3755, 1.442695
      %v3780 = vpow.pop %v3779
      %v3781 = vmul.f32 %v3756, 1.442695
      %v3782 = vpow.pop %v3781
      %v3783 = vmul.f32 %v3757, 1.442695
      %v3784 = vpow.pop %v3783
      %v3785 = vmul.f32 %v3758, 1.442695
      %v3786 = vpow.pop %v3785
      %v3787 = vmul.f32 %v3759, 1.442695
      %v3788 = vpow.pop %v3787
      %v3789 = vmul.f32 %v3760, 1.442695
      %v3790 = vpow.pop %v3789
      %v3791 = vmul.f32 %v3761, 1.442695
      %v3792 = vpow.pop %v3791
      %v3793 = vmul.f32 %v3762, 1.442695
      %v3794 = vpow.pop %v3793
      %v3795 = vadd.f32 %v3764, 1.0
      %v3796 = vadd.f32 %v3766, 1.0
      %v3797 = vadd.f32 %v3768, 1.0
      %v3798 = vadd.f32 %v3770, 1.0
      %v3799 = vadd.f32 %v3772, 1.0
      %v3800 = vadd.f32 %v3774, 1.0
      %v3801 = vadd.f32 %v3776, 1.0
      %v3802 = vadd.f32 %v3778, 1.0
      %v3803 = vadd.f32 %v3780, 1.0
      %v3804 = vadd.f32 %v3782, 1.0
      %v3805 = vadd.f32 %v3784, 1.0
      %v3806 = vadd.f32 %v3786, 1.0
      %v3807 = vadd.f32 %v3788, 1.0
      %v3808 = vadd.f32 %v3790, 1.0
      %v3809 = vadd.f32 %v3792, 1.0
      %v3810 = vadd.f32 %v3794, 1.0
      %v3811 = vrcp.pop %v3795
      %v3812 = vrcp.pop %v3796
      %v3813 = vrcp.pop %v3797
      %v3814 = vrcp.pop %v3798
      %v3815 = vrcp.pop %v3799
      %v3816 = vrcp.pop %v3800
      %v3817 = vrcp.pop %v3801
      %v3818 = vrcp.pop %v3802
      %v3819 = vrcp.pop %v3803
      %v3820 = vrcp.pop %v3804
      %v3821 = vrcp.pop %v3805
      %v3822 = vrcp.pop %v3806
      %v3823 = vrcp.pop %v3807
      %v3824 = vrcp.pop %v3808
      %v3825 = vrcp.pop %v3809
      %v3826 = vrcp.pop %v3810
      %v3827 = vmul.f32 %v3291, %v3811
      %v3828 = vmul.f32 %v3292, %v3812
      %v3829 = vmul.f32 %v3293, %v3813
      %v3830 = vmul.f32 %v3294, %v3814
      %v3831 = vmul.f32 %v3295, %v3815
      %v3832 = vmul.f32 %v3296, %v3816
      %v3833 = vmul.f32 %v3297, %v3817
      %v3834 = vmul.f32 %v3298, %v3818
      %v3835 = vmul.f32 %v3299, %v3819
      %v3836 = vmul.f32 %v3300, %v3820
      %v3837 = vmul.f32 %v3301, %v3821
      %v3838 = vmul.f32 %v3302, %v3822
      %v3839 = vmul.f32 %v3303, %v3823
      %v3840 = vmul.f32 %v3304, %v3824
      %v3841 = vmul.f32 %v3305, %v3825
      %v3842 = vmul.f32 %v3306, %v3826
      %v3843 = vadd.f32 %v740, %v3827
      %v3844 = vadd.f32 %v741, %v3828
      %v3845 = vadd.f32 %v742, %v3829
      %v3846 = vadd.f32 %v743, %v3830
      %v3847 = vadd.f32 %v744, %v3831
      %v3848 = vadd.f32 %v745, %v3832
      %v3849 = vadd.f32 %v746, %v3833
      %v3850 = vadd.f32 %v747, %v3834
      %v3851 = vadd.f32 %v748, %v3835
      %v3852 = vadd.f32 %v749, %v3836
      %v3853 = vadd.f32 %v750, %v3837
      %v3854 = vadd.f32 %v751, %v3838
      %v3855 = vadd.f32 %v752, %v3839
      %v3856 = vadd.f32 %v753, %v3840
      %v3857 = vadd.f32 %v754, %v3841
      %v3858 = vadd.f32 %v755, %v3842
      %3859 = vst.msk [vmem:[%s487] sm:$0xff] %vm940, %v3843
      %3860 = vst.msk [vmem:[%s487 + $0x8] sm:$0xff] %vm940, %v3844
      %3861 = vst.msk [vmem:[%s487 + $0x10] sm:$0xff] %vm940, %v3845
      %3862 = vst.msk [vmem:[%s487 + $0x18] sm:$0xff] %vm940, %v3846
      %3863 = vst.msk [vmem:[%s487 + $0x20] sm:$0xff] %vm940, %v3847
      %3864 = vst.msk [vmem:[%s487 + $0x28] sm:$0xff] %vm940, %v3848
      %3865 = vst.msk [vmem:[%s487 + $0x30] sm:$0xff] %vm940, %v3849
      %3866 = vst.msk [vmem:[%s487 + $0x38] sm:$0xff] %vm940, %v3850
      %3867 = vst.msk [vmem:[%s487 + $0x40] sm:$0xff] %vm940, %v3851
      %3868 = vst.msk [vmem:[%s487 + $0x48] sm:$0xff] %vm940, %v3852
      %3869 = vst.msk [vmem:[%s487 + $0x50] sm:$0xff] %vm940, %v3853
      %3870 = vst.msk [vmem:[%s487 + $0x58] sm:$0xff] %vm940, %v3854
      %3871 = vst.msk [vmem:[%s487 + $0x60] sm:$0xff] %vm940, %v3855
      %3872 = vst.msk [vmem:[%s487 + $0x68] sm:$0xff] %vm940, %v3856
      %3873 = vst.msk [vmem:[%s487 + $0x70] sm:$0xff] %vm940, %v3857
      %3874 = vst.msk [vmem:[%s487 + $0x78] sm:$0xff] %vm940, %v3858
      %s3875 = smul.u32 16, %s28
      %p3876 = scmp.lt.s32.totalorder %s27, 1
      %s3877 = scalar_select %p3876, %s27, 1
      %p3878 = scmp.lt.s32.totalorder %s3875, 31
      %s3879 = scalar_select %p3878, %s3875, 31
      %s3880 = smul.addr %s3877, 32
      %s3881 = sadd.s32 %s3879, %s3880
      %s3882 = smul.addr %s3881, 8
      %s3883 = scalar_lea.vmem %s12, %s3882
      // Predicated region
      $region73: #{tpu_custom_call.1} parent=67 // pred_check
        %p3884 = pneg %p321
      $region74: #{tpu_custom_call.1} parent=67 // pred_check_branch
        %3886 = sbr.rel (%p3884) target = $region76
      $region75: #{tpu_custom_call.1} parent=67 // pred_region
        %s3887 = smul.u32 16, %s28
      $region76: #{tpu_custom_call.1} parent=67 // pred_fallthru
        _
    $region68: #{tpu_custom_call.1} parent=5 // pred_fallthru
      _
    %p3888 = scmp.le.s32.totalorder 2, %s18
    // Predicated region
    $region77: #{tpu_custom_call.1} parent=5 // pred_check
      %p3889 = pneg %p3888
    $region78: #{tpu_custom_call.1} parent=5 // pred_check_branch
      %3891 = sbr.rel (%p3889) target = $region80
    $region79: #{tpu_custom_call.1} parent=5 // pred_region
      %s3892 = ssub.s32 %s18, 2
      // Predicated region
      $region81: #{tpu_custom_call.1} parent=79 // pred_check
        %p3893 = pneg %p327
      $region82: #{tpu_custom_call.1} parent=79 // pred_check_branch
        %3895 = sbr.rel (%p3893) target = $region84
      $region83: #{tpu_custom_call.1} parent=79 // pred_region
        %s3896 = smul.u32 16, %s30
        %p3897 = scmp.lt.s32.totalorder %s29, 1
        %s3898 = scalar_select %p3897, %s29, 1
        %p3899 = scmp.lt.s32.totalorder %s3896, 31
        %s3900 = scalar_select %p3899, %s3896, 31
        %s3901 = smul.addr %s3898, 32
        %s3902 = sadd.s32 %s3900, %s3901
        %s3903 = smul.addr %s3902, 8
        %s3904 = scalar_lea.vmem %s12, %s3903
      $region84: #{tpu_custom_call.1} parent=79 // pred_fallthru
        _
    $region80: #{tpu_custom_call.1} parent=5 // pred_fallthru
      _
  $region6: #{tpu_custom_call.1} parent=0 // loop_footer
    %s22 = sadd.s32 1, %s18
  $region7: #{tpu_custom_call.1} parent=0 // loop_footer_branch
    %17 = sbr.rel target = $region3
  $region8: #{tpu_custom_call.1} parent=0 // loop_exit
    _

</llo_original>
